<compile_context>
chip_gen: v7x
topology: tpu7x:2x2x1
jax: 0.10.0
libtpu: 0.0.40
codegen_flags: <defaults>
</compile_context>

<pallas_src>
import functools

import jax
import jax.numpy as jnp
from jax import lax
from jax.experimental import pallas as pl
from jax.experimental.pallas import tpu as pltpu

NBINS = 256
_NT = NBINS - 2               # 254 candidate thresholds per axis (t in [1, 254])
_BIG = float(_NT * _NT)       # sentinel flat index ("not a candidate")
_NC = 16                      # coarse / fine factor (16 * 16 = 256 bins)
_NC_LOG2 = 4
_RC = 8                       # histogram row chunk (rows per fori_loop step)
_RC_LOG2 = 3


def _box_fwd_sum(x, k, axis, size):
    """Circular k-tap running sum along `axis` via shift-doubling rolls."""
    if k <= 1:
        return x
    acc, acc_len = None, 0
    cur, cur_len = x, 1
    kk = k
    while kk:
        if kk & 1:
            if acc is None:
                acc, acc_len = cur, cur_len
            else:
                acc = acc + pltpu.roll(cur, shift=(-acc_len) % size, axis=axis)
                acc_len += cur_len
        kk >>= 1
        if kk:
            cur = cur + pltpu.roll(cur, shift=(-cur_len) % size, axis=axis)
            cur_len *= 2
    return acc


def _box_centered_sum(x, k, p, axis, size):
    """Centered k-tap box sum (window [-p, +p], odd k); roll-direction invariant."""
    if k <= 1:
        return x
    s = _box_fwd_sum(x, k, axis, size)
    return pltpu.roll(s, shift=p % size, axis=axis)


def _detail_loss_kernel(lab_ref, prd_ref, img_ref, out_ref, dil_sc,
                        *, H, W, HT, WT, k, p):
    f32 = jnp.float32

    # ------------------------------------------------------------------ #
    # 1) dilation: separable k-tap box filter (XLU rolls), then > 0.
    #    All inputs live at offset (p, p) inside a zero-padded (HT, WT)
    #    tile, so circular wrap never pollutes the valid region.
    # ------------------------------------------------------------------ #
    rows = lax.broadcasted_iota(jnp.int32, (HT, WT), 0)
    cols = lax.broadcasted_iota(jnp.int32, (HT, WT), 1)
    region = (rows >= p) & (rows < p + H) & (cols >= p) & (cols < p + W)

    lab = lab_ref[...]                                        # (HT, WT) f32
    if k > 0:
        s = _box_centered_sum(lab, k, p, axis=1, size=WT)     # horizontal taps
        s = _box_centered_sum(s, k, p, axis=0, size=HT)       # vertical taps
        dil = jnp.where((s > 0.0) & region, 1.0, 0.0)
    else:
        dil = jnp.where(region, lab, 0.0)
    dil_sc[...] = dil

    # ------------------------------------------------------------------ #
    # 2) masked 256-bin histogram (torch.histc range [0, 255]) as a
    #    coarse(16) x fine(16) outer-product on the MXU, streamed in
    #    8-row chunks. Masked / out-of-range pixels get a sentinel bin.
    # ------------------------------------------------------------------ #
    nrows = _NC * _RC                                         # 128

    def chunk_body(c, acc):
        r0 = pl.multiple_of(c * _RC, _RC)
        dl = dil_sc[pl.ds(r0, _RC), :]                        # (RC, WT)
        im = img_ref[pl.ds(r0, _RC), :] * dl                  # images * dilated
        v = im * 255.0
        inc = (dl > 0.0) & (v >= 0.0) & (v <= 255.0)
        bi = jnp.clip(jnp.floor(v * (NBINS / 255.0)), 0.0, float(NBINS - 1))
        bi = jnp.where(inc, bi.astype(jnp.int32), NBINS)      # sentinel -> no match
        coarse = bi >> _NC_LOG2                               # bin // 16 (16 = no match)
        fine = bi & (_NC - 1)                                 # bin % 16
        # lane-dense (16*RC, WT) one-hots: block q holds rows where value == q
        c_oh = jnp.concatenate(
            [(coarse == q).astype(f32) for q in range(_NC)], axis=0)
        f_oh = jnp.concatenate(
            [(fine == q).astype(f32) for q in range(_NC)], axis=0)
        # contract over the lane (pixel-column) axis on the MXU
        part = lax.dot_general(c_oh, f_oh,
                               dimension_numbers=(((1,), (1,)), ((), ())),
                               preferred_element_type=f32)     # (128, 128)
        return acc + part

    big = lax.fori_loop(0, HT // _RC, chunk_body,
                        jnp.zeros((nrows, nrows), f32))

    # fold the 8x8 diagonal blocks of `big` down to the (16, 16) histogram.
    a0 = lax.broadcasted_iota(jnp.int32, (nrows, nrows), 0)
    a1 = lax.broadcasted_iota(jnp.int32, (nrows, nrows), 1)
    diagm = jnp.where((a0 & (_RC - 1)) == (a1 & (_RC - 1)), 1.0, 0.0)
    g0 = lax.broadcasted_iota(jnp.int32, (_NC, nrows), 0)
    g1 = lax.broadcasted_iota(jnp.int32, (_NC, nrows), 1)
    gmat = jnp.where((g1 >> _RC_LOG2) == g0, 1.0, 0.0)        # (16, 128)
    t0 = lax.broadcasted_iota(jnp.int32, (nrows, _NC), 0)
    t1 = lax.broadcasted_iota(jnp.int32, (nrows, _NC), 1)
    gtmat = jnp.where((t0 >> _RC_LOG2) == t1, 1.0, 0.0)       # (128, 16)
    hist16 = jnp.dot(jnp.dot(gmat, big * diagm, preferred_element_type=f32),
                     gtmat, preferred_element_type=f32)       # (16, 16) counts

    total = jnp.sum(jnp.sum(hist16, axis=1, keepdims=True),
                    axis=0, keepdims=True)                    # (1, 1)
    hist16 = hist16 / jnp.maximum(total, 1.0)                 # NaN-guarded

    # (16,16) -> (1,256) relayout: one small matmul + select + sublane reduce
    s0 = lax.broadcasted_iota(jnp.int32, (_NC, NBINS), 0)
    s1 = lax.broadcasted_iota(jnp.int32, (_NC, NBINS), 1)
    pmat = jnp.where((s1 & (_NC - 1)) == s0, 1.0, 0.0)        # [b%16 == f]
    msel = jnp.where((s1 >> _NC_LOG2) == s0, 1.0, 0.0)        # [b//16 == c]
    spread = jnp.dot(hist16, pmat, preferred_element_type=f32)   # (16, 256)
    hist = jnp.sum(spread * msel, axis=0, keepdims=True)      # (1, 256)

    # cumulative sums of [hist ; hist*level] via one MXU pass against the
    # in-kernel upper-triangular constant U[b, t] = (b <= t).
    b0 = lax.broadcasted_iota(jnp.int32, (NBINS, NBINS), 0)
    b1 = lax.broadcasted_iota(jnp.int32, (NBINS, NBINS), 1)
    umat = jnp.where(b0 <= b1, 1.0, 0.0)
    r8 = lax.broadcasted_iota(jnp.int32, (8, NBINS), 0)
    lev8 = lax.broadcasted_iota(jnp.int32, (8, NBINS), 1).astype(f32)
    stack8 = jnp.broadcast_to(hist, (8, NBINS)) * jnp.where(
        r8 == 0, 1.0, jnp.where(r8 == 1, lev8, 0.0))
    cum8 = jnp.dot(stack8, umat, preferred_element_type=f32)  # (8, 256)

    ch_row = cum8[0:1, :]                                     # cum_hist, lane-major
    cm_row = cum8[1:2, :]                                     # cum_mean, lane-major
    tmean = cm_row[:, NBINS - 1:NBINS]                        # (1, 1) total mean
    cum8t = cum8.T                                            # (256, 8)
    ch_col = cum8t[:, 0:1]                                    # cum_hist, sublane-major
    cm_col = cum8t[:, 1:2]                                    # cum_mean, sublane-major

    # ------------------------------------------------------------------ #
    # 3) multi-Otsu on the (t1, t2) grid (literal torch formula).
    # ------------------------------------------------------------------ #
    eps = 1e-8
    w0 = ch_col                                               # (256, 1)
    w1 = ch_row - ch_col                                      # (256, 256)
    w2 = 1.0 - ch_row                                         # (1, 256)
    m0 = cm_col / (w0 + eps)
    m1 = (cm_row - cm_col) / (w1 + eps)
    m2 = (tmean - cm_row) / (w2 + eps)
    d0 = m0 - tmean
    d1 = m1 - tmean
    d2 = m2 - tmean
    bv = w0 * d0 * d0 + w1 * d1 * d1 + w2 * d2 * d2           # (256, 256)

    inr = (b0 < _NT) & (b1 < _NT)
    flatv = jnp.where(inr, (b0 * _NT + b1).astype(f32), _BIG)
    ok = (w0 > 0.0) & (w1 > 0.0) & (w2 > 0.0) & inr
    bv = jnp.where(ok, bv, 0.0)

    mx = jnp.max(jnp.max(bv, axis=1, keepdims=True), axis=0, keepdims=True)
    cand = jnp.where(bv >= mx, flatv, _BIG)                   # first (row-major) max
    best = jnp.min(jnp.min(cand, axis=1, keepdims=True), axis=0, keepdims=True)

    i_f = jnp.floor(best / float(_NT))
    j_f = best - i_f * float(_NT)
    thre1 = (i_f + 1.0) / 255.0                               # (1, 1)
    thre2 = (j_f + 1.0) / 255.0

    # ------------------------------------------------------------------ #
    # 4) thresholded target + per-sample sums, packed lane-dense.
    # ------------------------------------------------------------------ #
    dil_full = dil_sc[...]
    img = img_ref[...] * dil_full
    cpred = prd_ref[...] * dil_full
    cropped = jnp.where(img >= thre2, 1.0,
                        jnp.where(img >= thre1, 0.5, 0.0))
    diff = cropped - cpred
    ssd = jnp.sum(jnp.sum(diff * diff, axis=1, keepdims=True),
                  axis=0, keepdims=True)                      # (1, 1)
    sdl = jnp.sum(jnp.sum(dil_full, axis=1, keepdims=True),
                  axis=0, keepdims=True)                      # (1, 1)

    li = lax.broadcasted_iota(jnp.int32, (1, 128), 1)
    out_ref[...] = jnp.where(li == 0, ssd, jnp.where(li == 1, sdl, 0.0))


def _ceil_to(x, m):
    return ((x + m - 1) // m) * m


def _vmem_limit_bytes():
    cap = None
    try:
        info = pltpu.get_tpu_info()
        cap = getattr(info, "vmem_capacity_bytes", None)
        if cap is None:
            cap = getattr(info, "vmem_size_bytes", None)
    except Exception:
        cap = None
    if cap is not None and cap >= 96 * 1024 * 1024:
        return 96 * 1024 * 1024        # v5e / v6e: 128 MiB physical VMEM
    return 48 * 1024 * 1024            # v7x (64 MiB) or unknown


def detail_loss(preds, labels, images, dilation_kernel_size=5):
    """preds, labels, images: (B, 1, H, W) float32, NCHW like PyTorch."""
    B, C, H, W = preds.shape
    assert C == 1, "Detail_loss semantics assume a single channel"
    f32 = jnp.float32
    k = int(dilation_kernel_size)
    p = k // 2 if k > 0 else 0

    HT = max(_RC, _ceil_to(H + 2 * p, _RC))                   # sublane-aligned
    WT = max(128, _ceil_to(W + 2 * p, 128))                   # lane-aligned

    pad = ((0, 0), (p, HT - H - p), (p, WT - W - p))
    lab_p = jnp.pad(labels[:, 0].astype(f32), pad)
    prd_p = jnp.pad(preds[:, 0].astype(f32), pad)
    img_p = jnp.pad(images[:, 0].astype(f32), pad)

    kern = functools.partial(_detail_loss_kernel, H=H, W=W, HT=HT, WT=WT,
                             k=k, p=p)
    res = pl.pallas_call(
        kern,
        out_shape=jax.ShapeDtypeStruct((B, 1, 128), f32),
        grid_spec=pltpu.PrefetchScalarGridSpec(
            num_scalar_prefetch=0,
            grid=(B,),
            in_specs=[
                pl.BlockSpec((None, HT, WT), lambda b: (b, 0, 0)),   # labels
                pl.BlockSpec((None, HT, WT), lambda b: (b, 0, 0)),   # preds
                pl.BlockSpec((None, HT, WT), lambda b: (b, 0, 0)),   # images
            ],
            out_specs=pl.BlockSpec((None, 1, 128), lambda b: (b, 0, 0)),
            scratch_shapes=[pltpu.VMEM((HT, WT), f32)]),             # dilated labels
        compiler_params=pltpu.CompilerParams(
            dimension_semantics=("parallel",),
            vmem_limit_bytes=_vmem_limit_bytes()),
    )(lab_p, prd_p, img_p)

    # ---- plain-JAX glue: mean over valid samples (tiny B-length reduce) ----
    ssd = res[:, 0, 0]
    sdl = res[:, 0, 1]
    sum_d = sdl + 1e-8
    valid = sum_d > 1e-8
    norm = ssd / sum_d
    nvalid = jnp.sum(valid.astype(f32))
    loss = jnp.where(nvalid > 0,
                     jnp.sum(jnp.where(valid, norm, 0.0))
                     / jnp.maximum(nvalid, 1.0),
                     0.0)
    return loss


if __name__ == "__main__":
    key = jax.random.PRNGKey(0)
    k1, k2, k3 = jax.random.split(key, 3)
    B, C, H, W = 2, 1, 16, 16
    labels = (jax.random.uniform(k1, (B, C, H, W)) > 0.7).astype(jnp.float32)
    preds = jax.random.uniform(k2, (B, C, H, W), dtype=jnp.float32)
    images = jax.random.uniform(k3, (B, C, H, W), dtype=jnp.float32)

    loss = jax.jit(detail_loss)(preds, labels, images)
    jax.block_until_ready(loss)
    print("KERNEL_OK")
</pallas_src>

<mosaic_0001>
module attributes {stable_mosaic.version = 11 : i64} {
  func.func @_detail_loss_kernel(%arg0: i32, %arg1: memref<1x24x128xf32, #tpu.memory_space<vmem>>, %arg2: memref<1x24x128xf32, #tpu.memory_space<vmem>>, %arg3: memref<1x24x128xf32, #tpu.memory_space<vmem>>, %arg4: memref<1x1x128xf32, #tpu.memory_space<vmem>>, %arg5: memref<24x128xf32, #tpu.memory_space<vmem>>) attributes {dimension_semantics = [#tpu.dimension_semantics<parallel>], iteration_bounds = array<i64: 2>, scalar_prefetch = 0 : i64, scratch_operands = 1 : i64, tpu.core_type = #tpu.core_type<tc>, window_params = [{transform_indices = @transform_0, window_bounds = array<i64: 1, 24, 128>}, {transform_indices = @transform_1, window_bounds = array<i64: 1, 24, 128>}, {transform_indices = @transform_2, window_bounds = array<i64: 1, 24, 128>}, {transform_indices = @transform_3, window_bounds = array<i64: 1, 1, 128>}]} {
    %0 = tpu.iota {dimensions = array<i32: 0>} : vector<24x128xi32>
    %1 = tpu.iota {dimensions = array<i32: 1>} : vector<24x128xi32>
    %c2_i32 = arith.constant 2 : i32
    %2 = vector.broadcast %c2_i32 : i32 to vector<24x128xi32>
    %3 = arith.cmpi sge, %0, %2 : vector<24x128xi32>
    %c18_i32 = arith.constant 18 : i32
    %4 = vector.broadcast %c18_i32 : i32 to vector<24x128xi32>
    %5 = arith.cmpi slt, %0, %4 : vector<24x128xi32>
    %6 = arith.andi %3, %5 : vector<24x128xi1>
    %c2_i32_0 = arith.constant 2 : i32
    %7 = vector.broadcast %c2_i32_0 : i32 to vector<24x128xi32>
    %8 = arith.cmpi sge, %1, %7 : vector<24x128xi32>
    %9 = arith.andi %6, %8 : vector<24x128xi1>
    %c18_i32_1 = arith.constant 18 : i32
    %10 = vector.broadcast %c18_i32_1 : i32 to vector<24x128xi32>
    %11 = arith.cmpi slt, %1, %10 : vector<24x128xi32>
    %12 = arith.andi %9, %11 : vector<24x128xi1>
    %c0 = arith.constant 0 : index
    %c0_2 = arith.constant 0 : index
    %c0_3 = arith.constant 0 : index
    %13 = vector.load %arg1[%c0, %c0_2, %c0_3] : memref<1x24x128xf32, #tpu.memory_space<vmem>>, vector<1x24x128xf32>
    %14 = vector.shape_cast %13 : vector<1x24x128xf32> to vector<24x128xf32>
    %c127_i32 = arith.constant 127 : i32
    %15 = tpu.dynamic_rotate %14 by %c127_i32 dim 1 : vector<24x128xf32>, i32 -> vector<24x128xf32>
    %16 = arith.addf %14, %15 : vector<24x128xf32>
    %c126_i32 = arith.constant 126 : i32
    %17 = tpu.dynamic_rotate %16 by %c126_i32 dim 1 : vector<24x128xf32>, i32 -> vector<24x128xf32>
    %18 = arith.addf %16, %17 : vector<24x128xf32>
    %c127_i32_4 = arith.constant 127 : i32
    %19 = tpu.dynamic_rotate %18 by %c127_i32_4 dim 1 : vector<24x128xf32>, i32 -> vector<24x128xf32>
    %20 = arith.addf %14, %19 : vector<24x128xf32>
    %c2_i32_5 = arith.constant 2 : i32
    %21 = tpu.dynamic_rotate %20 by %c2_i32_5 dim 1 : vector<24x128xf32>, i32 -> vector<24x128xf32>
    %c23_i32 = arith.constant 23 : i32
    %22 = tpu.dynamic_rotate %21 by %c23_i32 dim 0 : vector<24x128xf32>, i32 -> vector<24x128xf32>
    %23 = arith.addf %21, %22 : vector<24x128xf32>
    %c22_i32 = arith.constant 22 : i32
    %24 = tpu.dynamic_rotate %23 by %c22_i32 dim 0 : vector<24x128xf32>, i32 -> vector<24x128xf32>
    %25 = arith.addf %23, %24 : vector<24x128xf32>
    %c23_i32_6 = arith.constant 23 : i32
    %26 = tpu.dynamic_rotate %25 by %c23_i32_6 dim 0 : vector<24x128xf32>, i32 -> vector<24x128xf32>
    %27 = arith.addf %21, %26 : vector<24x128xf32>
    %c2_i32_7 = arith.constant 2 : i32
    %28 = tpu.dynamic_rotate %27 by %c2_i32_7 dim 0 : vector<24x128xf32>, i32 -> vector<24x128xf32>
    %cst = arith.constant 0.000000e+00 : f32
    %29 = vector.broadcast %cst : f32 to vector<24x128xf32>
    %30 = arith.cmpf ogt, %28, %29 : vector<24x128xf32>
    %31 = arith.andi %30, %12 : vector<24x128xi1>
    %cst_8 = arith.constant 1.000000e+00 : f32
    %cst_9 = arith.constant 0.000000e+00 : f32
    %32 = vector.broadcast %cst_8 : f32 to vector<24x128xf32>
    %33 = vector.broadcast %cst_9 : f32 to vector<24x128xf32>
    %34 = arith.select %31, %32, %33 : vector<24x128xi1>, vector<24x128xf32>
    %c0_10 = arith.constant 0 : index
    %c0_11 = arith.constant 0 : index
    %35 = vector.load %arg5[%c0_10, %c0_11] : memref<24x128xf32, #tpu.memory_space<vmem>>, vector<24x128xf32>
    tpu.vector_store %arg5[%c0_10, %c0_11], %34 {strides = array<i32>} : memref<24x128xf32, #tpu.memory_space<vmem>>, vector<24x128xf32>,
    %cst_12 = arith.constant 0.000000e+00 : f32
    %36 = vector.broadcast %cst_12 : f32 to vector<128x128xf32>
    %c0_i32 = arith.constant 0 : i32
    %c3_i32 = arith.constant 3 : i32
    %37 = arith.addi %c0_i32, %c3_i32 : i32
    %c1_i32 = arith.constant 1 : i32
    %38 = scf.for %arg6 = %c0_i32 to %37 step %c1_i32 iter_args(%arg7 = %36) -> (vector<128x128xf32>)  : i32 {
      %c8_i32 = arith.constant 8 : i32
      %247 = arith.muli %arg6, %c8_i32 : i32
      %248 = tpu.assume_multiple %247, 8 : i32
      %249 = arith.index_cast %248 : i32 to index
      %c0_84 = arith.constant 0 : index
      %250 = vector.load %arg5[%249, %c0_84] : memref<24x128xf32, #tpu.memory_space<vmem>>, vector<8x128xf32>
      %c0_85 = arith.constant 0 : index
      %251 = arith.index_cast %248 : i32 to index
      %c0_86 = arith.constant 0 : index
      %252 = vector.load %arg3[%c0_85, %251, %c0_86] : memref<1x24x128xf32, #tpu.memory_space<vmem>>, vector<1x8x128xf32>
      %253 = vector.shape_cast %252 : vector<1x8x128xf32> to vector<8x128xf32>
      %254 = arith.mulf %253, %250 : vector<8x128xf32>
      %cst_87 = arith.constant 2.550000e+02 : f32
      %255 = vector.broadcast %cst_87 : f32 to vector<8x128xf32>
      %256 = arith.mulf %254, %255 : vector<8x128xf32>
      %cst_88 = arith.constant 0.000000e+00 : f32
      %257 = vector.broadcast %cst_88 : f32 to vector<8x128xf32>
      %258 = arith.cmpf ogt, %250, %257 : vector<8x128xf32>
      %cst_89 = arith.constant 0.000000e+00 : f32
      %259 = vector.broadcast %cst_89 : f32 to vector<8x128xf32>
      %260 = arith.cmpf oge, %256, %259 : vector<8x128xf32>
      %261 = arith.andi %258, %260 : vector<8x128xi1>
      %cst_90 = arith.constant 2.550000e+02 : f32
      %262 = vector.broadcast %cst_90 : f32 to vector<8x128xf32>
      %263 = arith.cmpf ole, %256, %262 : vector<8x128xf32>
      %264 = arith.andi %261, %263 : vector<8x128xi1>
      %cst_91 = arith.constant 1.00392163 : f32
      %265 = vector.broadcast %cst_91 : f32 to vector<8x128xf32>
      %266 = arith.mulf %256, %265 : vector<8x128xf32>
      %267 = math.floor %266 : vector<8x128xf32>
      %cst_92 = arith.constant 0.000000e+00 : f32
      %cst_93 = arith.constant 2.550000e+02 : f32
      %268 = vector.broadcast %cst_92 : f32 to vector<8x128xf32>
      %269 = arith.maximumf %268, %267 : vector<8x128xf32>
      %270 = vector.broadcast %cst_93 : f32 to vector<8x128xf32>
      %271 = arith.minimumf %270, %269 : vector<8x128xf32>
      %272 = arith.fptosi %271 : vector<8x128xf32> to vector<8x128xi32>
      %c256_i32 = arith.constant 256 : i32
      %273 = vector.broadcast %c256_i32 : i32 to vector<8x128xi32>
      %274 = arith.select %264, %272, %273 : vector<8x128xi1>, vector<8x128xi32>
      %c4_i32_94 = arith.constant 4 : i32
      %275 = vector.broadcast %c4_i32_94 : i32 to vector<8x128xi32>
      %276 = arith.shrsi %274, %275 : vector<8x128xi32>
      %c15_i32_95 = arith.constant 15 : i32
      %277 = vector.broadcast %c15_i32_95 : i32 to vector<8x128xi32>
      %278 = arith.andi %274, %277 : vector<8x128xi32>
      %c0_i32_96 = arith.constant 0 : i32
      %279 = vector.broadcast %c0_i32_96 : i32 to vector<8x128xi32>
      %280 = arith.cmpi eq, %276, %279 : vector<8x128xi32>
      %281 = arith.extui %280 : vector<8x128xi1> to vector<8x128xi32>
      %282 = arith.sitofp %281 : vector<8x128xi32> to vector<8x128xf32>
      %c1_i32_97 = arith.constant 1 : i32
      %283 = vector.broadcast %c1_i32_97 : i32 to vector<8x128xi32>
      %284 = arith.cmpi eq, %276, %283 : vector<8x128xi32>
      %285 = arith.extui %284 : vector<8x128xi1> to vector<8x128xi32>
      %286 = arith.sitofp %285 : vector<8x128xi32> to vector<8x128xf32>
      %c2_i32_98 = arith.constant 2 : i32
      %287 = vector.broadcast %c2_i32_98 : i32 to vector<8x128xi32>
      %288 = arith.cmpi eq, %276, %287 : vector<8x128xi32>
      %289 = arith.extui %288 : vector<8x128xi1> to vector<8x128xi32>
      %290 = arith.sitofp %289 : vector<8x128xi32> to vector<8x128xf32>
      %c3_i32_99 = arith.constant 3 : i32
      %291 = vector.broadcast %c3_i32_99 : i32 to vector<8x128xi32>
      %292 = arith.cmpi eq, %276, %291 : vector<8x128xi32>
      %293 = arith.extui %292 : vector<8x128xi1> to vector<8x128xi32>
      %294 = arith.sitofp %293 : vector<8x128xi32> to vector<8x128xf32>
      %c4_i32_100 = arith.constant 4 : i32
      %295 = vector.broadcast %c4_i32_100 : i32 to vector<8x128xi32>
      %296 = arith.cmpi eq, %276, %295 : vector<8x128xi32>
      %297 = arith.extui %296 : vector<8x128xi1> to vector<8x128xi32>
      %298 = arith.sitofp %297 : vector<8x128xi32> to vector<8x128xf32>
      %c5_i32 = arith.constant 5 : i32
      %299 = vector.broadcast %c5_i32 : i32 to vector<8x128xi32>
      %300 = arith.cmpi eq, %276, %299 : vector<8x128xi32>
      %301 = arith.extui %300 : vector<8x128xi1> to vector<8x128xi32>
      %302 = arith.sitofp %301 : vector<8x128xi32> to vector<8x128xf32>
      %c6_i32 = arith.constant 6 : i32
      %303 = vector.broadcast %c6_i32 : i32 to vector<8x128xi32>
      %304 = arith.cmpi eq, %276, %303 : vector<8x128xi32>
      %305 = arith.extui %304 : vector<8x128xi1> to vector<8x128xi32>
      %306 = arith.sitofp %305 : vector<8x128xi32> to vector<8x128xf32>
      %c7_i32_101 = arith.constant 7 : i32
      %307 = vector.broadcast %c7_i32_101 : i32 to vector<8x128xi32>
      %308 = arith.cmpi eq, %276, %307 : vector<8x128xi32>
      %309 = arith.extui %308 : vector<8x128xi1> to vector<8x128xi32>
      %310 = arith.sitofp %309 : vector<8x128xi32> to vector<8x128xf32>
      %c8_i32_102 = arith.constant 8 : i32
      %311 = vector.broadcast %c8_i32_102 : i32 to vector<8x128xi32>
      %312 = arith.cmpi eq, %276, %311 : vector<8x128xi32>
      %313 = arith.extui %312 : vector<8x128xi1> to vector<8x128xi32>
      %314 = arith.sitofp %313 : vector<8x128xi32> to vector<8x128xf32>
      %c9_i32 = arith.constant 9 : i32
      %315 = vector.broadcast %c9_i32 : i32 to vector<8x128xi32>
      %316 = arith.cmpi eq, %276, %315 : vector<8x128xi32>
      %317 = arith.extui %316 : vector<8x128xi1> to vector<8x128xi32>
      %318 = arith.sitofp %317 : vector<8x128xi32> to vector<8x128xf32>
      %c10_i32 = arith.constant 10 : i32
      %319 = vector.broadcast %c10_i32 : i32 to vector<8x128xi32>
      %320 = arith.cmpi eq, %276, %319 : vector<8x128xi32>
      %321 = arith.extui %320 : vector<8x128xi1> to vector<8x128xi32>
      %322 = arith.sitofp %321 : vector<8x128xi32> to vector<8x128xf32>
      %c11_i32 = arith.constant 11 : i32
      %323 = vector.broadcast %c11_i32 : i32 to vector<8x128xi32>
      %324 = arith.cmpi eq, %276, %323 : vector<8x128xi32>
      %325 = arith.extui %324 : vector<8x128xi1> to vector<8x128xi32>
      %326 = arith.sitofp %325 : vector<8x128xi32> to vector<8x128xf32>
      %c12_i32 = arith.constant 12 : i32
      %327 = vector.broadcast %c12_i32 : i32 to vector<8x128xi32>
      %328 = arith.cmpi eq, %276, %327 : vector<8x128xi32>
      %329 = arith.extui %328 : vector<8x128xi1> to vector<8x128xi32>
      %330 = arith.sitofp %329 : vector<8x128xi32> to vector<8x128xf32>
      %c13_i32 = arith.constant 13 : i32
      %331 = vector.broadcast %c13_i32 : i32 to vector<8x128xi32>
      %332 = arith.cmpi eq, %276, %331 : vector<8x128xi32>
      %333 = arith.extui %332 : vector<8x128xi1> to vector<8x128xi32>
      %334 = arith.sitofp %333 : vector<8x128xi32> to vector<8x128xf32>
      %c14_i32 = arith.constant 14 : i32
      %335 = vector.broadcast %c14_i32 : i32 to vector<8x128xi32>
      %336 = arith.cmpi eq, %276, %335 : vector<8x128xi32>
      %337 = arith.extui %336 : vector<8x128xi1> to vector<8x128xi32>
      %338 = arith.sitofp %337 : vector<8x128xi32> to vector<8x128xf32>
      %c15_i32_103 = arith.constant 15 : i32
      %339 = vector.broadcast %c15_i32_103 : i32 to vector<8x128xi32>
      %340 = arith.cmpi eq, %276, %339 : vector<8x128xi32>
      %341 = arith.extui %340 : vector<8x128xi1> to vector<8x128xi32>
      %342 = arith.sitofp %341 : vector<8x128xi32> to vector<8x128xf32>
      %343 = tpu.concatenate %282, %286, %290, %294, %298, %302, %306, %310, %314, %318, %322, %326, %330, %334, %338, %342 in 0 : vector<8x128xf32>, vector<8x128xf32>, vector<8x128xf32>, vector<8x128xf32>, vector<8x128xf32>, vector<8x128xf32>, vector<8x128xf32>, vector<8x128xf32>, vector<8x128xf32>, vector<8x128xf32>, vector<8x128xf32>, vector<8x128xf32>, vector<8x128xf32>, vector<8x128xf32>, vector<8x128xf32>, vector<8x128xf32> -> vector<128x128xf32>
      %c0_i32_104 = arith.constant 0 : i32
      %344 = vector.broadcast %c0_i32_104 : i32 to vector<8x128xi32>
      %345 = arith.cmpi eq, %278, %344 : vector<8x128xi32>
      %346 = arith.extui %345 : vector<8x128xi1> to vector<8x128xi32>
      %347 = arith.sitofp %346 : vector<8x128xi32> to vector<8x128xf32>
      %c1_i32_105 = arith.constant 1 : i32
      %348 = vector.broadcast %c1_i32_105 : i32 to vector<8x128xi32>
      %349 = arith.cmpi eq, %278, %348 : vector<8x128xi32>
      %350 = arith.extui %349 : vector<8x128xi1> to vector<8x128xi32>
      %351 = arith.sitofp %350 : vector<8x128xi32> to vector<8x128xf32>
      %c2_i32_106 = arith.constant 2 : i32
      %352 = vector.broadcast %c2_i32_106 : i32 to vector<8x128xi32>
      %353 = arith.cmpi eq, %278, %352 : vector<8x128xi32>
      %354 = arith.extui %353 : vector<8x128xi1> to vector<8x128xi32>
      %355 = arith.sitofp %354 : vector<8x128xi32> to vector<8x128xf32>
      %c3_i32_107 = arith.constant 3 : i32
      %356 = vector.broadcast %c3_i32_107 : i32 to vector<8x128xi32>
      %357 = arith.cmpi eq, %278, %356 : vector<8x128xi32>
      %358 = arith.extui %357 : vector<8x128xi1> to vector<8x128xi32>
      %359 = arith.sitofp %358 : vector<8x128xi32> to vector<8x128xf32>
      %c4_i32_108 = arith.constant 4 : i32
      %360 = vector.broadcast %c4_i32_108 : i32 to vector<8x128xi32>
      %361 = arith.cmpi eq, %278, %360 : vector<8x128xi32>
      %362 = arith.extui %361 : vector<8x128xi1> to vector<8x128xi32>
      %363 = arith.sitofp %362 : vector<8x128xi32> to vector<8x128xf32>
      %c5_i32_109 = arith.constant 5 : i32
      %364 = vector.broadcast %c5_i32_109 : i32 to vector<8x128xi32>
      %365 = arith.cmpi eq, %278, %364 : vector<8x128xi32>
      %366 = arith.extui %365 : vector<8x128xi1> to vector<8x128xi32>
      %367 = arith.sitofp %366 : vector<8x128xi32> to vector<8x128xf32>
      %c6_i32_110 = arith.constant 6 : i32
      %368 = vector.broadcast %c6_i32_110 : i32 to vector<8x128xi32>
      %369 = arith.cmpi eq, %278, %368 : vector<8x128xi32>
      %370 = arith.extui %369 : vector<8x128xi1> to vector<8x128xi32>
      %371 = arith.sitofp %370 : vector<8x128xi32> to vector<8x128xf32>
      %c7_i32_111 = arith.constant 7 : i32
      %372 = vector.broadcast %c7_i32_111 : i32 to vector<8x128xi32>
      %373 = arith.cmpi eq, %278, %372 : vector<8x128xi32>
      %374 = arith.extui %373 : vector<8x128xi1> to vector<8x128xi32>
      %375 = arith.sitofp %374 : vector<8x128xi32> to vector<8x128xf32>
      %c8_i32_112 = arith.constant 8 : i32
      %376 = vector.broadcast %c8_i32_112 : i32 to vector<8x128xi32>
      %377 = arith.cmpi eq, %278, %376 : vector<8x128xi32>
      %378 = arith.extui %377 : vector<8x128xi1> to vector<8x128xi32>
      %379 = arith.sitofp %378 : vector<8x128xi32> to vector<8x128xf32>
      %c9_i32_113 = arith.constant 9 : i32
      %380 = vector.broadcast %c9_i32_113 : i32 to vector<8x128xi32>
      %381 = arith.cmpi eq, %278, %380 : vector<8x128xi32>
      %382 = arith.extui %381 : vector<8x128xi1> to vector<8x128xi32>
      %383 = arith.sitofp %382 : vector<8x128xi32> to vector<8x128xf32>
      %c10_i32_114 = arith.constant 10 : i32
      %384 = vector.broadcast %c10_i32_114 : i32 to vector<8x128xi32>
      %385 = arith.cmpi eq, %278, %384 : vector<8x128xi32>
      %386 = arith.extui %385 : vector<8x128xi1> to vector<8x128xi32>
      %387 = arith.sitofp %386 : vector<8x128xi32> to vector<8x128xf32>
      %c11_i32_115 = arith.constant 11 : i32
      %388 = vector.broadcast %c11_i32_115 : i32 to vector<8x128xi32>
      %389 = arith.cmpi eq, %278, %388 : vector<8x128xi32>
      %390 = arith.extui %389 : vector<8x128xi1> to vector<8x128xi32>
      %391 = arith.sitofp %390 : vector<8x128xi32> to vector<8x128xf32>
      %c12_i32_116 = arith.constant 12 : i32
      %392 = vector.broadcast %c12_i32_116 : i32 to vector<8x128xi32>
      %393 = arith.cmpi eq, %278, %392 : vector<8x128xi32>
      %394 = arith.extui %393 : vector<8x128xi1> to vector<8x128xi32>
      %395 = arith.sitofp %394 : vector<8x128xi32> to vector<8x128xf32>
      %c13_i32_117 = arith.constant 13 : i32
      %396 = vector.broadcast %c13_i32_117 : i32 to vector<8x128xi32>
      %397 = arith.cmpi eq, %278, %396 : vector<8x128xi32>
      %398 = arith.extui %397 : vector<8x128xi1> to vector<8x128xi32>
      %399 = arith.sitofp %398 : vector<8x128xi32> to vector<8x128xf32>
      %c14_i32_118 = arith.constant 14 : i32
      %400 = vector.broadcast %c14_i32_118 : i32 to vector<8x128xi32>
      %401 = arith.cmpi eq, %278, %400 : vector<8x128xi32>
      %402 = arith.extui %401 : vector<8x128xi1> to vector<8x128xi32>
      %403 = arith.sitofp %402 : vector<8x128xi32> to vector<8x128xf32>
      %c15_i32_119 = arith.constant 15 : i32
      %404 = vector.broadcast %c15_i32_119 : i32 to vector<8x128xi32>
      %405 = arith.cmpi eq, %278, %404 : vector<8x128xi32>
      %406 = arith.extui %405 : vector<8x128xi1> to vector<8x128xi32>
      %407 = arith.sitofp %406 : vector<8x128xi32> to vector<8x128xf32>
      %408 = tpu.concatenate %347, %351, %355, %359, %363, %367, %371, %375, %379, %383, %387, %391, %395, %399, %403, %407 in 0 : vector<8x128xf32>, vector<8x128xf32>, vector<8x128xf32>, vector<8x128xf32>, vector<8x128xf32>, vector<8x128xf32>, vector<8x128xf32>, vector<8x128xf32>, vector<8x128xf32>, vector<8x128xf32>, vector<8x128xf32>, vector<8x128xf32>, vector<8x128xf32>, vector<8x128xf32>, vector<8x128xf32>, vector<8x128xf32> -> vector<128x128xf32>
      %cst_120 = arith.constant dense<0.000000e+00> : vector<128x128xf32>
      %409 = tpu.matmul %343, %408, %cst_120 {dimension_numbers = #tpu.dot_dimension_numbers<[1], [1], [0], [0], [0, 0, 1, 0], [], []>} : vector<128x128xf32>, vector<128x128xf32>, vector<128x128xf32> -> vector<128x128xf32>
      %410 = arith.addf %arg7, %409 : vector<128x128xf32>
      scf.yield %410 : vector<128x128xf32>
    }
    %c3_i32_13 = arith.constant 3 : i32
    %39 = tpu.iota {dimensions = array<i32: 0>} : vector<128x128xi32>
    %40 = tpu.iota {dimensions = array<i32: 1>} : vector<128x128xi32>
    %c7_i32 = arith.constant 7 : i32
    %41 = vector.broadcast %c7_i32 : i32 to vector<128x128xi32>
    %42 = arith.andi %39, %41 : vector<128x128xi32>
    %c7_i32_14 = arith.constant 7 : i32
    %43 = vector.broadcast %c7_i32_14 : i32 to vector<128x128xi32>
    %44 = arith.andi %40, %43 : vector<128x128xi32>
    %45 = arith.cmpi eq, %42, %44 : vector<128x128xi32>
    %cst_15 = arith.constant 1.000000e+00 : f32
    %cst_16 = arith.constant 0.000000e+00 : f32
    %46 = vector.broadcast %cst_15 : f32 to vector<128x128xf32>
    %47 = vector.broadcast %cst_16 : f32 to vector<128x128xf32>
    %48 = arith.select %45, %46, %47 : vector<128x128xi1>, vector<128x128xf32>
    %49 = tpu.iota {dimensions = array<i32: 0>} : vector<16x128xi32>
    %50 = tpu.iota {dimensions = array<i32: 1>} : vector<16x128xi32>
    %c3_i32_17 = arith.constant 3 : i32
    %51 = vector.broadcast %c3_i32_17 : i32 to vector<16x128xi32>
    %52 = arith.shrsi %50, %51 : vector<16x128xi32>
    %53 = arith.cmpi eq, %52, %49 : vector<16x128xi32>
    %cst_18 = arith.constant 1.000000e+00 : f32
    %cst_19 = arith.constant 0.000000e+00 : f32
    %54 = vector.broadcast %cst_18 : f32 to vector<16x128xf32>
    %55 = vector.broadcast %cst_19 : f32 to vector<16x128xf32>
    %56 = arith.select %53, %54, %55 : vector<16x128xi1>, vector<16x128xf32>
    %57 = tpu.iota {dimensions = array<i32: 0>} : vector<128x16xi32>
    %58 = tpu.iota {dimensions = array<i32: 1>} : vector<128x16xi32>
    %c3_i32_20 = arith.constant 3 : i32
    %59 = vector.broadcast %c3_i32_20 : i32 to vector<128x16xi32>
    %60 = arith.shrsi %57, %59 : vector<128x16xi32>
    %61 = arith.cmpi eq, %60, %58 : vector<128x16xi32>
    %cst_21 = arith.constant 1.000000e+00 : f32
    %cst_22 = arith.constant 0.000000e+00 : f32
    %62 = vector.broadcast %cst_21 : f32 to vector<128x16xf32>
    %63 = vector.broadcast %cst_22 : f32 to vector<128x16xf32>
    %64 = arith.select %61, %62, %63 : vector<128x16xi1>, vector<128x16xf32>
    %65 = arith.mulf %38, %48 : vector<128x128xf32>
    %cst_23 = arith.constant dense<0.000000e+00> : vector<16x128xf32>
    %66 = tpu.matmul %56, %65, %cst_23 {dimension_numbers = #tpu.dot_dimension_numbers<[1], [0], [0], [1], [0, 0, 1, 1], [], []>} : vector<16x128xf32>, vector<128x128xf32>, vector<16x128xf32> -> vector<16x128xf32>
    %cst_24 = arith.constant dense<0.000000e+00> : vector<16x16xf32>
    %67 = tpu.matmul %66, %64, %cst_24 {dimension_numbers = #tpu.dot_dimension_numbers<[1], [0], [0], [1], [0, 0, 1, 1], [], []>} : vector<16x128xf32>, vector<128x16xf32>, vector<16x16xf32> -> vector<16x16xf32>
    %cst_25 = arith.constant dense<0.000000e+00> : vector<16xf32>
    %68 = vector.multi_reduction <add>, %67, %cst_25 [1] : vector<16x16xf32> to vector<16xf32>
    %69 = vector.shape_cast %68 : vector<16xf32> to vector<16x1xf32>
    %cst_26 = arith.constant dense<0.000000e+00> : vector<1xf32>
    %70 = vector.multi_reduction <add>, %69, %cst_26 [0] : vector<16x1xf32> to vector<1xf32>
    %71 = vector.shape_cast %70 : vector<1xf32> to vector<1x1xf32>
    %cst_27 = arith.constant 1.000000e+00 : f32
    %72 = vector.broadcast %cst_27 : f32 to vector<1x1xf32>
    %73 = arith.maximumf %71, %72 : vector<1x1xf32>
    %74 = vector.broadcast %73 : vector<1x1xf32> to vector<16x16xf32>
    %75 = arith.divf %67, %74 : vector<16x16xf32>
    %76 = tpu.iota {dimensions = array<i32: 0>} : vector<16x256xi32>
    %77 = tpu.iota {dimensions = array<i32: 1>} : vector<16x256xi32>
    %c15_i32 = arith.constant 15 : i32
    %78 = vector.broadcast %c15_i32 : i32 to vector<16x256xi32>
    %79 = arith.andi %77, %78 : vector<16x256xi32>
    %80 = arith.cmpi eq, %79, %76 : vector<16x256xi32>
    %cst_28 = arith.constant 1.000000e+00 : f32
    %cst_29 = arith.constant 0.000000e+00 : f32
    %81 = vector.broadcast %cst_28 : f32 to vector<16x256xf32>
    %82 = vector.broadcast %cst_29 : f32 to vector<16x256xf32>
    %83 = arith.select %80, %81, %82 : vector<16x256xi1>, vector<16x256xf32>
    %c4_i32 = arith.constant 4 : i32
    %84 = vector.broadcast %c4_i32 : i32 to vector<16x256xi32>
    %85 = arith.shrsi %77, %84 : vector<16x256xi32>
    %86 = arith.cmpi eq, %85, %76 : vector<16x256xi32>
    %cst_30 = arith.constant 1.000000e+00 : f32
    %cst_31 = arith.constant 0.000000e+00 : f32
    %87 = vector.broadcast %cst_30 : f32 to vector<16x256xf32>
    %88 = vector.broadcast %cst_31 : f32 to vector<16x256xf32>
    %89 = arith.select %86, %87, %88 : vector<16x256xi1>, vector<16x256xf32>
    %cst_32 = arith.constant dense<0.000000e+00> : vector<16x256xf32>
    %90 = tpu.matmul %75, %83, %cst_32 {dimension_numbers = #tpu.dot_dimension_numbers<[1], [0], [0], [1], [0, 0, 1, 1], [], []>} : vector<16x16xf32>, vector<16x256xf32>, vector<16x256xf32> -> vector<16x256xf32>
    %91 = arith.mulf %90, %89 : vector<16x256xf32>
    %cst_33 = arith.constant dense<0.000000e+00> : vector<256xf32>
    %92 = vector.multi_reduction <add>, %91, %cst_33 [0] : vector<16x256xf32> to vector<256xf32>
    %93 = vector.shape_cast %92 : vector<256xf32> to vector<1x256xf32>
    %94 = tpu.iota {dimensions = array<i32: 0>} : vector<256x256xi32>
    %95 = tpu.iota {dimensions = array<i32: 1>} : vector<256x256xi32>
    %96 = arith.cmpi sle, %94, %95 : vector<256x256xi32>
    %cst_34 = arith.constant 1.000000e+00 : f32
    %cst_35 = arith.constant 0.000000e+00 : f32
    %97 = vector.broadcast %cst_34 : f32 to vector<256x256xf32>
    %98 = vector.broadcast %cst_35 : f32 to vector<256x256xf32>
    %99 = arith.select %96, %97, %98 : vector<256x256xi1>, vector<256x256xf32>
    %100 = tpu.iota {dimensions = array<i32: 0>} : vector<8x256xi32>
    %101 = tpu.iota {dimensions = array<i32: 1>} : vector<8x256xi32>
    %102 = arith.sitofp %101 : vector<8x256xi32> to vector<8x256xf32>
    %103 = vector.shape_cast %93 : vector<1x256xf32> to vector<1x256xf32>
    %104 = vector.broadcast %103 : vector<1x256xf32> to vector<8x256xf32>
    %c0_i32_36 = arith.constant 0 : i32
    %105 = vector.broadcast %c0_i32_36 : i32 to vector<8x256xi32>
    %106 = arith.cmpi eq, %100, %105 : vector<8x256xi32>
    %c1_i32_37 = arith.constant 1 : i32
    %107 = vector.broadcast %c1_i32_37 : i32 to vector<8x256xi32>
    %108 = arith.cmpi eq, %100, %107 : vector<8x256xi32>
    %cst_38 = arith.constant 0.000000e+00 : f32
    %109 = vector.broadcast %cst_38 : f32 to vector<8x256xf32>
    %110 = arith.select %108, %102, %109 : vector<8x256xi1>, vector<8x256xf32>
    %cst_39 = arith.constant 1.000000e+00 : f32
    %111 = vector.broadcast %cst_39 : f32 to vector<8x256xf32>
    %112 = arith.select %106, %111, %110 : vector<8x256xi1>, vector<8x256xf32>
    %113 = arith.mulf %104, %112 : vector<8x256xf32>
    %cst_40 = arith.constant dense<0.000000e+00> : vector<8x256xf32>
    %114 = tpu.matmul %113, %99, %cst_40 {dimension_numbers = #tpu.dot_dimension_numbers<[1], [0], [0], [1], [0, 0, 1, 1], [], []>} : vector<8x256xf32>, vector<256x256xf32>, vector<8x256xf32> -> vector<8x256xf32>
    %115 = vector.extract_strided_slice %114 {offsets = [0, 0], sizes = [1, 256], strides = [1, 1]} : vector<8x256xf32> to vector<1x256xf32>
    %116 = vector.extract_strided_slice %114 {offsets = [1, 0], sizes = [1, 256], strides = [1, 1]} : vector<8x256xf32> to vector<1x256xf32>
    %117 = vector.extract_strided_slice %116 {offsets = [0, 255], sizes = [1, 1], strides = [1, 1]} : vector<1x256xf32> to vector<1x1xf32>
    %118 = tpu.transpose %114, [1, 0] : vector<8x256xf32> -> vector<256x8xf32>
    %119 = vector.extract_strided_slice %118 {offsets = [0, 0], sizes = [256, 1], strides = [1, 1]} : vector<256x8xf32> to vector<256x1xf32>
    %120 = vector.extract_strided_slice %118 {offsets = [0, 1], sizes = [256, 1], strides = [1, 1]} : vector<256x8xf32> to vector<256x1xf32>
    %121 = vector.broadcast %115 : vector<1x256xf32> to vector<256x256xf32>
    %122 = vector.broadcast %119 : vector<256x1xf32> to vector<256x256xf32>
    %123 = arith.subf %121, %122 : vector<256x256xf32>
    %cst_41 = arith.constant 1.000000e+00 : f32
    %124 = vector.broadcast %cst_41 : f32 to vector<1x256xf32>
    %125 = arith.subf %124, %115 : vector<1x256xf32>
    %cst_42 = arith.constant 9.99999993E-9 : f32
    %126 = vector.broadcast %cst_42 : f32 to vector<256x1xf32>
    %127 = arith.addf %119, %126 : vector<256x1xf32>
    %128 = arith.divf %120, %127 : vector<256x1xf32>
    %129 = vector.broadcast %116 : vector<1x256xf32> to vector<256x256xf32>
    %130 = vector.broadcast %120 : vector<256x1xf32> to vector<256x256xf32>
    %131 = arith.subf %129, %130 : vector<256x256xf32>
    %cst_43 = arith.constant 9.99999993E-9 : f32
    %132 = vector.broadcast %cst_43 : f32 to vector<256x256xf32>
    %133 = arith.addf %123, %132 : vector<256x256xf32>
    %134 = arith.divf %131, %133 : vector<256x256xf32>
    %135 = vector.broadcast %117 : vector<1x1xf32> to vector<1x256xf32>
    %136 = arith.subf %135, %116 : vector<1x256xf32>
    %cst_44 = arith.constant 9.99999993E-9 : f32
    %137 = vector.broadcast %cst_44 : f32 to vector<1x256xf32>
    %138 = arith.addf %125, %137 : vector<1x256xf32>
    %139 = arith.divf %136, %138 : vector<1x256xf32>
    %140 = vector.broadcast %117 : vector<1x1xf32> to vector<256x1xf32>
    %141 = arith.subf %128, %140 : vector<256x1xf32>
    %142 = vector.broadcast %117 : vector<1x1xf32> to vector<256x256xf32>
    %143 = arith.subf %134, %142 : vector<256x256xf32>
    %144 = vector.broadcast %117 : vector<1x1xf32> to vector<1x256xf32>
    %145 = arith.subf %139, %144 : vector<1x256xf32>
    %146 = arith.mulf %119, %141 : vector<256x1xf32>
    %147 = arith.mulf %146, %141 : vector<256x1xf32>
    %148 = arith.mulf %123, %143 : vector<256x256xf32>
    %149 = arith.mulf %148, %143 : vector<256x256xf32>
    %150 = vector.broadcast %147 : vector<256x1xf32> to vector<256x256xf32>
    %151 = arith.addf %150, %149 : vector<256x256xf32>
    %152 = arith.mulf %125, %145 : vector<1x256xf32>
    %153 = arith.mulf %152, %145 : vector<1x256xf32>
    %154 = vector.broadcast %153 : vector<1x256xf32> to vector<256x256xf32>
    %155 = arith.addf %151, %154 : vector<256x256xf32>
    %c254_i32 = arith.constant 254 : i32
    %156 = vector.broadcast %c254_i32 : i32 to vector<256x256xi32>
    %157 = arith.cmpi slt, %94, %156 : vector<256x256xi32>
    %c254_i32_45 = arith.constant 254 : i32
    %158 = vector.broadcast %c254_i32_45 : i32 to vector<256x256xi32>
    %159 = arith.cmpi slt, %95, %158 : vector<256x256xi32>
    %160 = arith.andi %157, %159 : vector<256x256xi1>
    %c254_i32_46 = arith.constant 254 : i32
    %161 = vector.broadcast %c254_i32_46 : i32 to vector<256x256xi32>
    %162 = arith.muli %94, %161 : vector<256x256xi32>
    %163 = arith.addi %162, %95 : vector<256x256xi32>
    %164 = arith.sitofp %163 : vector<256x256xi32> to vector<256x256xf32>
    %cst_47 = arith.constant 6.451600e+04 : f32
    %165 = vector.broadcast %cst_47 : f32 to vector<256x256xf32>
    %166 = arith.select %160, %164, %165 : vector<256x256xi1>, vector<256x256xf32>
    %cst_48 = arith.constant 0.000000e+00 : f32
    %167 = vector.broadcast %cst_48 : f32 to vector<256x1xf32>
    %168 = arith.cmpf ogt, %119, %167 : vector<256x1xf32>
    %cst_49 = arith.constant 0.000000e+00 : f32
    %169 = vector.broadcast %cst_49 : f32 to vector<256x256xf32>
    %170 = arith.cmpf ogt, %123, %169 : vector<256x256xf32>
    %171 = vector.broadcast %168 : vector<256x1xi1> to vector<256x256xi1>
    %172 = arith.andi %171, %170 : vector<256x256xi1>
    %cst_50 = arith.constant 0.000000e+00 : f32
    %173 = vector.broadcast %cst_50 : f32 to vector<1x256xf32>
    %174 = arith.cmpf ogt, %125, %173 : vector<1x256xf32>
    %175 = vector.broadcast %174 : vector<1x256xi1> to vector<256x256xi1>
    %176 = arith.andi %172, %175 : vector<256x256xi1>
    %177 = arith.andi %176, %160 : vector<256x256xi1>
    %cst_51 = arith.constant 0.000000e+00 : f32
    %178 = vector.broadcast %cst_51 : f32 to vector<256x256xf32>
    %179 = arith.select %177, %155, %178 : vector<256x256xi1>, vector<256x256xf32>
    %cst_52 = arith.constant dense<0xFF800000> : vector<256xf32>
    %180 = vector.multi_reduction <maximumf>, %179, %cst_52 [1] : vector<256x256xf32> to vector<256xf32>
    %181 = vector.shape_cast %180 : vector<256xf32> to vector<256x1xf32>
    %cst_53 = arith.constant dense<0xFF800000> : vector<1xf32>
    %182 = vector.multi_reduction <maximumf>, %181, %cst_53 [0] : vector<256x1xf32> to vector<1xf32>
    %183 = vector.shape_cast %182 : vector<1xf32> to vector<1x1xf32>
    %184 = vector.broadcast %183 : vector<1x1xf32> to vector<256x256xf32>
    %185 = arith.cmpf oge, %179, %184 : vector<256x256xf32>
    %cst_54 = arith.constant 6.451600e+04 : f32
    %186 = vector.broadcast %cst_54 : f32 to vector<256x256xf32>
    %187 = arith.select %185, %166, %186 : vector<256x256xi1>, vector<256x256xf32>
    %cst_55 = arith.constant dense<0x7F800000> : vector<256xf32>
    %188 = vector.multi_reduction <minimumf>, %187, %cst_55 [1] : vector<256x256xf32> to vector<256xf32>
    %189 = vector.shape_cast %188 : vector<256xf32> to vector<256x1xf32>
    %cst_56 = arith.constant dense<0x7F800000> : vector<1xf32>
    %190 = vector.multi_reduction <minimumf>, %189, %cst_56 [0] : vector<256x1xf32> to vector<1xf32>
    %191 = vector.shape_cast %190 : vector<1xf32> to vector<1x1xf32>
    %cst_57 = arith.constant 2.540000e+02 : f32
    %192 = vector.broadcast %cst_57 : f32 to vector<1x1xf32>
    %193 = arith.divf %191, %192 : vector<1x1xf32>
    %194 = math.floor %193 : vector<1x1xf32>
    %cst_58 = arith.constant 2.540000e+02 : f32
    %195 = vector.broadcast %cst_58 : f32 to vector<1x1xf32>
    %196 = arith.mulf %194, %195 : vector<1x1xf32>
    %197 = arith.subf %191, %196 : vector<1x1xf32>
    %cst_59 = arith.constant 1.000000e+00 : f32
    %198 = vector.broadcast %cst_59 : f32 to vector<1x1xf32>
    %199 = arith.addf %194, %198 : vector<1x1xf32>
    %cst_60 = arith.constant 2.550000e+02 : f32
    %200 = vector.broadcast %cst_60 : f32 to vector<1x1xf32>
    %201 = arith.divf %199, %200 : vector<1x1xf32>
    %cst_61 = arith.constant 1.000000e+00 : f32
    %202 = vector.broadcast %cst_61 : f32 to vector<1x1xf32>
    %203 = arith.addf %197, %202 : vector<1x1xf32>
    %cst_62 = arith.constant 2.550000e+02 : f32
    %204 = vector.broadcast %cst_62 : f32 to vector<1x1xf32>
    %205 = arith.divf %203, %204 : vector<1x1xf32>
    %c0_63 = arith.constant 0 : index
    %c0_64 = arith.constant 0 : index
    %206 = vector.load %arg5[%c0_63, %c0_64] : memref<24x128xf32, #tpu.memory_space<vmem>>, vector<24x128xf32>
    %c0_65 = arith.constant 0 : index
    %c0_66 = arith.constant 0 : index
    %c0_67 = arith.constant 0 : index
    %207 = vector.load %arg3[%c0_65, %c0_66, %c0_67] : memref<1x24x128xf32, #tpu.memory_space<vmem>>, vector<1x24x128xf32>
    %208 = vector.shape_cast %207 : vector<1x24x128xf32> to vector<24x128xf32>
    %209 = arith.mulf %208, %206 : vector<24x128xf32>
    %c0_68 = arith.constant 0 : index
    %c0_69 = arith.constant 0 : index
    %c0_70 = arith.constant 0 : index
    %210 = vector.load %arg2[%c0_68, %c0_69, %c0_70] : memref<1x24x128xf32, #tpu.memory_space<vmem>>, vector<1x24x128xf32>
    %211 = vector.shape_cast %210 : vector<1x24x128xf32> to vector<24x128xf32>
    %212 = arith.mulf %211, %206 : vector<24x128xf32>
    %213 = vector.broadcast %205 : vector<1x1xf32> to vector<24x128xf32>
    %214 = arith.cmpf oge, %209, %213 : vector<24x128xf32>
    %215 = vector.broadcast %201 : vector<1x1xf32> to vector<24x128xf32>
    %216 = arith.cmpf oge, %209, %215 : vector<24x128xf32>
    %cst_71 = arith.constant 5.000000e-01 : f32
    %cst_72 = arith.constant 0.000000e+00 : f32
    %217 = vector.broadcast %cst_71 : f32 to vector<24x128xf32>
    %218 = vector.broadcast %cst_72 : f32 to vector<24x128xf32>
    %219 = arith.select %216, %217, %218 : vector<24x128xi1>, vector<24x128xf32>
    %cst_73 = arith.constant 1.000000e+00 : f32
    %220 = vector.broadcast %cst_73 : f32 to vector<24x128xf32>
    %221 = arith.select %214, %220, %219 : vector<24x128xi1>, vector<24x128xf32>
    %222 = arith.subf %221, %212 : vector<24x128xf32>
    %223 = arith.mulf %222, %222 : vector<24x128xf32>
    %cst_74 = arith.constant dense<0.000000e+00> : vector<24xf32>
    %224 = vector.multi_reduction <add>, %223, %cst_74 [1] : vector<24x128xf32> to vector<24xf32>
    %225 = vector.shape_cast %224 : vector<24xf32> to vector<24x1xf32>
    %cst_75 = arith.constant dense<0.000000e+00> : vector<1xf32>
    %226 = vector.multi_reduction <add>, %225, %cst_75 [0] : vector<24x1xf32> to vector<1xf32>
    %227 = vector.shape_cast %226 : vector<1xf32> to vector<1x1xf32>
    %cst_76 = arith.constant dense<0.000000e+00> : vector<24xf32>
    %228 = vector.multi_reduction <add>, %206, %cst_76 [1] : vector<24x128xf32> to vector<24xf32>
    %229 = vector.shape_cast %228 : vector<24xf32> to vector<24x1xf32>
    %cst_77 = arith.constant dense<0.000000e+00> : vector<1xf32>
    %230 = vector.multi_reduction <add>, %229, %cst_77 [0] : vector<24x1xf32> to vector<1xf32>
    %231 = vector.shape_cast %230 : vector<1xf32> to vector<1x1xf32>
    %232 = tpu.iota {dimensions = array<i32: 1>} : vector<1x128xi32>
    %c0_i32_78 = arith.constant 0 : i32
    %233 = vector.broadcast %c0_i32_78 : i32 to vector<1x128xi32>
    %234 = arith.cmpi eq, %232, %233 : vector<1x128xi32>
    %c1_i32_79 = arith.constant 1 : i32
    %235 = vector.broadcast %c1_i32_79 : i32 to vector<1x128xi32>
    %236 = arith.cmpi eq, %232, %235 : vector<1x128xi32>
    %cst_80 = arith.constant 0.000000e+00 : f32
    %237 = vector.shape_cast %231 : vector<1x1xf32> to vector<1x1xf32>
    %238 = vector.broadcast %237 : vector<1x1xf32> to vector<1x128xf32>
    %239 = vector.broadcast %cst_80 : f32 to vector<1x128xf32>
    %240 = arith.select %236, %238, %239 : vector<1x128xi1>, vector<1x128xf32>
    %241 = vector.shape_cast %227 : vector<1x1xf32> to vector<1x1xf32>
    %242 = vector.broadcast %241 : vector<1x1xf32> to vector<1x128xf32>
    %243 = arith.select %234, %242, %240 : vector<1x128xi1>, vector<1x128xf32>
    %c0_81 = arith.constant 0 : index
    %c0_82 = arith.constant 0 : index
    %c0_83 = arith.constant 0 : index
    %244 = vector.load %arg4[%c0_81, %c0_82, %c0_83] : memref<1x1x128xf32, #tpu.memory_space<vmem>>, vector<1x1x128xf32>
    %245 = vector.shape_cast %244 : vector<1x1x128xf32> to vector<1x128xf32>
    %246 = vector.shape_cast %243 : vector<1x128xf32> to vector<1x1x128xf32>
    tpu.vector_store %arg4[%c0_81, %c0_82, %c0_83], %246 {strides = array<i32>} : memref<1x1x128xf32, #tpu.memory_space<vmem>>, vector<1x1x128xf32>,
    return
  }
  func.func @transform_0(%arg0: i32) -> (i32, i32, i32) {
    %c0_i32 = arith.constant 0 : i32
    %c0_i32_0 = arith.constant 0 : i32
    %c0_i32_1 = arith.constant 0 : i32
    return %arg0, %c0_i32, %c0_i32_0 : i32, i32, i32
  }
  func.func @transform_1(%arg0: i32) -> (i32, i32, i32) {
    %c0_i32 = arith.constant 0 : i32
    %c0_i32_0 = arith.constant 0 : i32
    %c0_i32_1 = arith.constant 0 : i32
    return %arg0, %c0_i32, %c0_i32_0 : i32, i32, i32
  }
  func.func @transform_2(%arg0: i32) -> (i32, i32, i32) {
    %c0_i32 = arith.constant 0 : i32
    %c0_i32_0 = arith.constant 0 : i32
    %c0_i32_1 = arith.constant 0 : i32
    return %arg0, %c0_i32, %c0_i32_0 : i32, i32, i32
  }
  func.func @transform_3(%arg0: i32) -> (i32, i32, i32) {
    %c0_i32 = arith.constant 0 : i32
    %c0_i32_0 = arith.constant 0 : i32
    %c0_i32_1 = arith.constant 0 : i32
    return %arg0, %c0_i32, %c0_i32_0 : i32, i32, i32
  }
}

</mosaic_0001>

<llo_original>
// kernel: detail_loss.1
$region0: #{detail_loss.1}
  #allocation0 [shape = 'u32[]', space=smem, size = 0x4, offset = 0x4, fixed_abs, tag = 'smem constant byte address 0x4 - core index']
  #allocation1 [shape = 'u32[144,128]{1,0:T(1,128)}', space=vmem, size = 0x12000, scoped, tag = 'internal scratch']
  #allocation2 [shape = 'f32[24,128]{1,0:T(8,128)}', space=vmem, size = 0x3000, scoped, tag = 'scratch operand']
  %s0 = inlined_call_operand.vmem [shape: f32[2,24,128], index: 0, kind: input, shape index: {}]
  %s1 = inlined_call_operand.vmem [shape: f32[2,24,128], index: 1, kind: input, shape index: {}]
  %s2 = inlined_call_operand.vmem [shape: f32[2,24,128], index: 2, kind: input, shape index: {}]
  %s3 = inlined_call_operand.vmem [shape: f32[2,1,128], index: 3, kind: output, shape index: {}]
  %s4 = sld [smem:[#allocation0]]
  $region52: #{detail_loss.1} parent=0
    _
  %s6 = ssub.s32 1, %s4
  %s7 = scalar_select 0, %s6, %s4
  loop: start=0, step=1, limit=4
  $region2: #{detail_loss.1} parent=0 // loop_pre_header
    _
  $region3: #{detail_loss.1} parent=0 // loop_header
    %s9 = sphi 0, %s13
    %p10 = scmp.ge.s32.totalorder %s9, 4
    %s19 = sphi 0, %s21
    %s22 = sphi 0, %s19
    %s23 = sphi 0, %s22
    %s39 = sphi 0, %s23
    %s45 = sphi 0, %s47
    %s48 = sphi 0, %s45
    %s49 = sphi 0, %s48
    %s65 = sphi 0, %s49
    %s71 = sphi 0, %s73
    %s74 = sphi 0, %s71
    %s75 = sphi 0, %s74
    %s91 = sphi 0, %s75
    %s97 = sphi 0, %s99
    %s100 = sphi 0, %s97
    %s101 = sphi 0, %s100
    %s117 = sphi 0, %s101
  $region4: #{detail_loss.1} parent=0 // loop_header_branch
    %12 = sbr.rel (%p10) target = $region8
  $region5: #{detail_loss.1} parent=0 // loop_body
    %s14 = ssub.s32 %s9, 1
    %s15 = ssub.s32 %s9, 2
    %s16 = sadd.s32 %s9, 1
    %s17 = ssub.s32 %s9, %s16
    %p18 = scmp.eq.s32.totalorder %s17, 0
    %s20 = sadd.s32 %s19, 1
    %s21 = scalar_select %p18, %s19, %s20
    %p24 = pneg %p18
    %p25 = scmp.eq.s32.totalorder %s9, 1
    %p26 = por %p24, %p25
    %p27 = scmp.ne.s32.totalorder %s19, %s22
    %p28 = scmp.eq.s32.totalorder %s9, 0
    %p29 = por %p27, %p28
    %p30 = scmp.ne.s32.totalorder %s19, %s22
    %p31 = scmp.eq.s32.totalorder %s14, 1
    %p32 = por %p30, %p31
    %p33 = scmp.ne.s32.totalorder %s22, %s23
    %p34 = scmp.eq.s32.totalorder %s14, 0
    %p35 = por %p33, %p34
    %p36 = scmp.ne.s32.totalorder %s22, %s23
    %p37 = scmp.eq.s32.totalorder %s15, 1
    %p38 = por %p36, %p37
    %p40 = scmp.ne.s32.totalorder %s23, %s39
    %p41 = scmp.eq.s32.totalorder %s15, 0
    %p42 = por %p40, %p41
    %s43 = ssub.s32 %s9, %s16
    %p44 = scmp.eq.s32.totalorder %s43, 0
    %s46 = sadd.s32 %s45, 1
    %s47 = scalar_select %p44, %s45, %s46
    %p50 = pneg %p44
    %p51 = scmp.eq.s32.totalorder %s9, 1
    %p52 = por %p50, %p51
    %p53 = scmp.ne.s32.totalorder %s45, %s48
    %p54 = scmp.eq.s32.totalorder %s9, 0
    %p55 = por %p53, %p54
    %p56 = scmp.ne.s32.totalorder %s45, %s48
    %p57 = scmp.eq.s32.totalorder %s14, 1
    %p58 = por %p56, %p57
    %p59 = scmp.ne.s32.totalorder %s48, %s49
    %p60 = scmp.eq.s32.totalorder %s14, 0
    %p61 = por %p59, %p60
    %p62 = scmp.ne.s32.totalorder %s48, %s49
    %p63 = scmp.eq.s32.totalorder %s15, 1
    %p64 = por %p62, %p63
    %p66 = scmp.ne.s32.totalorder %s49, %s65
    %p67 = scmp.eq.s32.totalorder %s15, 0
    %p68 = por %p66, %p67
    %s69 = ssub.s32 %s9, %s16
    %p70 = scmp.eq.s32.totalorder %s69, 0
    %s72 = sadd.s32 %s71, 1
    %s73 = scalar_select %p70, %s71, %s72
    %p76 = pneg %p70
    %p77 = scmp.eq.s32.totalorder %s9, 1
    %p78 = por %p76, %p77
    %p79 = scmp.ne.s32.totalorder %s71, %s74
    %p80 = scmp.eq.s32.totalorder %s9, 0
    %p81 = por %p79, %p80
    %p82 = scmp.ne.s32.totalorder %s71, %s74
    %p83 = scmp.eq.s32.totalorder %s14, 1
    %p84 = por %p82, %p83
    %p85 = scmp.ne.s32.totalorder %s74, %s75
    %p86 = scmp.eq.s32.totalorder %s14, 0
    %p87 = por %p85, %p86
    %p88 = scmp.ne.s32.totalorder %s74, %s75
    %p89 = scmp.eq.s32.totalorder %s15, 1
    %p90 = por %p88, %p89
    %p92 = scmp.ne.s32.totalorder %s75, %s91
    %p93 = scmp.eq.s32.totalorder %s15, 0
    %p94 = por %p92, %p93
    %s95 = ssub.s32 %s9, %s16
    %p96 = scmp.eq.s32.totalorder %s95, 0
    %s98 = sadd.s32 %s97, 1
    %s99 = scalar_select %p96, %s97, %s98
    %p102 = pneg %p96
    %p103 = scmp.eq.s32.totalorder %s9, 1
    %p104 = por %p102, %p103
    %p105 = scmp.ne.s32.totalorder %s97, %s100
    %p106 = scmp.eq.s32.totalorder %s9, 0
    %p107 = por %p105, %p106
    %p108 = scmp.ne.s32.totalorder %s97, %s100
    %p109 = scmp.eq.s32.totalorder %s14, 1
    %p110 = por %p108, %p109
    %p111 = scmp.ne.s32.totalorder %s100, %s101
    %p112 = scmp.eq.s32.totalorder %s14, 0
    %p113 = por %p111, %p112
    %p114 = scmp.ne.s32.totalorder %s100, %s101
    %p115 = scmp.eq.s32.totalorder %s15, 1
    %p116 = por %p114, %p115
    %p118 = scmp.ne.s32.totalorder %s101, %s117
    %p119 = scmp.eq.s32.totalorder %s15, 0
    %p120 = por %p118, %p119
    %p121 = scmp.le.s32.totalorder 1, %s9
    %p122 = scmp.lt.s32.totalorder %s9, 3
    %p123 = pnand %p121, %p122
    %p124 = pneg %p123
    // Predicated region
    $region9: #{detail_loss.1} parent=5 // pred_check
      _
    $region10: #{detail_loss.1} parent=5 // pred_check_branch
      %126 = sbr.rel (%p123) target = $region12
    $region11: #{detail_loss.1} parent=5 // pred_region
      %s127 = ssub.s32 %s9, 1
    $region12: #{detail_loss.1} parent=5 // pred_fallthru
      _
    %p128 = scmp.lt.s32.totalorder %s9, 2
    // Predicated region
    $region13: #{detail_loss.1} parent=5 // pred_check
      %p129 = pneg %p128
    $region14: #{detail_loss.1} parent=5 // pred_check_branch
      %131 = sbr.rel (%p129) target = $region16
    $region15: #{detail_loss.1} parent=5 // pred_region
      // Predicated region
      $region17: #{detail_loss.1} parent=15 // pred_check
        %p132 = pneg %p29
      $region18: #{detail_loss.1} parent=15 // pred_check_branch
        %134 = sbr.rel (%p132) target = $region20
      $region19: #{detail_loss.1} parent=15 // pred_region
        %p135 = scmp.lt.s32.totalorder %s9, 1
        %s136 = scalar_select %p135, %s9, 1
        %s137 = smul.addr %s136, 3
        %s138 = smul.addr %s137, 8
        %s139 = scalar_lea.vmem %s0, %s138
      $region20: #{detail_loss.1} parent=15 // pred_fallthru
        _
      // Predicated region
      $region21: #{detail_loss.1} parent=15 // pred_check
        %p140 = pneg %p55
      $region22: #{detail_loss.1} parent=15 // pred_check_branch
        %142 = sbr.rel (%p140) target = $region24
      $region23: #{detail_loss.1} parent=15 // pred_region
        %p143 = scmp.lt.s32.totalorder %s9, 1
        %s144 = scalar_select %p143, %s9, 1
        %s145 = smul.addr %s144, 3
        %s146 = smul.addr %s145, 8
        %s147 = scalar_lea.vmem %s1, %s146
      $region24: #{detail_loss.1} parent=15 // pred_fallthru
        _
      // Predicated region
      $region25: #{detail_loss.1} parent=15 // pred_check
        %p148 = pneg %p81
      $region26: #{detail_loss.1} parent=15 // pred_check_branch
        %150 = sbr.rel (%p148) target = $region28
      $region27: #{detail_loss.1} parent=15 // pred_region
        %p151 = scmp.lt.s32.totalorder %s9, 1
        %s152 = scalar_select %p151, %s9, 1
        %s153 = smul.addr %s152, 3
        %s154 = smul.addr %s153, 8
        %s155 = scalar_lea.vmem %s2, %s154
      $region28: #{detail_loss.1} parent=15 // pred_fallthru
        _
    $region16: #{detail_loss.1} parent=5 // pred_fallthru
      _
    %p156 = scmp.le.s32.totalorder 1, %s9
    %p157 = scmp.lt.s32.totalorder %s9, 3
    %p158 = pnand %p156, %p157
    %p159 = pneg %p158
    // Predicated region
    $region29: #{detail_loss.1} parent=5 // pred_check
      _
    $region30: #{detail_loss.1} parent=5 // pred_check_branch
      %161 = sbr.rel (%p158) target = $region32
    $region31: #{detail_loss.1} parent=5 // pred_region
      %s162 = ssub.s32 %s9, 1
      %p163 = scmp.lt.s32.totalorder %s14, 1
      %s164 = scalar_select %p163, %s14, 1
      %s165 = smul.addr %s164, 3
      %s166 = smul.addr %s165, 8
      %s167 = scalar_lea.vmem %s0, %s166
      %p168 = pneg %p35
      %p169 = pneg %p32
      %p170 = scmp.lt.s32.totalorder %s14, 1
      %s171 = scalar_select %p170, %s14, 1
      %s172 = smul.addr %s171, 3
      %s173 = smul.addr %s172, 8
      %s174 = scalar_lea.vmem %s1, %s173
      %p175 = pneg %p61
      %p176 = pneg %p58
      %p177 = scmp.lt.s32.totalorder %s14, 1
      %s178 = scalar_select %p177, %s14, 1
      %s179 = smul.addr %s178, 3
      %s180 = smul.addr %s179, 8
      %s181 = scalar_lea.vmem %s2, %s180
      %p182 = pneg %p87
      %p183 = pneg %p84
      %p184 = pneg %p113
      %p185 = pneg %p110
      %p186 = scmp.lt.s32.totalorder %s14, 1
      %s187 = scalar_select %p186, %s14, 1
      %s188 = scalar_lea.vmem %s3, %s187
      %p189 = scmp.lt.s32.totalorder %s14, 1
      %s190 = scalar_select %p189, %s14, 1
      %s191 = smul.addr %s190, 3
      %s192 = smul.addr %s191, 8
      %s193 = scalar_lea.vmem %s0, %s192
      %p194 = scmp.lt.s32.totalorder %s14, 1
      %s195 = scalar_select %p194, %s14, 1
      %s196 = smul.addr %s195, 3
      %s197 = smul.addr %s196, 8
      %s198 = scalar_lea.vmem %s1, %s197
      %p199 = scmp.lt.s32.totalorder %s14, 1
      %s200 = scalar_select %p199, %s14, 1
      %s201 = smul.addr %s200, 3
      %s202 = smul.addr %s201, 8
      %s203 = scalar_lea.vmem %s2, %s202
      %p204 = scmp.lt.s32.totalorder %s14, 1
      %s205 = scalar_select %p204, %s14, 1
      %s206 = scalar_lea.vmem %s3, %s205
      %v207 = vlaneseq
      %v208 = vshrl.u32 %v207, 7
      %v209 = vadd.s32 %v208, 8
      %v210 = vadd.s32 %v208, 16
      %v211 = vlaneseq
      %v212 = vand.u32 %v211, 127
      %vm213 = vcmp.ge.s32.totalorder %v208, 2
      %vm214 = vcmp.ge.s32.totalorder %v209, 2
      %vm215 = vcmp.ge.s32.totalorder %v210, 2
      %vm216 = vcmp.lt.s32.totalorder %v208, 18
      %vm217 = vcmp.lt.s32.totalorder %v209, 18
      %vm218 = vcmp.lt.s32.totalorder %v210, 18
      %vm219 = vmand %vm213, %vm216
      %vm220 = vmand %vm214, %vm217
      %vm221 = vmand %vm215, %vm218
      %vm222 = vcmp.ge.s32.totalorder %v212, 2
      %vm223 = vmand %vm219, %vm222
      %vm224 = vmand %vm220, %vm222
      %vm225 = vmand %vm221, %vm222
      %vm226 = vcmp.lt.s32.totalorder %v212, 18
      %vm227 = vmand %vm223, %vm226
      %vm228 = vmand %vm224, %vm226
      %vm229 = vmand %vm225, %vm226
      %v230 = vld [vmem:[%s193] sm:$0xff]
      %v231 = vld [vmem:[%s193 + $0x8] sm:$0xff]
      %v232 = vld [vmem:[%s193 + $0x10] sm:$0xff]
      %233 = vrot.lane.b32.xlu0 %v230, 127
      %v234 = vpop.permute.xlu0 %233
      %235 = vrot.lane.b32.xlu0 %v231, 127
      %v236 = vpop.permute.xlu0 %235
      %237 = vrot.lane.b32.xlu0 %v232, 127
      %v238 = vpop.permute.xlu0 %237
      %v239 = vadd.f32 %v230, %v234
      %v240 = vadd.f32 %v231, %v236
      %v241 = vadd.f32 %v232, %v238
      %242 = vrot.lane.b32.xlu0 %v239, 126
      %v243 = vpop.permute.xlu0 %242
      %244 = vrot.lane.b32.xlu0 %v240, 126
      %v245 = vpop.permute.xlu0 %244
      %246 = vrot.lane.b32.xlu0 %v241, 126
      %v247 = vpop.permute.xlu0 %246
      %v248 = vadd.f32 %v239, %v243
      %v249 = vadd.f32 %v240, %v245
      %v250 = vadd.f32 %v241, %v247
      %251 = vrot.lane.b32.xlu0 %v248, 127
      %v252 = vpop.permute.xlu0 %251
      %253 = vrot.lane.b32.xlu0 %v249, 127
      %v254 = vpop.permute.xlu0 %253
      %255 = vrot.lane.b32.xlu0 %v250, 127
      %v256 = vpop.permute.xlu0 %255
      %v257 = vadd.f32 %v230, %v252
      %v258 = vadd.f32 %v231, %v254
      %v259 = vadd.f32 %v232, %v256
      %260 = vrot.lane.b32.xlu0 %v257, 2
      %v261 = vpop.permute.xlu0 %260
      %262 = vrot.lane.b32.xlu0 %v258, 2
      %v263 = vpop.permute.xlu0 %262
      %264 = vrot.lane.b32.xlu0 %v259, 2
      %v265 = vpop.permute.xlu0 %264
      %v266 = vrot.slane %v261, 1
      %v267 = vrot.slane %v263, 1
      %v268 = vrot.slane %v265, 1
      %vm269 = vcmp.lt.s32.totalorder %v208, 7
      %v270 = vsel %vm269, %v267, %v268
      %v271 = vsel %vm269, %v266, %v267
      %v272 = vsel %vm269, %v268, %v266
      %v273 = vadd.f32 %v261, %v271
      %v274 = vadd.f32 %v263, %v270
      %v275 = vadd.f32 %v265, %v272
      %v276 = vrot.slane %v273, 2
      %v277 = vrot.slane %v274, 2
      %v278 = vrot.slane %v275, 2
      %vm279 = vcmp.lt.s32.totalorder %v208, 6
      %v280 = vsel %vm279, %v277, %v278
      %v281 = vsel %vm279, %v276, %v277
      %v282 = vsel %vm279, %v278, %v276
      %v283 = vadd.f32 %v273, %v281
      %v284 = vadd.f32 %v274, %v280
      %v285 = vadd.f32 %v275, %v282
      %v286 = vrot.slane %v283, 1
      %v287 = vrot.slane %v284, 1
      %v288 = vrot.slane %v285, 1
      %v289 = vsel %vm269, %v287, %v288
      %v290 = vsel %vm269, %v286, %v287
      %v291 = vsel %vm269, %v288, %v286
      %v292 = vadd.f32 %v261, %v290
      %v293 = vadd.f32 %v263, %v289
      %v294 = vadd.f32 %v265, %v291
      %v295 = vrot.slane %v292, 6
      %v296 = vrot.slane %v293, 6
      %v297 = vrot.slane %v294, 6
      %vm298 = vcmp.lt.s32.totalorder %v208, 2
      %v299 = vsel %vm298, %v296, %v297
      %v300 = vsel %vm298, %v295, %v296
      %v301 = vsel %vm298, %v297, %v295
      %vm302 = vcmp.gt.f32.partialorder %v301, 0.0
      %vm303 = vcmp.gt.f32.partialorder %v300, 0.0
      %vm304 = vcmp.gt.f32.partialorder %v299, 0.0
      %vm305 = vmand %vm302, %vm227
      %vm306 = vmand %vm303, %vm228
      %vm307 = vmand %vm304, %vm229
      %v308 = vsel %vm305, 1.0, 0.0
      %v309 = vsel %vm306, 1.0, 0.0
      %v310 = vsel %vm307, 1.0, 0.0
      %311 = vst [vmem:[#allocation2] sm:$0xff] %v308
      %312 = vst [vmem:[#allocation2 + $0x8] sm:$0xff] %v309
      %313 = vst [vmem:[#allocation2 + $0x10] sm:$0xff] %v310
      loop: start=0, step=1, limit=3
      $region33: #{detail_loss.1} parent=31 // loop_pre_header
        _
      $region34: #{detail_loss.1} parent=31 // loop_header
        %s315 = sphi 0, %s319
        %p316 = scmp.ge.s32.totalorder %s315, 3
        %v320 = vphi 0.0, %v597
        %v321 = vphi 0.0, %v598
        %v322 = vphi 0.0, %v599
        %v323 = vphi 0.0, %v600
        %v324 = vphi 0.0, %v601
        %v325 = vphi 0.0, %v602
        %v326 = vphi 0.0, %v603
        %v327 = vphi 0.0, %v604
        %v328 = vphi 0.0, %v605
        %v329 = vphi 0.0, %v606
        %v330 = vphi 0.0, %v607
        %v331 = vphi 0.0, %v608
        %v332 = vphi 0.0, %v609
        %v333 = vphi 0.0, %v610
        %v334 = vphi 0.0, %v611
        %v335 = vphi 0.0, %v612
      $region35: #{detail_loss.1} parent=31 // loop_header_branch
        %318 = sbr.rel (%p316) target = $region39
      $region36: #{detail_loss.1} parent=31 // loop_body
        %s336 = smul.u32 %s315, 8
        %s337 = scalar_lea.vmem [#allocation2], %s336
        %v338 = vld [vmem:[%s337] sm:$0xff]
        %s339 = scalar_lea.vmem %s203, %s336
        %v340 = vld [vmem:[%s339] sm:$0xff]
        %v341 = vmul.f32 %v340, %v338
        %v342 = vmul.f32 %v341, 255.0
        %vm343 = vcmp.gt.f32.partialorder %v338, 0.0
        %vm344 = vcmp.ge.f32.partialorder %v342, 0.0
        %vm345 = vmand %vm343, %vm344
        %vm346 = vcmp.le.f32.partialorder %v342, 255.0
        %vm347 = vmand %vm345, %vm346
        %v348 = vmul.f32 %v342, 1.0039216
        %v349 = vfloor.f32 %v348
        %v350 = vmax.f32 %v349, 0.0
        %v351 = vmin.f32 %v350, 255.0
        %v352 = vcvt.f32.s32.to.zero.pseudo %v351
        %v353 = vsel %vm347, %v352, 256
        %v354 = vshra.s32 %v353, 4
        %v355 = vand.u32 %v353, 15
        %vm356 = vcmp.eq.s32.totalorder %v354, 0
        %v357 = vsel %vm356, 1, 0
        %v358 = vcvt.s32.f32 %v357
        %vm359 = vcmp.eq.s32.totalorder %v354, 1
        %v360 = vsel %vm359, 1, 0
        %v361 = vcvt.s32.f32 %v360
        %vm362 = vcmp.eq.s32.totalorder %v354, 2
        %v363 = vsel %vm362, 1, 0
        %v364 = vcvt.s32.f32 %v363
        %vm365 = vcmp.eq.s32.totalorder %v354, 3
        %v366 = vsel %vm365, 1, 0
        %v367 = vcvt.s32.f32 %v366
        %vm368 = vcmp.eq.s32.totalorder %v354, 4
        %v369 = vsel %vm368, 1, 0
        %v370 = vcvt.s32.f32 %v369
        %vm371 = vcmp.eq.s32.totalorder %v354, 5
        %v372 = vsel %vm371, 1, 0
        %v373 = vcvt.s32.f32 %v372
        %vm374 = vcmp.eq.s32.totalorder %v354, 6
        %v375 = vsel %vm374, 1, 0
        %v376 = vcvt.s32.f32 %v375
        %vm377 = vcmp.eq.s32.totalorder %v354, 7
        %v378 = vsel %vm377, 1, 0
        %v379 = vcvt.s32.f32 %v378
        %vm380 = vcmp.eq.s32.totalorder %v354, 8
        %v381 = vsel %vm380, 1, 0
        %v382 = vcvt.s32.f32 %v381
        %vm383 = vcmp.eq.s32.totalorder %v354, 9
        %v384 = vsel %vm383, 1, 0
        %v385 = vcvt.s32.f32 %v384
        %vm386 = vcmp.eq.s32.totalorder %v354, 10
        %v387 = vsel %vm386, 1, 0
        %v388 = vcvt.s32.f32 %v387
        %vm389 = vcmp.eq.s32.totalorder %v354, 11
        %v390 = vsel %vm389, 1, 0
        %v391 = vcvt.s32.f32 %v390
        %vm392 = vcmp.eq.s32.totalorder %v354, 12
        %v393 = vsel %vm392, 1, 0
        %v394 = vcvt.s32.f32 %v393
        %vm395 = vcmp.eq.s32.totalorder %v354, 13
        %v396 = vsel %vm395, 1, 0
        %v397 = vcvt.s32.f32 %v396
        %vm398 = vcmp.eq.s32.totalorder %v354, 14
        %v399 = vsel %vm398, 1, 0
        %v400 = vcvt.s32.f32 %v399
        %vm401 = vcmp.eq.s32.totalorder %v354, 15
        %v402 = vsel %vm401, 1, 0
        %v403 = vcvt.s32.f32 %v402
        %vm404 = vcmp.eq.s32.totalorder %v355, 0
        %v405 = vsel %vm404, 1, 0
        %v406 = vcvt.s32.f32 %v405
        %vm407 = vcmp.eq.s32.totalorder %v355, 1
        %v408 = vsel %vm407, 1, 0
        %v409 = vcvt.s32.f32 %v408
        %vm410 = vcmp.eq.s32.totalorder %v355, 2
        %v411 = vsel %vm410, 1, 0
        %v412 = vcvt.s32.f32 %v411
        %vm413 = vcmp.eq.s32.totalorder %v355, 3
        %v414 = vsel %vm413, 1, 0
        %v415 = vcvt.s32.f32 %v414
        %vm416 = vcmp.eq.s32.totalorder %v355, 4
        %v417 = vsel %vm416, 1, 0
        %v418 = vcvt.s32.f32 %v417
        %vm419 = vcmp.eq.s32.totalorder %v355, 5
        %v420 = vsel %vm419, 1, 0
        %v421 = vcvt.s32.f32 %v420
        %vm422 = vcmp.eq.s32.totalorder %v355, 6
        %v423 = vsel %vm422, 1, 0
        %v424 = vcvt.s32.f32 %v423
        %vm425 = vcmp.eq.s32.totalorder %v355, 7
        %v426 = vsel %vm425, 1, 0
        %v427 = vcvt.s32.f32 %v426
        %vm428 = vcmp.eq.s32.totalorder %v355, 8
        %v429 = vsel %vm428, 1, 0
        %v430 = vcvt.s32.f32 %v429
        %vm431 = vcmp.eq.s32.totalorder %v355, 9
        %v432 = vsel %vm431, 1, 0
        %v433 = vcvt.s32.f32 %v432
        %vm434 = vcmp.eq.s32.totalorder %v355, 10
        %v435 = vsel %vm434, 1, 0
        %v436 = vcvt.s32.f32 %v435
        %vm437 = vcmp.eq.s32.totalorder %v355, 11
        %v438 = vsel %vm437, 1, 0
        %v439 = vcvt.s32.f32 %v438
        %vm440 = vcmp.eq.s32.totalorder %v355, 12
        %v441 = vsel %vm440, 1, 0
        %v442 = vcvt.s32.f32 %v441
        %vm443 = vcmp.eq.s32.totalorder %v355, 13
        %v444 = vsel %vm443, 1, 0
        %v445 = vcvt.s32.f32 %v444
        %vm446 = vcmp.eq.s32.totalorder %v355, 14
        %v447 = vsel %vm446, 1, 0
        %v448 = vcvt.s32.f32 %v447
        %vm449 = vcmp.eq.s32.totalorder %v355, 15
        %v450 = vsel %vm449, 1, 0
        %v451 = vcvt.s32.f32 %v450
        %452 = vmatprep.subr.mxu0 0.0
        %453 = vmatpush1.xpose.msra.mxu0 %v406
        %454 = vmatprep.subr.mxu0 0.0
        %455 = vmatpush1.xpose.msra.mxu0 %v409
        %456 = vmatprep.subr.mxu0 0.0
        %457 = vmatpush1.xpose.msra.mxu0 %v412
        %458 = vmatprep.subr.mxu0 0.0
        %459 = vmatpush1.xpose.msra.mxu0 %v415
        %460 = vmatprep.subr.mxu0 0.0
        %461 = vmatpush1.xpose.msra.mxu0 %v418
        %462 = vmatprep.subr.mxu0 0.0
        %463 = vmatpush1.xpose.msra.mxu0 %v421
        %464 = vmatprep.subr.mxu0 0.0
        %465 = vmatpush1.xpose.msra.mxu0 %v424
        %466 = vmatprep.subr.mxu0 0.0
        %467 = vmatpush1.xpose.msra.mxu0 %v427
        %468 = vmatprep.subr.mxu0 0.0
        %469 = vmatpush1.xpose.msra.mxu0 %v430
        %470 = vmatprep.subr.mxu0 0.0
        %471 = vmatpush1.xpose.msra.mxu0 %v433
        %472 = vmatprep.subr.mxu0 0.0
        %473 = vmatpush1.xpose.msra.mxu0 %v436
        %474 = vmatprep.subr.mxu0 0.0
        %475 = vmatpush1.xpose.msra.mxu0 %v439
        %476 = vmatprep.subr.mxu0 0.0
        %477 = vmatpush1.xpose.msra.mxu0 %v442
        %478 = vmatprep.subr.mxu0 0.0
        %479 = vmatpush1.xpose.msra.mxu0 %v445
        %480 = vmatprep.subr.mxu0 0.0
        %481 = vmatpush1.xpose.msra.mxu0 %v448
        %482 = vmatprep.subr.mxu0 0.0
        %483 = vmatpush1.xpose.msra.mxu0 %v451
        %484 = vmatprep.subr.mxu0 0.0
        %485 = vmatpush1.xpose.msra.mxu0 0.0
        %486 = vmatprep.subr.mxu0 0.0
        %487 = vmatpush1.xpose.msra.mxu0 0.0
        %488 = vmatprep.subr.mxu0 0.0
        %489 = vmatpush1.xpose.msra.mxu0 0.0
        %490 = vmatprep.subr.mxu0 0.0
        %491 = vmatpush1.xpose.msra.mxu0 0.0
        %492 = vmatprep.subr.mxu0 0.0
        %493 = vmatpush1.xpose.msra.mxu0 0.0
        %494 = vmatprep.subr.mxu0 0.0
        %495 = vmatpush1.xpose.msra.mxu0 0.0
        %496 = vmatprep.subr.mxu0 0.0
        %497 = vmatpush1.xpose.msra.mxu0 0.0
        %498 = vmatprep.subr.mxu0 0.0
        %499 = vmatpush1.xpose.msra.mxu0 0.0
        %500 = vmatprep.subr.mxu0 0.0
        %501 = vmatpush1.xpose.msra.mxu0 0.0
        %502 = vmatprep.subr.mxu0 0.0
        %503 = vmatpush1.xpose.msra.mxu0 0.0
        %504 = vmatprep.subr.mxu0 0.0
        %505 = vmatpush1.xpose.msra.mxu0 0.0
        %506 = vmatprep.subr.mxu0 0.0
        %507 = vmatpush1.xpose.msra.mxu0 0.0
        %508 = vmatprep.subr.mxu0 0.0
        %509 = vmatpush1.xpose.msra.mxu0 0.0
        %510 = vmatprep.subr.mxu0 0.0
        %511 = vmatpush1.xpose.msra.mxu0 0.0
        %512 = vmatprep.subr.mxu0 0.0
        %513 = vmatpush1.xpose.msra.mxu0 0.0
        %514 = vmatprep.subr.mxu0 0.0
        %515 = vmatpush1.xpose.msra.mxu0 0.0
        %516 = vmatprep.mubr.f32.mxu0 0.0
        %517 = vmatmul.mubr.f32.gmra.mrb[0].mxu0 %v358
        %v518 = vpop.f32.mrb[0].mxu0
        %v519 = vadd.f32 0.0, %v518
        %v520 = vpop.f32.mrb[0].mxu0
        %521 = vmatprep.mubr.f32.mxu0 0.0
        %522 = vmatmul.mubr.f32.gmra.mrb[0].mxu0 %v361
        %v523 = vpop.f32.mrb[0].mxu0
        %v524 = vadd.f32 0.0, %v523
        %v525 = vpop.f32.mrb[0].mxu0
        %526 = vmatprep.mubr.f32.mxu0 0.0
        %527 = vmatmul.mubr.f32.gmra.mrb[0].mxu0 %v364
        %v528 = vpop.f32.mrb[0].mxu0
        %v529 = vadd.f32 0.0, %v528
        %v530 = vpop.f32.mrb[0].mxu0
        %531 = vmatprep.mubr.f32.mxu0 0.0
        %532 = vmatmul.mubr.f32.gmra.mrb[0].mxu0 %v367
        %v533 = vpop.f32.mrb[0].mxu0
        %v534 = vadd.f32 0.0, %v533
        %v535 = vpop.f32.mrb[0].mxu0
        %536 = vmatprep.mubr.f32.mxu0 0.0
        %537 = vmatmul.mubr.f32.gmra.mrb[0].mxu0 %v370
        %v538 = vpop.f32.mrb[0].mxu0
        %v539 = vadd.f32 0.0, %v538
        %v540 = vpop.f32.mrb[0].mxu0
        %541 = vmatprep.mubr.f32.mxu0 0.0
        %542 = vmatmul.mubr.f32.gmra.mrb[0].mxu0 %v373
        %v543 = vpop.f32.mrb[0].mxu0
        %v544 = vadd.f32 0.0, %v543
        %v545 = vpop.f32.mrb[0].mxu0
        %546 = vmatprep.mubr.f32.mxu0 0.0
        %547 = vmatmul.mubr.f32.gmra.mrb[0].mxu0 %v376
        %v548 = vpop.f32.mrb[0].mxu0
        %v549 = vadd.f32 0.0, %v548
        %v550 = vpop.f32.mrb[0].mxu0
        %551 = vmatprep.mubr.f32.mxu0 0.0
        %552 = vmatmul.mubr.f32.gmra.mrb[0].mxu0 %v379
        %v553 = vpop.f32.mrb[0].mxu0
        %v554 = vadd.f32 0.0, %v553
        %v555 = vpop.f32.mrb[0].mxu0
        %556 = vmatprep.mubr.f32.mxu0 0.0
        %557 = vmatmul.mubr.f32.gmra.mrb[0].mxu0 %v382
        %v558 = vpop.f32.mrb[0].mxu0
        %v559 = vadd.f32 0.0, %v558
        %v560 = vpop.f32.mrb[0].mxu0
        %561 = vmatprep.mubr.f32.mxu0 0.0
        %562 = vmatmul.mubr.f32.gmra.mrb[0].mxu0 %v385
        %v563 = vpop.f32.mrb[0].mxu0
        %v564 = vadd.f32 0.0, %v563
        %v565 = vpop.f32.mrb[0].mxu0
        %566 = vmatprep.mubr.f32.mxu0 0.0
        %567 = vmatmul.mubr.f32.gmra.mrb[0].mxu0 %v388
        %v568 = vpop.f32.mrb[0].mxu0
        %v569 = vadd.f32 0.0, %v568
        %v570 = vpop.f32.mrb[0].mxu0
        %571 = vmatprep.mubr.f32.mxu0 0.0
        %572 = vmatmul.mubr.f32.gmra.mrb[0].mxu0 %v391
        %v573 = vpop.f32.mrb[0].mxu0
        %v574 = vadd.f32 0.0, %v573
        %v575 = vpop.f32.mrb[0].mxu0
        %576 = vmatprep.mubr.f32.mxu0 0.0
        %577 = vmatmul.mubr.f32.gmra.mrb[0].mxu0 %v394
        %v578 = vpop.f32.mrb[0].mxu0
        %v579 = vadd.f32 0.0, %v578
        %v580 = vpop.f32.mrb[0].mxu0
        %581 = vmatprep.mubr.f32.mxu0 0.0
        %582 = vmatmul.mubr.f32.gmra.mrb[0].mxu0 %v397
        %v583 = vpop.f32.mrb[0].mxu0
        %v584 = vadd.f32 0.0, %v583
        %v585 = vpop.f32.mrb[0].mxu0
        %586 = vmatprep.mubr.f32.mxu0 0.0
        %587 = vmatmul.mubr.f32.gmra.mrb[0].mxu0 %v400
        %v588 = vpop.f32.mrb[0].mxu0
        %v589 = vadd.f32 0.0, %v588
        %v590 = vpop.f32.mrb[0].mxu0
        %591 = vmatprep.mubr.f32.mxu0 0.0
        %592 = vmatmul.mubr.f32.gmra.mrb[0].mxu0 %v403
        %v593 = vpop.f32.mrb[0].mxu0
        %v594 = vadd.f32 0.0, %v593
        %v595 = vpop.f32.mrb[0].mxu0
        %596 = vdwg.mxu0
        %v597 = vadd.f32 %v320, %v519
        %v598 = vadd.f32 %v321, %v524
        %v599 = vadd.f32 %v322, %v529
        %v600 = vadd.f32 %v323, %v534
        %v601 = vadd.f32 %v324, %v539
        %v602 = vadd.f32 %v325, %v544
        %v603 = vadd.f32 %v326, %v549
        %v604 = vadd.f32 %v327, %v554
        %v605 = vadd.f32 %v328, %v559
        %v606 = vadd.f32 %v329, %v564
        %v607 = vadd.f32 %v330, %v569
        %v608 = vadd.f32 %v331, %v574
        %v609 = vadd.f32 %v332, %v579
        %v610 = vadd.f32 %v333, %v584
        %v611 = vadd.f32 %v334, %v589
        %v612 = vadd.f32 %v335, %v594
      $region37: #{detail_loss.1} parent=31 // loop_footer
        %s319 = sadd.s32 1, %s315
      $region38: #{detail_loss.1} parent=31 // loop_footer_branch
        %314 = sbr.rel target = $region34
      $region39: #{detail_loss.1} parent=31 // loop_exit
        _
      %v613 = vadd.s32 %v208, 24
      %v614 = vadd.s32 %v208, 32
      %v615 = vadd.s32 %v208, 40
      %v616 = vadd.s32 %v208, 48
      %v617 = vadd.s32 %v208, 56
      %v618 = vadd.s32 %v208, 64
      %v619 = vadd.s32 %v208, 72
      %v620 = vadd.s32 %v208, 80
      %v621 = vadd.s32 %v208, 88
      %v622 = vadd.s32 %v208, 96
      %v623 = vadd.s32 %v208, 104
      %v624 = vadd.s32 %v208, 112
      %v625 = vadd.s32 %v208, 120
      %v626 = vand.u32 %v208, 7
      %v627 = vand.u32 %v209, 7
      %v628 = vand.u32 %v210, 7
      %v629 = vand.u32 %v613, 7
      %v630 = vand.u32 %v614, 7
      %v631 = vand.u32 %v615, 7
      %v632 = vand.u32 %v616, 7
      %v633 = vand.u32 %v617, 7
      %v634 = vand.u32 %v618, 7
      %v635 = vand.u32 %v619, 7
      %v636 = vand.u32 %v620, 7
      %v637 = vand.u32 %v621, 7
      %v638 = vand.u32 %v622, 7
      %v639 = vand.u32 %v623, 7
      %v640 = vand.u32 %v624, 7
      %v641 = vand.u32 %v625, 7
      %v642 = vand.u32 %v212, 7
      %vm643 = vcmp.eq.s32.totalorder %v626, %v642
      %vm644 = vcmp.eq.s32.totalorder %v627, %v642
      %vm645 = vcmp.eq.s32.totalorder %v628, %v642
      %vm646 = vcmp.eq.s32.totalorder %v629, %v642
      %vm647 = vcmp.eq.s32.totalorder %v630, %v642
      %vm648 = vcmp.eq.s32.totalorder %v631, %v642
      %vm649 = vcmp.eq.s32.totalorder %v632, %v642
      %vm650 = vcmp.eq.s32.totalorder %v633, %v642
      %vm651 = vcmp.eq.s32.totalorder %v634, %v642
      %vm652 = vcmp.eq.s32.totalorder %v635, %v642
      %vm653 = vcmp.eq.s32.totalorder %v636, %v642
      %vm654 = vcmp.eq.s32.totalorder %v637, %v642
      %vm655 = vcmp.eq.s32.totalorder %v638, %v642
      %vm656 = vcmp.eq.s32.totalorder %v639, %v642
      %vm657 = vcmp.eq.s32.totalorder %v640, %v642
      %vm658 = vcmp.eq.s32.totalorder %v641, %v642
      %v659 = vsel %vm643, 1.0, 0.0
      %v660 = vsel %vm644, 1.0, 0.0
      %v661 = vsel %vm645, 1.0, 0.0
      %v662 = vsel %vm646, 1.0, 0.0
      %v663 = vsel %vm647, 1.0, 0.0
      %v664 = vsel %vm648, 1.0, 0.0
      %v665 = vsel %vm649, 1.0, 0.0
      %v666 = vsel %vm650, 1.0, 0.0
      %v667 = vsel %vm651, 1.0, 0.0
      %v668 = vsel %vm652, 1.0, 0.0
      %v669 = vsel %vm653, 1.0, 0.0
      %v670 = vsel %vm654, 1.0, 0.0
      %v671 = vsel %vm655, 1.0, 0.0
      %v672 = vsel %vm656, 1.0, 0.0
      %v673 = vsel %vm657, 1.0, 0.0
      %v674 = vsel %vm658, 1.0, 0.0
      %v675 = vshra.s32 %v212, 3
      %vm676 = vcmp.eq.s32.totalorder %v675, %v208
      %vm677 = vcmp.eq.s32.totalorder %v675, %v209
      %v678 = vsel %vm676, 1.0, 0.0
      %v679 = vsel %vm677, 1.0, 0.0
      %v680 = vshra.s32 %v208, 3
      %v681 = vshra.s32 %v209, 3
      %v682 = vshra.s32 %v210, 3
      %v683 = vshra.s32 %v613, 3
      %v684 = vshra.s32 %v614, 3
      %v685 = vshra.s32 %v615, 3
      %v686 = vshra.s32 %v616, 3
      %v687 = vshra.s32 %v617, 3
      %v688 = vshra.s32 %v618, 3
      %v689 = vshra.s32 %v619, 3
      %v690 = vshra.s32 %v620, 3
      %v691 = vshra.s32 %v621, 3
      %v692 = vshra.s32 %v622, 3
      %v693 = vshra.s32 %v623, 3
      %v694 = vshra.s32 %v624, 3
      %v695 = vshra.s32 %v625, 3
      %vm696 = vcmp.eq.s32.totalorder %v680, %v212
      %vm697 = vcmp.eq.s32.totalorder %v681, %v212
      %vm698 = vcmp.eq.s32.totalorder %v682, %v212
      %vm699 = vcmp.eq.s32.totalorder %v683, %v212
      %vm700 = vcmp.eq.s32.totalorder %v684, %v212
      %vm701 = vcmp.eq.s32.totalorder %v685, %v212
      %vm702 = vcmp.eq.s32.totalorder %v686, %v212
      %vm703 = vcmp.eq.s32.totalorder %v687, %v212
      %vm704 = vcmp.eq.s32.totalorder %v688, %v212
      %vm705 = vcmp.eq.s32.totalorder %v689, %v212
      %vm706 = vcmp.eq.s32.totalorder %v690, %v212
      %vm707 = vcmp.eq.s32.totalorder %v691, %v212
      %vm708 = vcmp.eq.s32.totalorder %v692, %v212
      %vm709 = vcmp.eq.s32.totalorder %v693, %v212
      %vm710 = vcmp.eq.s32.totalorder %v694, %v212
      %vm711 = vcmp.eq.s32.totalorder %v695, %v212
      %v712 = vsel %vm696, 1.0, 0.0
      %v713 = vsel %vm697, 1.0, 0.0
      %v714 = vsel %vm698, 1.0, 0.0
      %v715 = vsel %vm699, 1.0, 0.0
      %v716 = vsel %vm700, 1.0, 0.0
      %v717 = vsel %vm701, 1.0, 0.0
      %v718 = vsel %vm702, 1.0, 0.0
      %v719 = vsel %vm703, 1.0, 0.0
      %v720 = vsel %vm704, 1.0, 0.0
      %v721 = vsel %vm705, 1.0, 0.0
      %v722 = vsel %vm706, 1.0, 0.0
      %v723 = vsel %vm707, 1.0, 0.0
      %v724 = vsel %vm708, 1.0, 0.0
      %v725 = vsel %vm709, 1.0, 0.0
      %v726 = vsel %vm710, 1.0, 0.0
      %v727 = vsel %vm711, 1.0, 0.0
      %v728 = vmul.f32 %v320, %v659
      %v729 = vmul.f32 %v321, %v660
      %v730 = vmul.f32 %v322, %v661
      %v731 = vmul.f32 %v323, %v662
      %v732 = vmul.f32 %v324, %v663
      %v733 = vmul.f32 %v325, %v664
      %v734 = vmul.f32 %v326, %v665
      %v735 = vmul.f32 %v327, %v666
      %v736 = vmul.f32 %v328, %v667
      %v737 = vmul.f32 %v329, %v668
      %v738 = vmul.f32 %v330, %v669
      %v739 = vmul.f32 %v331, %v670
      %v740 = vmul.f32 %v332, %v671
      %v741 = vmul.f32 %v333, %v672
      %v742 = vmul.f32 %v334, %v673
      %v743 = vmul.f32 %v335, %v674
      %744 = vmatprep.subr.mxu0 0.0
      %745 = vmatpush1.msra.mxu0 %v728
      %746 = vmatprep.subr.mxu0 0.0
      %747 = vmatpush1.msra.mxu0 %v729
      %748 = vmatprep.subr.mxu0 0.0
      %749 = vmatpush1.msra.mxu0 %v730
      %750 = vmatprep.subr.mxu0 0.0
      %751 = vmatpush1.msra.mxu0 %v731
      %752 = vmatprep.subr.mxu0 0.0
      %753 = vmatpush1.msra.mxu0 %v732
      %754 = vmatprep.subr.mxu0 0.0
      %755 = vmatpush1.msra.mxu0 %v733
      %756 = vmatprep.subr.mxu0 0.0
      %757 = vmatpush1.msra.mxu0 %v734
      %758 = vmatprep.subr.mxu0 0.0
      %759 = vmatpush1.msra.mxu0 %v735
      %760 = vmatprep.subr.mxu0 0.0
      %761 = vmatpush1.msra.mxu0 %v736
      %762 = vmatprep.subr.mxu0 0.0
      %763 = vmatpush1.msra.mxu0 %v737
      %764 = vmatprep.subr.mxu0 0.0
      %765 = vmatpush1.msra.mxu0 %v738
      %766 = vmatprep.subr.mxu0 0.0
      %767 = vmatpush1.msra.mxu0 %v739
      %768 = vmatprep.subr.mxu0 0.0
      %769 = vmatpush1.msra.mxu0 %v740
      %770 = vmatprep.subr.mxu0 0.0
      %771 = vmatpush1.msra.mxu0 %v741
      %772 = vmatprep.subr.mxu0 0.0
      %773 = vmatpush1.msra.mxu0 %v742
      %774 = vmatprep.subr.mxu0 0.0
      %775 = vmatpush1.msra.mxu0 %v743
      %776 = vmatprep.subr.mxu0 0.0
      %777 = vmatpush1.msra.mxu0 0.0
      %778 = vmatprep.subr.mxu0 0.0
      %779 = vmatpush1.msra.mxu0 0.0
      %780 = vmatprep.subr.mxu0 0.0
      %781 = vmatpush1.msra.mxu0 0.0
      %782 = vmatprep.subr.mxu0 0.0
      %783 = vmatpush1.msra.mxu0 0.0
      %784 = vmatprep.subr.mxu0 0.0
      %785 = vmatpush1.msra.mxu0 0.0
      %786 = vmatprep.subr.mxu0 0.0
      %787 = vmatpush1.msra.mxu0 0.0
      %788 = vmatprep.subr.mxu0 0.0
      %789 = vmatpush1.msra.mxu0 0.0
      %790 = vmatprep.subr.mxu0 0.0
      %791 = vmatpush1.msra.mxu0 0.0
      %792 = vmatprep.subr.mxu0 0.0
      %793 = vmatpush1.msra.mxu0 0.0
      %794 = vmatprep.subr.mxu0 0.0
      %795 = vmatpush1.msra.mxu0 0.0
      %796 = vmatprep.subr.mxu0 0.0
      %797 = vmatpush1.msra.mxu0 0.0
      %798 = vmatprep.subr.mxu0 0.0
      %799 = vmatpush1.msra.mxu0 0.0
      %800 = vmatprep.subr.mxu0 0.0
      %801 = vmatpush1.msra.mxu0 0.0
      %802 = vmatprep.subr.mxu0 0.0
      %803 = vmatpush1.msra.mxu0 0.0
      %804 = vmatprep.subr.mxu0 0.0
      %805 = vmatpush1.msra.mxu0 0.0
      %806 = vmatprep.subr.mxu0 0.0
      %807 = vmatpush1.msra.mxu0 0.0
      %808 = vmatprep.mubr.f32.mxu0 0.0
      %809 = vmatmul.mubr.f32.gmra.mrb[0].mxu0 %v678
      %v810 = vpop.f32.mrb[0].mxu0
      %v811 = vadd.f32 0.0, %v810
      %v812 = vpop.f32.mrb[0].mxu0
      %813 = vmatprep.mubr.f32.mxu0 0.0
      %814 = vmatmul.mubr.f32.gmra.mrb[0].mxu0 %v679
      %v815 = vpop.f32.mrb[0].mxu0
      %v816 = vadd.f32 0.0, %v815
      %v817 = vpop.f32.mrb[0].mxu0
      %818 = vdwg.mxu0
      %819 = vmatprep.subr.mxu0 0.0
      %820 = vmatpush1.msra.mxu0 %v712
      %821 = vmatprep.subr.mxu0 0.0
      %822 = vmatpush1.msra.mxu0 %v713
      %823 = vmatprep.subr.mxu0 0.0
      %824 = vmatpush1.msra.mxu0 %v714
      %825 = vmatprep.subr.mxu0 0.0
      %826 = vmatpush1.msra.mxu0 %v715
      %827 = vmatprep.subr.mxu0 0.0
      %828 = vmatpush1.msra.mxu0 %v716
      %829 = vmatprep.subr.mxu0 0.0
      %830 = vmatpush1.msra.mxu0 %v717
      %831 = vmatprep.subr.mxu0 0.0
      %832 = vmatpush1.msra.mxu0 %v718
      %833 = vmatprep.subr.mxu0 0.0
      %834 = vmatpush1.msra.mxu0 %v719
      %835 = vmatprep.subr.mxu0 0.0
      %836 = vmatpush1.msra.mxu0 %v720
      %837 = vmatprep.subr.mxu0 0.0
      %838 = vmatpush1.msra.mxu0 %v721
      %839 = vmatprep.subr.mxu0 0.0
      %840 = vmatpush1.msra.mxu0 %v722
      %841 = vmatprep.subr.mxu0 0.0
      %842 = vmatpush1.msra.mxu0 %v723
      %843 = vmatprep.subr.mxu0 0.0
      %844 = vmatpush1.msra.mxu0 %v724
      %845 = vmatprep.subr.mxu0 0.0
      %846 = vmatpush1.msra.mxu0 %v725
      %847 = vmatprep.subr.mxu0 0.0
      %848 = vmatpush1.msra.mxu0 %v726
      %849 = vmatprep.subr.mxu0 0.0
      %850 = vmatpush1.msra.mxu0 %v727
      %851 = vmatprep.subr.mxu0 0.0
      %852 = vmatpush1.msra.mxu0 0.0
      %853 = vmatprep.subr.mxu0 0.0
      %854 = vmatpush1.msra.mxu0 0.0
      %855 = vmatprep.subr.mxu0 0.0
      %856 = vmatpush1.msra.mxu0 0.0
      %857 = vmatprep.subr.mxu0 0.0
      %858 = vmatpush1.msra.mxu0 0.0
      %859 = vmatprep.subr.mxu0 0.0
      %860 = vmatpush1.msra.mxu0 0.0
      %861 = vmatprep.subr.mxu0 0.0
      %862 = vmatpush1.msra.mxu0 0.0
      %863 = vmatprep.subr.mxu0 0.0
      %864 = vmatpush1.msra.mxu0 0.0
      %865 = vmatprep.subr.mxu0 0.0
      %866 = vmatpush1.msra.mxu0 0.0
      %867 = vmatprep.subr.mxu0 0.0
      %868 = vmatpush1.msra.mxu0 0.0
      %869 = vmatprep.subr.mxu0 0.0
      %870 = vmatpush1.msra.mxu0 0.0
      %871 = vmatprep.subr.mxu0 0.0
      %872 = vmatpush1.msra.mxu0 0.0
      %873 = vmatprep.subr.mxu0 0.0
      %874 = vmatpush1.msra.mxu0 0.0
      %875 = vmatprep.subr.mxu0 0.0
      %876 = vmatpush1.msra.mxu0 0.0
      %877 = vmatprep.subr.mxu0 0.0
      %878 = vmatpush1.msra.mxu0 0.0
      %879 = vmatprep.subr.mxu0 0.0
      %880 = vmatpush1.msra.mxu0 0.0
      %881 = vmatprep.subr.mxu0 0.0
      %882 = vmatpush1.msra.mxu0 0.0
      %883 = vmatprep.mubr.f32.mxu0 0.0
      %884 = vmatmul.mubr.f32.gmra.mrb[0].mxu0 %v811
      %v885 = vpop.f32.mrb[0].mxu0
      %v886 = vadd.f32 0.0, %v885
      %v887 = vpop.f32.mrb[0].mxu0
      %888 = vmatprep.mubr.f32.mxu0 0.0
      %889 = vmatmul.mubr.f32.gmra.mrb[0].mxu0 %v816
      %v890 = vpop.f32.mrb[0].mxu0
      %v891 = vadd.f32 0.0, %v890
      %v892 = vpop.f32.mrb[0].mxu0
      %893 = vdwg.mxu0
      %vm894 = vcmask 130048
      %v895 = vsel %vm894, %v886, 0.0
      %896 = vadd.xlane.f32.xlu0 %v895
      %v897 = vpop.xlane.xlu0 %896
      %v898 = vsel %vm894, %v891, 0.0
      %899 = vadd.xlane.f32.xlu0 %v898
      %v900 = vpop.xlane.xlu0 %899
      %v901 = vadd.f32 %v897, %v900
      %v902 = vrot.slane %v901, 4
      %v903 = vadd.f32 %v901, %v902
      %v904 = vrot.slane %v903, 2
      %v905 = vadd.f32 %v903, %v904
      %v906 = vrot.slane %v905, 1
      %v907 = vadd.f32 %v905, %v906
      %v908 = vmax.f32 %v907, 1.0
      %v909 = vrcp.pop %v908
      %v910 = vmul.f32 %v886, %v909
      %v911 = vmul.f32 %v891, %v909
      %v912 = vadd.s32 %v212, 128
      %v913 = vand.u32 %v212, 15
      %v914 = vand.u32 %v912, 15
      %vm915 = vcmp.eq.s32.totalorder %v913, %v208
      %vm916 = vcmp.eq.s32.totalorder %v914, %v208
      %vm917 = vcmp.eq.s32.totalorder %v913, %v209
      %vm918 = vcmp.eq.s32.totalorder %v914, %v209
      %v919 = vsel %vm915, 1.0, 0.0
      %v920 = vsel %vm916, 1.0, 0.0
      %v921 = vsel %vm917, 1.0, 0.0
      %v922 = vsel %vm918, 1.0, 0.0
      %v923 = vshra.s32 %v212, 4
      %v924 = vshra.s32 %v912, 4
      %vm925 = vcmp.eq.s32.totalorder %v923, %v208
      %vm926 = vcmp.eq.s32.totalorder %v924, %v208
      %vm927 = vcmp.eq.s32.totalorder %v923, %v209
      %vm928 = vcmp.eq.s32.totalorder %v924, %v209
      %v929 = vsel %vm925, 1.0, 0.0
      %v930 = vsel %vm926, 1.0, 0.0
      %v931 = vsel %vm927, 1.0, 0.0
      %v932 = vsel %vm928, 1.0, 0.0
      %v934 = vsel %vm894, %v910, 0
      %v937 = vsel %vm894, %v911, 0
      %939 = vmatprep.subr.mxu0 %v920
      %940 = vmatpush1.msra.mxu0 %v919
      %941 = vmatprep.subr.mxu0 %v922
      %942 = vmatpush1.msra.mxu0 %v921
      %943 = vmatprep.subr.mxu0 0.0
      %944 = vmatpush1.msra.mxu0 0.0
      %945 = vmatprep.subr.mxu0 0.0
      %946 = vmatpush1.msra.mxu0 0.0
      %947 = vmatprep.subr.mxu0 0.0
      %948 = vmatpush1.msra.mxu0 0.0
      %949 = vmatprep.subr.mxu0 0.0
      %950 = vmatpush1.msra.mxu0 0.0
      %951 = vmatprep.subr.mxu0 0.0
      %952 = vmatpush1.msra.mxu0 0.0
      %953 = vmatprep.subr.mxu0 0.0
      %954 = vmatpush1.msra.mxu0 0.0
      %955 = vmatprep.subr.mxu0 0.0
      %956 = vmatpush1.msra.mxu0 0.0
      %957 = vmatprep.subr.mxu0 0.0
      %958 = vmatpush1.msra.mxu0 0.0
      %959 = vmatprep.subr.mxu0 0.0
      %960 = vmatpush1.msra.mxu0 0.0
      %961 = vmatprep.subr.mxu0 0.0
      %962 = vmatpush1.msra.mxu0 0.0
      %963 = vmatprep.subr.mxu0 0.0
      %964 = vmatpush1.msra.mxu0 0.0
      %965 = vmatprep.subr.mxu0 0.0
      %966 = vmatpush1.msra.mxu0 0.0
      %967 = vmatprep.subr.mxu0 0.0
      %968 = vmatpush1.msra.mxu0 0.0
      %969 = vmatprep.subr.mxu0 0.0
      %970 = vmatpush1.msra.mxu0 0.0
      %971 = vmatprep.subr.mxu0 0.0
      %972 = vmatpush1.msra.mxu0 0.0
      %973 = vmatprep.subr.mxu0 0.0
      %974 = vmatpush1.msra.mxu0 0.0
      %975 = vmatprep.subr.mxu0 0.0
      %976 = vmatpush1.msra.mxu0 0.0
      %977 = vmatprep.subr.mxu0 0.0
      %978 = vmatpush1.msra.mxu0 0.0
      %979 = vmatprep.subr.mxu0 0.0
      %980 = vmatpush1.msra.mxu0 0.0
      %981 = vmatprep.subr.mxu0 0.0
      %982 = vmatpush1.msra.mxu0 0.0
      %983 = vmatprep.subr.mxu0 0.0
      %984 = vmatpush1.msra.mxu0 0.0
      %985 = vmatprep.subr.mxu0 0.0
      %986 = vmatpush1.msra.mxu0 0.0
      %987 = vmatprep.subr.mxu0 0.0
      %988 = vmatpush1.msra.mxu0 0.0
      %989 = vmatprep.subr.mxu0 0.0
      %990 = vmatpush1.msra.mxu0 0.0
      %991 = vmatprep.subr.mxu0 0.0
      %992 = vmatpush1.msra.mxu0 0.0
      %993 = vmatprep.subr.mxu0 0.0
      %994 = vmatpush1.msra.mxu0 0.0
      %995 = vmatprep.subr.mxu0 0.0
      %996 = vmatpush1.msra.mxu0 0.0
      %997 = vmatprep.subr.mxu0 0.0
      %998 = vmatpush1.msra.mxu0 0.0
      %999 = vmatprep.subr.mxu0 0.0
      %1000 = vmatpush1.msra.mxu0 0.0
      %1001 = vmatprep.subr.mxu0 0.0
      %1002 = vmatpush1.msra.mxu0 0.0
      %1003 = vmatprep.mubr.f32.mxu0 0.0
      %1004 = vmatmul.mubr.f32.gmra.mrb[0].mxu0 %v934
      %v1005 = vpop.f32.mrb[0].mxu0
      %v1006 = vadd.f32 0.0, %v1005
      %v1007 = vpop.f32.mrb[0].mxu0
      %v1008 = vadd.f32 0.0, %v1007
      %1009 = vmatprep.mubr.f32.mxu0 0.0
      %1010 = vmatmul.mubr.f32.gmra.mrb[0].mxu0 %v937
      %v1011 = vpop.f32.mrb[0].mxu0
      %v1012 = vadd.f32 0.0, %v1011
      %v1013 = vpop.f32.mrb[0].mxu0
      %v1014 = vadd.f32 0.0, %v1013
      %1015 = vdwg.mxu0
      %v1016 = vmul.f32 %v1006, %v929
      %v1017 = vmul.f32 %v1008, %v930
      %v1018 = vmul.f32 %v1012, %v931
      %v1019 = vmul.f32 %v1014, %v932
      %v1020 = vadd.f32 %v1016, %v1018
      %v1021 = vrot.slane %v1020, 4
      %v1022 = vadd.f32 %v1020, %v1021
      %v1023 = vrot.slane %v1022, 2
      %v1024 = vadd.f32 %v1022, %v1023
      %v1025 = vrot.slane %v1024, 1
      %v1026 = vadd.f32 %v1024, %v1025
      %v1027 = vadd.f32 %v1017, %v1019
      %v1028 = vrot.slane %v1027, 4
      %v1029 = vadd.f32 %v1027, %v1028
      %v1030 = vrot.slane %v1029, 2
      %v1031 = vadd.f32 %v1029, %v1030
      %v1032 = vrot.slane %v1031, 1
      %v1033 = vadd.f32 %v1031, %v1032
      %v1034 = vadd.s32 %v208, 128
      %v1035 = vadd.s32 %v208, 136
      %v1036 = vadd.s32 %v208, 144
      %v1037 = vadd.s32 %v208, 152
      %v1038 = vadd.s32 %v208, 160
      %v1039 = vadd.s32 %v208, 168
      %v1040 = vadd.s32 %v208, 176
      %v1041 = vadd.s32 %v208, 184
      %v1042 = vadd.s32 %v208, 192
      %v1043 = vadd.s32 %v208, 200
      %v1044 = vadd.s32 %v208, 208
      %v1045 = vadd.s32 %v208, 216
      %v1046 = vadd.s32 %v208, 224
      %v1047 = vadd.s32 %v208, 232
      %v1048 = vadd.s32 %v208, 240
      %v1049 = vadd.s32 %v208, 248
      %vm1050 = vcmp.le.s32.totalorder %v208, %v212
      %vm1051 = vcmp.le.s32.totalorder %v208, %v912
      %vm1052 = vcmp.le.s32.totalorder %v209, %v212
      %vm1053 = vcmp.le.s32.totalorder %v209, %v912
      %vm1054 = vcmp.le.s32.totalorder %v210, %v212
      %vm1055 = vcmp.le.s32.totalorder %v210, %v912
      %vm1056 = vcmp.le.s32.totalorder %v613, %v212
      %vm1057 = vcmp.le.s32.totalorder %v613, %v912
      %vm1058 = vcmp.le.s32.totalorder %v614, %v212
      %vm1059 = vcmp.le.s32.totalorder %v614, %v912
      %vm1060 = vcmp.le.s32.totalorder %v615, %v212
      %vm1061 = vcmp.le.s32.totalorder %v615, %v912
      %vm1062 = vcmp.le.s32.totalorder %v616, %v212
      %vm1063 = vcmp.le.s32.totalorder %v616, %v912
      %vm1064 = vcmp.le.s32.totalorder %v617, %v212
      %vm1065 = vcmp.le.s32.totalorder %v617, %v912
      %vm1066 = vcmp.le.s32.totalorder %v618, %v212
      %vm1067 = vcmp.le.s32.totalorder %v618, %v912
      %vm1068 = vcmp.le.s32.totalorder %v619, %v212
      %vm1069 = vcmp.le.s32.totalorder %v619, %v912
      %vm1070 = vcmp.le.s32.totalorder %v620, %v212
      %vm1071 = vcmp.le.s32.totalorder %v620, %v912
      %vm1072 = vcmp.le.s32.totalorder %v621, %v212
      %vm1073 = vcmp.le.s32.totalorder %v621, %v912
      %vm1074 = vcmp.le.s32.totalorder %v622, %v212
      %vm1075 = vcmp.le.s32.totalorder %v622, %v912
      %vm1076 = vcmp.le.s32.totalorder %v623, %v212
      %vm1077 = vcmp.le.s32.totalorder %v623, %v912
      %vm1078 = vcmp.le.s32.totalorder %v624, %v212
      %vm1079 = vcmp.le.s32.totalorder %v624, %v912
      %vm1080 = vcmp.le.s32.totalorder %v625, %v212
      %vm1081 = vcmp.le.s32.totalorder %v625, %v912
      %vm1082 = vcmp.le.s32.totalorder %v1034, %v212
      %vm1083 = vcmp.le.s32.totalorder %v1034, %v912
      %vm1084 = vcmp.le.s32.totalorder %v1035, %v212
      %vm1085 = vcmp.le.s32.totalorder %v1035, %v912
      %vm1086 = vcmp.le.s32.totalorder %v1036, %v212
      %vm1087 = vcmp.le.s32.totalorder %v1036, %v912
      %vm1088 = vcmp.le.s32.totalorder %v1037, %v212
      %vm1089 = vcmp.le.s32.totalorder %v1037, %v912
      %vm1090 = vcmp.le.s32.totalorder %v1038, %v212
      %vm1091 = vcmp.le.s32.totalorder %v1038, %v912
      %vm1092 = vcmp.le.s32.totalorder %v1039, %v212
      %vm1093 = vcmp.le.s32.totalorder %v1039, %v912
      %vm1094 = vcmp.le.s32.totalorder %v1040, %v212
      %vm1095 = vcmp.le.s32.totalorder %v1040, %v912
      %vm1096 = vcmp.le.s32.totalorder %v1041, %v212
      %vm1097 = vcmp.le.s32.totalorder %v1041, %v912
      %vm1098 = vcmp.le.s32.totalorder %v1042, %v212
      %vm1099 = vcmp.le.s32.totalorder %v1042, %v912
      %vm1100 = vcmp.le.s32.totalorder %v1043, %v212
      %vm1101 = vcmp.le.s32.totalorder %v1043, %v912
      %vm1102 = vcmp.le.s32.totalorder %v1044, %v212
      %vm1103 = vcmp.le.s32.totalorder %v1044, %v912
      %vm1104 = vcmp.le.s32.totalorder %v1045, %v212
      %vm1105 = vcmp.le.s32.totalorder %v1045, %v912
      %vm1106 = vcmp.le.s32.totalorder %v1046, %v212
      %vm1107 = vcmp.le.s32.totalorder %v1046, %v912
      %vm1108 = vcmp.le.s32.totalorder %v1047, %v212
      %vm1109 = vcmp.le.s32.totalorder %v1047, %v912
      %vm1110 = vcmp.le.s32.totalorder %v1048, %v212
      %vm1111 = vcmp.le.s32.totalorder %v1048, %v912
      %vm1112 = vcmp.le.s32.totalorder %v1049, %v212
      %vm1113 = vcmp.le.s32.totalorder %v1049, %v912
      %v1114 = vsel %vm1050, 1.0, 0.0
      %v1115 = vsel %vm1051, 1.0, 0.0
      %v1116 = vsel %vm1052, 1.0, 0.0
      %v1117 = vsel %vm1053, 1.0, 0.0
      %v1118 = vsel %vm1054, 1.0, 0.0
      %v1119 = vsel %vm1055, 1.0, 0.0
      %v1120 = vsel %vm1056, 1.0, 0.0
      %v1121 = vsel %vm1057, 1.0, 0.0
      %v1122 = vsel %vm1058, 1.0, 0.0
      %v1123 = vsel %vm1059, 1.0, 0.0
      %v1124 = vsel %vm1060, 1.0, 0.0
      %v1125 = vsel %vm1061, 1.0, 0.0
      %v1126 = vsel %vm1062, 1.0, 0.0
      %v1127 = vsel %vm1063, 1.0, 0.0
      %v1128 = vsel %vm1064, 1.0, 0.0
      %v1129 = vsel %vm1065, 1.0, 0.0
      %v1130 = vsel %vm1066, 1.0, 0.0
      %v1131 = vsel %vm1067, 1.0, 0.0
      %v1132 = vsel %vm1068, 1.0, 0.0
      %v1133 = vsel %vm1069, 1.0, 0.0
      %v1134 = vsel %vm1070, 1.0, 0.0
      %v1135 = vsel %vm1071, 1.0, 0.0
      %v1136 = vsel %vm1072, 1.0, 0.0
      %v1137 = vsel %vm1073, 1.0, 0.0
      %v1138 = vsel %vm1074, 1.0, 0.0
      %v1139 = vsel %vm1075, 1.0, 0.0
      %v1140 = vsel %vm1076, 1.0, 0.0
      %v1141 = vsel %vm1077, 1.0, 0.0
      %v1142 = vsel %vm1078, 1.0, 0.0
      %v1143 = vsel %vm1079, 1.0, 0.0
      %v1144 = vsel %vm1080, 1.0, 0.0
      %v1145 = vsel %vm1081, 1.0, 0.0
      %v1146 = vsel %vm1082, 1.0, 0.0
      %v1147 = vsel %vm1083, 1.0, 0.0
      %v1148 = vsel %vm1084, 1.0, 0.0
      %v1149 = vsel %vm1085, 1.0, 0.0
      %v1150 = vsel %vm1086, 1.0, 0.0
      %v1151 = vsel %vm1087, 1.0, 0.0
      %v1152 = vsel %vm1088, 1.0, 0.0
      %v1153 = vsel %vm1089, 1.0, 0.0
      %v1154 = vsel %vm1090, 1.0, 0.0
      %v1155 = vsel %vm1091, 1.0, 0.0
      %v1156 = vsel %vm1092, 1.0, 0.0
      %v1157 = vsel %vm1093, 1.0, 0.0
      %v1158 = vsel %vm1094, 1.0, 0.0
      %v1159 = vsel %vm1095, 1.0, 0.0
      %v1160 = vsel %vm1096, 1.0, 0.0
      %v1161 = vsel %vm1097, 1.0, 0.0
      %v1162 = vsel %vm1098, 1.0, 0.0
      %v1163 = vsel %vm1099, 1.0, 0.0
      %v1164 = vsel %vm1100, 1.0, 0.0
      %v1165 = vsel %vm1101, 1.0, 0.0
      %v1166 = vsel %vm1102, 1.0, 0.0
      %v1167 = vsel %vm1103, 1.0, 0.0
      %v1168 = vsel %vm1104, 1.0, 0.0
      %v1169 = vsel %vm1105, 1.0, 0.0
      %v1170 = vsel %vm1106, 1.0, 0.0
      %v1171 = vsel %vm1107, 1.0, 0.0
      %v1172 = vsel %vm1108, 1.0, 0.0
      %v1173 = vsel %vm1109, 1.0, 0.0
      %v1174 = vsel %vm1110, 1.0, 0.0
      %v1175 = vsel %vm1111, 1.0, 0.0
      %v1176 = vsel %vm1112, 1.0, 0.0
      %v1177 = vsel %vm1113, 1.0, 0.0
      %v1178 = vcvt.s32.f32 %v212
      %v1179 = vcvt.s32.f32 %v912
      %vm1180 = vcmp.eq.s32.totalorder %v208, 0
      %vm1181 = vcmp.eq.s32.totalorder %v208, 1
      %v1182 = vsel %vm1181, %v1178, 0.0
      %v1183 = vsel %vm1181, %v1179, 0.0
      %v1184 = vsel %vm1180, 1.0, %v1182
      %v1185 = vsel %vm1180, 1.0, %v1183
      %v1186 = vmul.f32 %v1026, %v1184
      %v1187 = vmul.f32 %v1033, %v1185
      %1188 = vmatprep.subr.mxu0 %v1115
      %1189 = vmatpush1.msra.mxu0 %v1114
      %1190 = vmatprep.subr.mxu0 %v1117
      %1191 = vmatpush1.msra.mxu0 %v1116
      %1192 = vmatprep.subr.mxu0 %v1119
      %1193 = vmatpush1.msra.mxu0 %v1118
      %1194 = vmatprep.subr.mxu0 %v1121
      %1195 = vmatpush1.msra.mxu0 %v1120
      %1196 = vmatprep.subr.mxu0 %v1123
      %1197 = vmatpush1.msra.mxu0 %v1122
      %1198 = vmatprep.subr.mxu0 %v1125
      %1199 = vmatpush1.msra.mxu0 %v1124
      %1200 = vmatprep.subr.mxu0 %v1127
      %1201 = vmatpush1.msra.mxu0 %v1126
      %1202 = vmatprep.subr.mxu0 %v1129
      %1203 = vmatpush1.msra.mxu0 %v1128
      %1204 = vmatprep.subr.mxu0 %v1131
      %1205 = vmatpush1.msra.mxu0 %v1130
      %1206 = vmatprep.subr.mxu0 %v1133
      %1207 = vmatpush1.msra.mxu0 %v1132
      %1208 = vmatprep.subr.mxu0 %v1135
      %1209 = vmatpush1.msra.mxu0 %v1134
      %1210 = vmatprep.subr.mxu0 %v1137
      %1211 = vmatpush1.msra.mxu0 %v1136
      %1212 = vmatprep.subr.mxu0 %v1139
      %1213 = vmatpush1.msra.mxu0 %v1138
      %1214 = vmatprep.subr.mxu0 %v1141
      %1215 = vmatpush1.msra.mxu0 %v1140
      %1216 = vmatprep.subr.mxu0 %v1143
      %1217 = vmatpush1.msra.mxu0 %v1142
      %1218 = vmatprep.subr.mxu0 %v1145
      %1219 = vmatpush1.msra.mxu0 %v1144
      %1220 = vmatprep.subr.mxu0 %v1147
      %1221 = vmatpush1.msra.mxu0 %v1146
      %1222 = vmatprep.subr.mxu0 %v1149
      %1223 = vmatpush1.msra.mxu0 %v1148
      %1224 = vmatprep.subr.mxu0 %v1151
      %1225 = vmatpush1.msra.mxu0 %v1150
      %1226 = vmatprep.subr.mxu0 %v1153
      %1227 = vmatpush1.msra.mxu0 %v1152
      %1228 = vmatprep.subr.mxu0 %v1155
      %1229 = vmatpush1.msra.mxu0 %v1154
      %1230 = vmatprep.subr.mxu0 %v1157
      %1231 = vmatpush1.msra.mxu0 %v1156
      %1232 = vmatprep.subr.mxu0 %v1159
      %1233 = vmatpush1.msra.mxu0 %v1158
      %1234 = vmatprep.subr.mxu0 %v1161
      %1235 = vmatpush1.msra.mxu0 %v1160
      %1236 = vmatprep.subr.mxu0 %v1163
      %1237 = vmatpush1.msra.mxu0 %v1162
      %1238 = vmatprep.subr.mxu0 %v1165
      %1239 = vmatpush1.msra.mxu0 %v1164
      %1240 = vmatprep.subr.mxu0 %v1167
      %1241 = vmatpush1.msra.mxu0 %v1166
      %1242 = vmatprep.subr.mxu0 %v1169
      %1243 = vmatpush1.msra.mxu0 %v1168
      %1244 = vmatprep.subr.mxu0 %v1171
      %1245 = vmatpush1.msra.mxu0 %v1170
      %1246 = vmatprep.subr.mxu0 %v1173
      %1247 = vmatpush1.msra.mxu0 %v1172
      %1248 = vmatprep.subr.mxu0 %v1175
      %1249 = vmatpush1.msra.mxu0 %v1174
      %1250 = vmatprep.subr.mxu0 %v1177
      %1251 = vmatpush1.msra.mxu0 %v1176
      %1252 = vmatprep.mubr.f32.mxu0 %v1187
      %1253 = vmatmul.mubr.f32.gmra.mrb[0].mxu0 %v1186
      %v1254 = vpop.f32.mrb[0].mxu0
      %v1255 = vadd.f32 0.0, %v1254
      %v1256 = vpop.f32.mrb[0].mxu0
      %v1257 = vadd.f32 0.0, %v1256
      %1258 = vdwg.mxu0
      %1259 = vxpose.xlu0.b32.start [1/16] %v1255, 128
      %1260 = vxpose.xlu0.b32.cont [2/16] 0.0, 128
      %1261 = vxpose.xlu0.b32.cont [3/16] 0.0, 128
      %1262 = vxpose.xlu0.b32.cont [4/16] 0.0, 128
      %1263 = vxpose.xlu0.b32.cont [5/16] 0.0, 128
      %1264 = vxpose.xlu0.b32.cont [6/16] 0.0, 128
      %1265 = vxpose.xlu0.b32.cont [7/16] 0.0, 128
      %1266 = vxpose.xlu0.b32.cont [8/16] 0.0, 128
      %1267 = vxpose.xlu0.b32.cont [9/16] 0.0, 128
      %1268 = vxpose.xlu0.b32.cont [10/16] 0.0, 128
      %1269 = vxpose.xlu0.b32.cont [11/16] 0.0, 128
      %1270 = vxpose.xlu0.b32.cont [12/16] 0.0, 128
      %1271 = vxpose.xlu0.b32.cont [13/16] 0.0, 128
      %1272 = vxpose.xlu0.b32.cont [14/16] 0.0, 128
      %1273 = vxpose.xlu0.b32.cont [15/16] 0.0, 128
      %1274 = vxpose.xlu0.b32.end [16/16] 0.0, 128
      %v1275 = vpop.trf.xlu0
      %v1276 = vpop.trf.xlu0
      %v1277 = vpop.trf.xlu0
      %v1278 = vpop.trf.xlu0
      %v1279 = vpop.trf.xlu0
      %v1280 = vpop.trf.xlu0
      %v1281 = vpop.trf.xlu0
      %v1282 = vpop.trf.xlu0
      %v1283 = vpop.trf.xlu0
      %v1284 = vpop.trf.xlu0
      %v1285 = vpop.trf.xlu0
      %v1286 = vpop.trf.xlu0
      %v1287 = vpop.trf.xlu0
      %v1288 = vpop.trf.xlu0
      %v1289 = vpop.trf.xlu0
      %v1290 = vpop.trf.xlu0
      %1291 = vxpose.xlu0.b32.start [1/16] %v1257, 128
      %1292 = vxpose.xlu0.b32.cont [2/16] 0.0, 128
      %1293 = vxpose.xlu0.b32.cont [3/16] 0.0, 128
      %1294 = vxpose.xlu0.b32.cont [4/16] 0.0, 128
      %1295 = vxpose.xlu0.b32.cont [5/16] 0.0, 128
      %1296 = vxpose.xlu0.b32.cont [6/16] 0.0, 128
      %1297 = vxpose.xlu0.b32.cont [7/16] 0.0, 128
      %1298 = vxpose.xlu0.b32.cont [8/16] 0.0, 128
      %1299 = vxpose.xlu0.b32.cont [9/16] 0.0, 128
      %1300 = vxpose.xlu0.b32.cont [10/16] 0.0, 128
      %1301 = vxpose.xlu0.b32.cont [11/16] 0.0, 128
      %1302 = vxpose.xlu0.b32.cont [12/16] 0.0, 128
      %1303 = vxpose.xlu0.b32.cont [13/16] 0.0, 128
      %1304 = vxpose.xlu0.b32.cont [14/16] 0.0, 128
      %1305 = vxpose.xlu0.b32.cont [15/16] 0.0, 128
      %1306 = vxpose.xlu0.b32.end [16/16] 0.0, 128
      %v1307 = vpop.trf.xlu0
      %v1308 = vpop.trf.xlu0
      %v1309 = vpop.trf.xlu0
      %v1310 = vpop.trf.xlu0
      %v1311 = vpop.trf.xlu0
      %v1312 = vpop.trf.xlu0
      %v1313 = vpop.trf.xlu0
      %v1314 = vpop.trf.xlu0
      %v1315 = vpop.trf.xlu0
      %v1316 = vpop.trf.xlu0
      %v1317 = vpop.trf.xlu0
      %v1318 = vpop.trf.xlu0
      %v1319 = vpop.trf.xlu0
      %v1320 = vpop.trf.xlu0
      %v1321 = vpop.trf.xlu0
      %v1322 = vpop.trf.xlu0
      %v1323 = vlaneseq
      %v1324 = vshrl.u32 %v1323, 7
      %v1325 = vsub.s32 0, %v1324
      %v1326 = vrot.slane %v1255, %v1325
      %v1327 = vlaneseq
      %v1328 = vshrl.u32 %v1327, 7
      %v1329 = vsub.s32 0, %v1328
      %v1330 = vrot.slane %v1257, %v1329
      %1332 = vset.pattern.permute.xlu0 0
      %1333 = vperm.xlu0 %1332, %v1275
      %v1334 = vpop.permute.xlu0 %1333
      %1337 = vset.pattern.permute.xlu0 0
      %1338 = vperm.xlu0 %1337, %v1276
      %v1339 = vpop.permute.xlu0 %1338
      %1342 = vset.pattern.permute.xlu0 0
      %1343 = vperm.xlu0 %1342, %v1277
      %v1344 = vpop.permute.xlu0 %1343
      %1347 = vset.pattern.permute.xlu0 0
      %1348 = vperm.xlu0 %1347, %v1278
      %v1349 = vpop.permute.xlu0 %1348
      %1352 = vset.pattern.permute.xlu0 0
      %1353 = vperm.xlu0 %1352, %v1279
      %v1354 = vpop.permute.xlu0 %1353
      %1357 = vset.pattern.permute.xlu0 0
      %1358 = vperm.xlu0 %1357, %v1280
      %v1359 = vpop.permute.xlu0 %1358
      %1362 = vset.pattern.permute.xlu0 0
      %1363 = vperm.xlu0 %1362, %v1281
      %v1364 = vpop.permute.xlu0 %1363
      %1367 = vset.pattern.permute.xlu0 0
      %1368 = vperm.xlu0 %1367, %v1282
      %v1369 = vpop.permute.xlu0 %1368
      %1372 = vset.pattern.permute.xlu0 0
      %1373 = vperm.xlu0 %1372, %v1283
      %v1374 = vpop.permute.xlu0 %1373
      %1377 = vset.pattern.permute.xlu0 0
      %1378 = vperm.xlu0 %1377, %v1284
      %v1379 = vpop.permute.xlu0 %1378
      %1382 = vset.pattern.permute.xlu0 0
      %1383 = vperm.xlu0 %1382, %v1285
      %v1384 = vpop.permute.xlu0 %1383
      %1387 = vset.pattern.permute.xlu0 0
      %1388 = vperm.xlu0 %1387, %v1286
      %v1389 = vpop.permute.xlu0 %1388
      %1392 = vset.pattern.permute.xlu0 0
      %1393 = vperm.xlu0 %1392, %v1287
      %v1394 = vpop.permute.xlu0 %1393
      %1397 = vset.pattern.permute.xlu0 0
      %1398 = vperm.xlu0 %1397, %v1288
      %v1399 = vpop.permute.xlu0 %1398
      %1402 = vset.pattern.permute.xlu0 0
      %1403 = vperm.xlu0 %1402, %v1289
      %v1404 = vpop.permute.xlu0 %1403
      %1407 = vset.pattern.permute.xlu0 0
      %1408 = vperm.xlu0 %1407, %v1290
      %v1409 = vpop.permute.xlu0 %1408
      %1412 = vset.pattern.permute.xlu0 0
      %1413 = vperm.xlu0 %1412, %v1307
      %v1414 = vpop.permute.xlu0 %1413
      %1417 = vset.pattern.permute.xlu0 0
      %1418 = vperm.xlu0 %1417, %v1308
      %v1419 = vpop.permute.xlu0 %1418
      %1422 = vset.pattern.permute.xlu0 0
      %1423 = vperm.xlu0 %1422, %v1309
      %v1424 = vpop.permute.xlu0 %1423
      %1427 = vset.pattern.permute.xlu0 0
      %1428 = vperm.xlu0 %1427, %v1310
      %v1429 = vpop.permute.xlu0 %1428
      %1432 = vset.pattern.permute.xlu0 0
      %1433 = vperm.xlu0 %1432, %v1311
      %v1434 = vpop.permute.xlu0 %1433
      %1437 = vset.pattern.permute.xlu0 0
      %1438 = vperm.xlu0 %1437, %v1312
      %v1439 = vpop.permute.xlu0 %1438
      %1442 = vset.pattern.permute.xlu0 0
      %1443 = vperm.xlu0 %1442, %v1313
      %v1444 = vpop.permute.xlu0 %1443
      %1447 = vset.pattern.permute.xlu0 0
      %1448 = vperm.xlu0 %1447, %v1314
      %v1449 = vpop.permute.xlu0 %1448
      %1452 = vset.pattern.permute.xlu0 0
      %1453 = vperm.xlu0 %1452, %v1315
      %v1454 = vpop.permute.xlu0 %1453
      %1457 = vset.pattern.permute.xlu0 0
      %1458 = vperm.xlu0 %1457, %v1316
      %v1459 = vpop.permute.xlu0 %1458
      %1462 = vset.pattern.permute.xlu0 0
      %1463 = vperm.xlu0 %1462, %v1317
      %v1464 = vpop.permute.xlu0 %1463
      %1467 = vset.pattern.permute.xlu0 0
      %1468 = vperm.xlu0 %1467, %v1318
      %v1469 = vpop.permute.xlu0 %1468
      %1472 = vset.pattern.permute.xlu0 0
      %1473 = vperm.xlu0 %1472, %v1319
      %v1474 = vpop.permute.xlu0 %1473
      %1477 = vset.pattern.permute.xlu0 0
      %1478 = vperm.xlu0 %1477, %v1320
      %v1479 = vpop.permute.xlu0 %1478
      %1482 = vset.pattern.permute.xlu0 0
      %1483 = vperm.xlu0 %1482, %v1321
      %v1484 = vpop.permute.xlu0 %1483
      %1487 = vset.pattern.permute.xlu0 0
      %1488 = vperm.xlu0 %1487, %v1322
      %v1489 = vpop.permute.xlu0 %1488
      %v1491 = vsub.f32 %v1326, %v1334
      %v1492 = vsub.f32 %v1330, %v1334
      %v1493 = vsub.f32 %v1326, %v1339
      %v1494 = vsub.f32 %v1330, %v1339
      %v1495 = vsub.f32 %v1326, %v1344
      %v1496 = vsub.f32 %v1330, %v1344
      %v1497 = vsub.f32 %v1326, %v1349
      %v1498 = vsub.f32 %v1330, %v1349
      %v1499 = vsub.f32 %v1326, %v1354
      %v1500 = vsub.f32 %v1330, %v1354
      %v1501 = vsub.f32 %v1326, %v1359
      %v1502 = vsub.f32 %v1330, %v1359
      %v1503 = vsub.f32 %v1326, %v1364
      %v1504 = vsub.f32 %v1330, %v1364
      %v1505 = vsub.f32 %v1326, %v1369
      %v1506 = vsub.f32 %v1330, %v1369
      %v1507 = vsub.f32 %v1326, %v1374
      %v1508 = vsub.f32 %v1330, %v1374
      %v1509 = vsub.f32 %v1326, %v1379
      %v1510 = vsub.f32 %v1330, %v1379
      %v1511 = vsub.f32 %v1326, %v1384
      %v1512 = vsub.f32 %v1330, %v1384
      %v1513 = vsub.f32 %v1326, %v1389
      %v1514 = vsub.f32 %v1330, %v1389
      %v1515 = vsub.f32 %v1326, %v1394
      %v1516 = vsub.f32 %v1330, %v1394
      %v1517 = vsub.f32 %v1326, %v1399
      %v1518 = vsub.f32 %v1330, %v1399
      %v1519 = vsub.f32 %v1326, %v1404
      %v1520 = vsub.f32 %v1330, %v1404
      %v1521 = vsub.f32 %v1326, %v1409
      %v1522 = vsub.f32 %v1330, %v1409
      %v1523 = vsub.f32 %v1326, %v1414
      %v1524 = vsub.f32 %v1330, %v1414
      %v1525 = vsub.f32 %v1326, %v1419
      %v1526 = vsub.f32 %v1330, %v1419
      %v1527 = vsub.f32 %v1326, %v1424
      %v1528 = vsub.f32 %v1330, %v1424
      %v1529 = vsub.f32 %v1326, %v1429
      %v1530 = vsub.f32 %v1330, %v1429
      %v1531 = vsub.f32 %v1326, %v1434
      %v1532 = vsub.f32 %v1330, %v1434
      %v1533 = vsub.f32 %v1326, %v1439
      %v1534 = vsub.f32 %v1330, %v1439
      %v1535 = vsub.f32 %v1326, %v1444
      %v1536 = vsub.f32 %v1330, %v1444
      %v1537 = vsub.f32 %v1326, %v1449
      %v1538 = vsub.f32 %v1330, %v1449
      %v1539 = vsub.f32 %v1326, %v1454
      %v1540 = vsub.f32 %v1330, %v1454
      %v1541 = vsub.f32 %v1326, %v1459
      %v1542 = vsub.f32 %v1330, %v1459
      %v1543 = vsub.f32 %v1326, %v1464
      %v1544 = vsub.f32 %v1330, %v1464
      %v1545 = vsub.f32 %v1326, %v1469
      %v1546 = vsub.f32 %v1330, %v1469
      %v1547 = vsub.f32 %v1326, %v1474
      %v1548 = vsub.f32 %v1330, %v1474
      %v1549 = vsub.f32 %v1326, %v1479
      %v1550 = vsub.f32 %v1330, %v1479
      %v1551 = vsub.f32 %v1326, %v1484
      %v1552 = vsub.f32 %v1330, %v1484
      %v1553 = vsub.f32 %v1326, %v1489
      %v1554 = vsub.f32 %v1330, %v1489
      %v1555 = vsub.f32 1.0, %v1255
      %v1556 = vsub.f32 1.0, %v1257
      %v1557 = vadd.f32 %v1275, 1e-08
      %v1558 = vadd.f32 %v1276, 1e-08
      %v1559 = vadd.f32 %v1277, 1e-08
      %v1560 = vadd.f32 %v1278, 1e-08
      %v1561 = vadd.f32 %v1279, 1e-08
      %v1562 = vadd.f32 %v1280, 1e-08
      %v1563 = vadd.f32 %v1281, 1e-08
      %v1564 = vadd.f32 %v1282, 1e-08
      %v1565 = vadd.f32 %v1283, 1e-08
      %v1566 = vadd.f32 %v1284, 1e-08
      %v1567 = vadd.f32 %v1285, 1e-08
      %v1568 = vadd.f32 %v1286, 1e-08
      %v1569 = vadd.f32 %v1287, 1e-08
      %v1570 = vadd.f32 %v1288, 1e-08
      %v1571 = vadd.f32 %v1289, 1e-08
      %v1572 = vadd.f32 %v1290, 1e-08
      %v1573 = vadd.f32 %v1307, 1e-08
      %v1574 = vadd.f32 %v1308, 1e-08
      %v1575 = vadd.f32 %v1309, 1e-08
      %v1576 = vadd.f32 %v1310, 1e-08
      %v1577 = vadd.f32 %v1311, 1e-08
      %v1578 = vadd.f32 %v1312, 1e-08
      %v1579 = vadd.f32 %v1313, 1e-08
      %v1580 = vadd.f32 %v1314, 1e-08
      %v1581 = vadd.f32 %v1315, 1e-08
      %v1582 = vadd.f32 %v1316, 1e-08
      %v1583 = vadd.f32 %v1317, 1e-08
      %v1584 = vadd.f32 %v1318, 1e-08
      %v1585 = vadd.f32 %v1319, 1e-08
      %v1586 = vadd.f32 %v1320, 1e-08
      %v1587 = vadd.f32 %v1321, 1e-08
      %v1588 = vadd.f32 %v1322, 1e-08
      %1621 = vrot.lane.b32.xlu0 %v1557, 1
      %v1622 = vpop.permute.xlu0 %1621
      %1623 = vrot.lane.b32.xlu0 %v1558, 1
      %v1624 = vpop.permute.xlu0 %1623
      %1625 = vrot.lane.b32.xlu0 %v1559, 1
      %v1626 = vpop.permute.xlu0 %1625
      %1627 = vrot.lane.b32.xlu0 %v1560, 1
      %v1628 = vpop.permute.xlu0 %1627
      %1629 = vrot.lane.b32.xlu0 %v1561, 1
      %v1630 = vpop.permute.xlu0 %1629
      %1631 = vrot.lane.b32.xlu0 %v1562, 1
      %v1632 = vpop.permute.xlu0 %1631
      %1633 = vrot.lane.b32.xlu0 %v1563, 1
      %v1634 = vpop.permute.xlu0 %1633
      %1635 = vrot.lane.b32.xlu0 %v1564, 1
      %v1636 = vpop.permute.xlu0 %1635
      %1637 = vrot.lane.b32.xlu0 %v1565, 1
      %v1638 = vpop.permute.xlu0 %1637
      %1639 = vrot.lane.b32.xlu0 %v1566, 1
      %v1640 = vpop.permute.xlu0 %1639
      %1641 = vrot.lane.b32.xlu0 %v1567, 1
      %v1642 = vpop.permute.xlu0 %1641
      %1643 = vrot.lane.b32.xlu0 %v1568, 1
      %v1644 = vpop.permute.xlu0 %1643
      %1645 = vrot.lane.b32.xlu0 %v1569, 1
      %v1646 = vpop.permute.xlu0 %1645
      %1647 = vrot.lane.b32.xlu0 %v1570, 1
      %v1648 = vpop.permute.xlu0 %1647
      %1649 = vrot.lane.b32.xlu0 %v1571, 1
      %v1650 = vpop.permute.xlu0 %1649
      %1651 = vrot.lane.b32.xlu0 %v1572, 1
      %v1652 = vpop.permute.xlu0 %1651
      %1653 = vrot.lane.b32.xlu0 %v1573, 1
      %v1654 = vpop.permute.xlu0 %1653
      %1655 = vrot.lane.b32.xlu0 %v1574, 1
      %v1656 = vpop.permute.xlu0 %1655
      %1657 = vrot.lane.b32.xlu0 %v1575, 1
      %v1658 = vpop.permute.xlu0 %1657
      %1659 = vrot.lane.b32.xlu0 %v1576, 1
      %v1660 = vpop.permute.xlu0 %1659
      %1661 = vrot.lane.b32.xlu0 %v1577, 1
      %v1662 = vpop.permute.xlu0 %1661
      %1663 = vrot.lane.b32.xlu0 %v1578, 1
      %v1664 = vpop.permute.xlu0 %1663
      %1665 = vrot.lane.b32.xlu0 %v1579, 1
      %v1666 = vpop.permute.xlu0 %1665
      %1667 = vrot.lane.b32.xlu0 %v1580, 1
      %v1668 = vpop.permute.xlu0 %1667
      %1669 = vrot.lane.b32.xlu0 %v1581, 1
      %v1670 = vpop.permute.xlu0 %1669
      %1671 = vrot.lane.b32.xlu0 %v1582, 1
      %v1672 = vpop.permute.xlu0 %1671
      %1673 = vrot.lane.b32.xlu0 %v1583, 1
      %v1674 = vpop.permute.xlu0 %1673
      %1675 = vrot.lane.b32.xlu0 %v1584, 1
      %v1676 = vpop.permute.xlu0 %1675
      %1677 = vrot.lane.b32.xlu0 %v1585, 1
      %v1678 = vpop.permute.xlu0 %1677
      %1679 = vrot.lane.b32.xlu0 %v1586, 1
      %v1680 = vpop.permute.xlu0 %1679
      %1681 = vrot.lane.b32.xlu0 %v1587, 1
      %v1682 = vpop.permute.xlu0 %1681
      %1683 = vrot.lane.b32.xlu0 %v1588, 1
      %v1684 = vpop.permute.xlu0 %1683
      %v1717 = vrcp.pop %v1622
      %v1718 = vmul.f32 %v1275, %v1717
      %v1719 = vrcp.pop %v1624
      %v1720 = vmul.f32 %v1276, %v1719
      %v1721 = vrcp.pop %v1626
      %v1722 = vmul.f32 %v1277, %v1721
      %v1723 = vrcp.pop %v1628
      %v1724 = vmul.f32 %v1278, %v1723
      %v1725 = vrcp.pop %v1630
      %v1726 = vmul.f32 %v1279, %v1725
      %v1727 = vrcp.pop %v1632
      %v1728 = vmul.f32 %v1280, %v1727
      %v1729 = vrcp.pop %v1634
      %v1730 = vmul.f32 %v1281, %v1729
      %v1731 = vrcp.pop %v1636
      %v1732 = vmul.f32 %v1282, %v1731
      %v1733 = vrcp.pop %v1638
      %v1734 = vmul.f32 %v1283, %v1733
      %v1735 = vrcp.pop %v1640
      %v1736 = vmul.f32 %v1284, %v1735
      %v1737 = vrcp.pop %v1642
      %v1738 = vmul.f32 %v1285, %v1737
      %v1739 = vrcp.pop %v1644
      %v1740 = vmul.f32 %v1286, %v1739
      %v1741 = vrcp.pop %v1646
      %v1742 = vmul.f32 %v1287, %v1741
      %v1743 = vrcp.pop %v1648
      %v1744 = vmul.f32 %v1288, %v1743
      %v1745 = vrcp.pop %v1650
      %v1746 = vmul.f32 %v1289, %v1745
      %v1747 = vrcp.pop %v1652
      %v1748 = vmul.f32 %v1290, %v1747
      %v1749 = vrcp.pop %v1654
      %v1750 = vmul.f32 %v1307, %v1749
      %v1751 = vrcp.pop %v1656
      %v1752 = vmul.f32 %v1308, %v1751
      %v1753 = vrcp.pop %v1658
      %v1754 = vmul.f32 %v1309, %v1753
      %v1755 = vrcp.pop %v1660
      %v1756 = vmul.f32 %v1310, %v1755
      %v1757 = vrcp.pop %v1662
      %v1758 = vmul.f32 %v1311, %v1757
      %v1759 = vrcp.pop %v1664
      %v1760 = vmul.f32 %v1312, %v1759
      %v1761 = vrcp.pop %v1666
      %v1762 = vmul.f32 %v1313, %v1761
      %v1763 = vrcp.pop %v1668
      %v1764 = vmul.f32 %v1314, %v1763
      %v1765 = vrcp.pop %v1670
      %v1766 = vmul.f32 %v1315, %v1765
      %v1767 = vrcp.pop %v1672
      %v1768 = vmul.f32 %v1316, %v1767
      %v1769 = vrcp.pop %v1674
      %v1770 = vmul.f32 %v1317, %v1769
      %v1771 = vrcp.pop %v1676
      %v1772 = vmul.f32 %v1318, %v1771
      %v1773 = vrcp.pop %v1678
      %v1774 = vmul.f32 %v1319, %v1773
      %v1775 = vrcp.pop %v1680
      %v1776 = vmul.f32 %v1320, %v1775
      %v1777 = vrcp.pop %v1682
      %v1778 = vmul.f32 %v1321, %v1777
      %v1779 = vrcp.pop %v1684
      %v1780 = vmul.f32 %v1322, %v1779
      %v1781 = vlaneseq
      %v1782 = vshrl.u32 %v1781, 7
      %v1783 = vsub.s32 1, %v1782
      %v1784 = vrot.slane %v1255, %v1783
      %v1785 = vlaneseq
      %v1786 = vshrl.u32 %v1785, 7
      %v1787 = vsub.s32 1, %v1786
      %v1788 = vrot.slane %v1257, %v1787
      %1789 = vset.pattern.permute.xlu0 1
      %1790 = vperm.xlu0 %1789, %v1275
      %v1791 = vpop.permute.xlu0 %1790
      %1793 = vset.pattern.permute.xlu0 1
      %1794 = vperm.xlu0 %1793, %v1276
      %v1795 = vpop.permute.xlu0 %1794
      %1797 = vset.pattern.permute.xlu0 1
      %1798 = vperm.xlu0 %1797, %v1277
      %v1799 = vpop.permute.xlu0 %1798
      %1801 = vset.pattern.permute.xlu0 1
      %1802 = vperm.xlu0 %1801, %v1278
      %v1803 = vpop.permute.xlu0 %1802
      %1805 = vset.pattern.permute.xlu0 1
      %1806 = vperm.xlu0 %1805, %v1279
      %v1807 = vpop.permute.xlu0 %1806
      %1809 = vset.pattern.permute.xlu0 1
      %1810 = vperm.xlu0 %1809, %v1280
      %v1811 = vpop.permute.xlu0 %1810
      %1813 = vset.pattern.permute.xlu0 1
      %1814 = vperm.xlu0 %1813, %v1281
      %v1815 = vpop.permute.xlu0 %1814
      %1817 = vset.pattern.permute.xlu0 1
      %1818 = vperm.xlu0 %1817, %v1282
      %v1819 = vpop.permute.xlu0 %1818
      %1821 = vset.pattern.permute.xlu0 1
      %1822 = vperm.xlu0 %1821, %v1283
      %v1823 = vpop.permute.xlu0 %1822
      %1825 = vset.pattern.permute.xlu0 1
      %1826 = vperm.xlu0 %1825, %v1284
      %v1827 = vpop.permute.xlu0 %1826
      %1829 = vset.pattern.permute.xlu0 1
      %1830 = vperm.xlu0 %1829, %v1285
      %v1831 = vpop.permute.xlu0 %1830
      %1833 = vset.pattern.permute.xlu0 1
      %1834 = vperm.xlu0 %1833, %v1286
      %v1835 = vpop.permute.xlu0 %1834
      %1837 = vset.pattern.permute.xlu0 1
      %1838 = vperm.xlu0 %1837, %v1287
      %v1839 = vpop.permute.xlu0 %1838
      %1841 = vset.pattern.permute.xlu0 1
      %1842 = vperm.xlu0 %1841, %v1288
      %v1843 = vpop.permute.xlu0 %1842
      %1845 = vset.pattern.permute.xlu0 1
      %1846 = vperm.xlu0 %1845, %v1289
      %v1847 = vpop.permute.xlu0 %1846
      %1849 = vset.pattern.permute.xlu0 1
      %1850 = vperm.xlu0 %1849, %v1290
      %v1851 = vpop.permute.xlu0 %1850
      %1853 = vset.pattern.permute.xlu0 1
      %1854 = vperm.xlu0 %1853, %v1307
      %v1855 = vpop.permute.xlu0 %1854
      %1857 = vset.pattern.permute.xlu0 1
      %1858 = vperm.xlu0 %1857, %v1308
      %v1859 = vpop.permute.xlu0 %1858
      %1861 = vset.pattern.permute.xlu0 1
      %1862 = vperm.xlu0 %1861, %v1309
      %v1863 = vpop.permute.xlu0 %1862
      %1865 = vset.pattern.permute.xlu0 1
      %1866 = vperm.xlu0 %1865, %v1310
      %v1867 = vpop.permute.xlu0 %1866
      %1869 = vset.pattern.permute.xlu0 1
      %1870 = vperm.xlu0 %1869, %v1311
      %v1871 = vpop.permute.xlu0 %1870
      %1873 = vset.pattern.permute.xlu0 1
      %1874 = vperm.xlu0 %1873, %v1312
      %v1875 = vpop.permute.xlu0 %1874
      %1877 = vset.pattern.permute.xlu0 1
      %1878 = vperm.xlu0 %1877, %v1313
      %v1879 = vpop.permute.xlu0 %1878
      %1881 = vset.pattern.permute.xlu0 1
      %1882 = vperm.xlu0 %1881, %v1314
      %v1883 = vpop.permute.xlu0 %1882
      %1885 = vset.pattern.permute.xlu0 1
      %1886 = vperm.xlu0 %1885, %v1315
      %v1887 = vpop.permute.xlu0 %1886
      %1889 = vset.pattern.permute.xlu0 1
      %1890 = vperm.xlu0 %1889, %v1316
      %v1891 = vpop.permute.xlu0 %1890
      %1893 = vset.pattern.permute.xlu0 1
      %1894 = vperm.xlu0 %1893, %v1317
      %v1895 = vpop.permute.xlu0 %1894
      %1897 = vset.pattern.permute.xlu0 1
      %1898 = vperm.xlu0 %1897, %v1318
      %v1899 = vpop.permute.xlu0 %1898
      %1901 = vset.pattern.permute.xlu0 1
      %1902 = vperm.xlu0 %1901, %v1319
      %v1903 = vpop.permute.xlu0 %1902
      %1905 = vset.pattern.permute.xlu0 1
      %1906 = vperm.xlu0 %1905, %v1320
      %v1907 = vpop.permute.xlu0 %1906
      %1909 = vset.pattern.permute.xlu0 1
      %1910 = vperm.xlu0 %1909, %v1321
      %v1911 = vpop.permute.xlu0 %1910
      %1913 = vset.pattern.permute.xlu0 1
      %1914 = vperm.xlu0 %1913, %v1322
      %v1915 = vpop.permute.xlu0 %1914
      %v1917 = vsub.f32 %v1784, %v1791
      %v1918 = vsub.f32 %v1788, %v1791
      %v1919 = vsub.f32 %v1784, %v1795
      %v1920 = vsub.f32 %v1788, %v1795
      %v1921 = vsub.f32 %v1784, %v1799
      %v1922 = vsub.f32 %v1788, %v1799
      %v1923 = vsub.f32 %v1784, %v1803
      %v1924 = vsub.f32 %v1788, %v1803
      %v1925 = vsub.f32 %v1784, %v1807
      %v1926 = vsub.f32 %v1788, %v1807
      %v1927 = vsub.f32 %v1784, %v1811
      %v1928 = vsub.f32 %v1788, %v1811
      %v1929 = vsub.f32 %v1784, %v1815
      %v1930 = vsub.f32 %v1788, %v1815
      %v1931 = vsub.f32 %v1784, %v1819
      %v1932 = vsub.f32 %v1788, %v1819
      %v1933 = vsub.f32 %v1784, %v1823
      %v1934 = vsub.f32 %v1788, %v1823
      %v1935 = vsub.f32 %v1784, %v1827
      %v1936 = vsub.f32 %v1788, %v1827
      %v1937 = vsub.f32 %v1784, %v1831
      %v1938 = vsub.f32 %v1788, %v1831
      %v1939 = vsub.f32 %v1784, %v1835
      %v1940 = vsub.f32 %v1788, %v1835
      %v1941 = vsub.f32 %v1784, %v1839
      %v1942 = vsub.f32 %v1788, %v1839
      %v1943 = vsub.f32 %v1784, %v1843
      %v1944 = vsub.f32 %v1788, %v1843
      %v1945 = vsub.f32 %v1784, %v1847
      %v1946 = vsub.f32 %v1788, %v1847
      %v1947 = vsub.f32 %v1784, %v1851
      %v1948 = vsub.f32 %v1788, %v1851
      %v1949 = vsub.f32 %v1784, %v1855
      %v1950 = vsub.f32 %v1788, %v1855
      %v1951 = vsub.f32 %v1784, %v1859
      %v1952 = vsub.f32 %v1788, %v1859
      %v1953 = vsub.f32 %v1784, %v1863
      %v1954 = vsub.f32 %v1788, %v1863
      %v1955 = vsub.f32 %v1784, %v1867
      %v1956 = vsub.f32 %v1788, %v1867
      %v1957 = vsub.f32 %v1784, %v1871
      %v1958 = vsub.f32 %v1788, %v1871
      %v1959 = vsub.f32 %v1784, %v1875
      %v1960 = vsub.f32 %v1788, %v1875
      %v1961 = vsub.f32 %v1784, %v1879
      %v1962 = vsub.f32 %v1788, %v1879
      %v1963 = vsub.f32 %v1784, %v1883
      %v1964 = vsub.f32 %v1788, %v1883
      %v1965 = vsub.f32 %v1784, %v1887
      %v1966 = vsub.f32 %v1788, %v1887
      %v1967 = vsub.f32 %v1784, %v1891
      %v1968 = vsub.f32 %v1788, %v1891
      %v1969 = vsub.f32 %v1784, %v1895
      %v1970 = vsub.f32 %v1788, %v1895
      %v1971 = vsub.f32 %v1784, %v1899
      %v1972 = vsub.f32 %v1788, %v1899
      %v1973 = vsub.f32 %v1784, %v1903
      %v1974 = vsub.f32 %v1788, %v1903
      %v1975 = vsub.f32 %v1784, %v1907
      %v1976 = vsub.f32 %v1788, %v1907
      %v1977 = vsub.f32 %v1784, %v1911
      %v1978 = vsub.f32 %v1788, %v1911
      %v1979 = vsub.f32 %v1784, %v1915
      %v1980 = vsub.f32 %v1788, %v1915
      %v1981 = vadd.f32 %v1491, 1e-08
      %v1982 = vadd.f32 %v1492, 1e-08
      %v1983 = vadd.f32 %v1493, 1e-08
      %v1984 = vadd.f32 %v1494, 1e-08
      %v1985 = vadd.f32 %v1495, 1e-08
      %v1986 = vadd.f32 %v1496, 1e-08
      %v1987 = vadd.f32 %v1497, 1e-08
      %v1988 = vadd.f32 %v1498, 1e-08
      %v1989 = vadd.f32 %v1499, 1e-08
      %v1990 = vadd.f32 %v1500, 1e-08
      %v1991 = vadd.f32 %v1501, 1e-08
      %v1992 = vadd.f32 %v1502, 1e-08
      %v1993 = vadd.f32 %v1503, 1e-08
      %v1994 = vadd.f32 %v1504, 1e-08
      %v1995 = vadd.f32 %v1505, 1e-08
      %v1996 = vadd.f32 %v1506, 1e-08
      %v1997 = vadd.f32 %v1507, 1e-08
      %v1998 = vadd.f32 %v1508, 1e-08
      %v1999 = vadd.f32 %v1509, 1e-08
      %v2000 = vadd.f32 %v1510, 1e-08
      %v2001 = vadd.f32 %v1511, 1e-08
      %v2002 = vadd.f32 %v1512, 1e-08
      %v2003 = vadd.f32 %v1513, 1e-08
      %v2004 = vadd.f32 %v1514, 1e-08
      %v2005 = vadd.f32 %v1515, 1e-08
      %v2006 = vadd.f32 %v1516, 1e-08
      %v2007 = vadd.f32 %v1517, 1e-08
      %v2008 = vadd.f32 %v1518, 1e-08
      %v2009 = vadd.f32 %v1519, 1e-08
      %v2010 = vadd.f32 %v1520, 1e-08
      %v2011 = vadd.f32 %v1521, 1e-08
      %v2012 = vadd.f32 %v1522, 1e-08
      %v2013 = vadd.f32 %v1523, 1e-08
      %v2014 = vadd.f32 %v1524, 1e-08
      %v2015 = vadd.f32 %v1525, 1e-08
      %v2016 = vadd.f32 %v1526, 1e-08
      %v2017 = vadd.f32 %v1527, 1e-08
      %v2018 = vadd.f32 %v1528, 1e-08
      %v2019 = vadd.f32 %v1529, 1e-08
      %v2020 = vadd.f32 %v1530, 1e-08
      %v2021 = vadd.f32 %v1531, 1e-08
      %v2022 = vadd.f32 %v1532, 1e-08
      %v2023 = vadd.f32 %v1533, 1e-08
      %v2024 = vadd.f32 %v1534, 1e-08
      %v2025 = vadd.f32 %v1535, 1e-08
      %v2026 = vadd.f32 %v1536, 1e-08
      %v2027 = vadd.f32 %v1537, 1e-08
      %v2028 = vadd.f32 %v1538, 1e-08
      %v2029 = vadd.f32 %v1539, 1e-08
      %v2030 = vadd.f32 %v1540, 1e-08
      %v2031 = vadd.f32 %v1541, 1e-08
      %v2032 = vadd.f32 %v1542, 1e-08
      %v2033 = vadd.f32 %v1543, 1e-08
      %v2034 = vadd.f32 %v1544, 1e-08
      %v2035 = vadd.f32 %v1545, 1e-08
      %v2036 = vadd.f32 %v1546, 1e-08
      %v2037 = vadd.f32 %v1547, 1e-08
      %v2038 = vadd.f32 %v1548, 1e-08
      %v2039 = vadd.f32 %v1549, 1e-08
      %v2040 = vadd.f32 %v1550, 1e-08
      %v2041 = vadd.f32 %v1551, 1e-08
      %v2042 = vadd.f32 %v1552, 1e-08
      %v2043 = vadd.f32 %v1553, 1e-08
      %v2044 = vadd.f32 %v1554, 1e-08
      %v2045 = vrcp.pop %v1981
      %v2046 = vmul.f32 %v1917, %v2045
      %v2047 = vrcp.pop %v1982
      %v2048 = vmul.f32 %v1918, %v2047
      %v2049 = vrcp.pop %v1983
      %v2050 = vmul.f32 %v1919, %v2049
      %v2051 = vrcp.pop %v1984
      %v2052 = vmul.f32 %v1920, %v2051
      %v2053 = vrcp.pop %v1985
      %v2054 = vmul.f32 %v1921, %v2053
      %v2055 = vrcp.pop %v1986
      %v2056 = vmul.f32 %v1922, %v2055
      %v2057 = vrcp.pop %v1987
      %v2058 = vmul.f32 %v1923, %v2057
      %v2059 = vrcp.pop %v1988
      %v2060 = vmul.f32 %v1924, %v2059
      %v2061 = vrcp.pop %v1989
      %v2062 = vmul.f32 %v1925, %v2061
      %v2063 = vrcp.pop %v1990
      %v2064 = vmul.f32 %v1926, %v2063
      %v2065 = vrcp.pop %v1991
      %v2066 = vmul.f32 %v1927, %v2065
      %v2067 = vrcp.pop %v1992
      %v2068 = vmul.f32 %v1928, %v2067
      %v2069 = vrcp.pop %v1993
      %v2070 = vmul.f32 %v1929, %v2069
      %v2071 = vrcp.pop %v1994
      %v2072 = vmul.f32 %v1930, %v2071
      %v2073 = vrcp.pop %v1995
      %v2074 = vmul.f32 %v1931, %v2073
      %v2075 = vrcp.pop %v1996
      %v2076 = vmul.f32 %v1932, %v2075
      %v2077 = vrcp.pop %v1997
      %v2078 = vmul.f32 %v1933, %v2077
      %v2079 = vrcp.pop %v1998
      %v2080 = vmul.f32 %v1934, %v2079
      %v2081 = vrcp.pop %v1999
      %v2082 = vmul.f32 %v1935, %v2081
      %v2083 = vrcp.pop %v2000
      %v2084 = vmul.f32 %v1936, %v2083
      %v2085 = vrcp.pop %v2001
      %v2086 = vmul.f32 %v1937, %v2085
      %v2087 = vrcp.pop %v2002
      %v2088 = vmul.f32 %v1938, %v2087
      %v2089 = vrcp.pop %v2003
      %v2090 = vmul.f32 %v1939, %v2089
      %v2091 = vrcp.pop %v2004
      %v2092 = vmul.f32 %v1940, %v2091
      %v2093 = vrcp.pop %v2005
      %v2094 = vmul.f32 %v1941, %v2093
      %v2095 = vrcp.pop %v2006
      %v2096 = vmul.f32 %v1942, %v2095
      %v2097 = vrcp.pop %v2007
      %v2098 = vmul.f32 %v1943, %v2097
      %v2099 = vrcp.pop %v2008
      %v2100 = vmul.f32 %v1944, %v2099
      %v2101 = vrcp.pop %v2009
      %v2102 = vmul.f32 %v1945, %v2101
      %v2103 = vrcp.pop %v2010
      %v2104 = vmul.f32 %v1946, %v2103
      %v2105 = vrcp.pop %v2011
      %v2106 = vmul.f32 %v1947, %v2105
      %v2107 = vrcp.pop %v2012
      %v2108 = vmul.f32 %v1948, %v2107
      %v2109 = vrcp.pop %v2013
      %v2110 = vmul.f32 %v1949, %v2109
      %v2111 = vrcp.pop %v2014
      %v2112 = vmul.f32 %v1950, %v2111
      %v2113 = vrcp.pop %v2015
      %v2114 = vmul.f32 %v1951, %v2113
      %v2115 = vrcp.pop %v2016
      %v2116 = vmul.f32 %v1952, %v2115
      %v2117 = vrcp.pop %v2017
      %v2118 = vmul.f32 %v1953, %v2117
      %v2119 = vrcp.pop %v2018
      %v2120 = vmul.f32 %v1954, %v2119
      %v2121 = vrcp.pop %v2019
      %v2122 = vmul.f32 %v1955, %v2121
      %v2123 = vrcp.pop %v2020
      %v2124 = vmul.f32 %v1956, %v2123
      %v2125 = vrcp.pop %v2021
      %v2126 = vmul.f32 %v1957, %v2125
      %v2127 = vrcp.pop %v2022
      %v2128 = vmul.f32 %v1958, %v2127
      %v2129 = vrcp.pop %v2023
      %v2130 = vmul.f32 %v1959, %v2129
      %v2131 = vrcp.pop %v2024
      %v2132 = vmul.f32 %v1960, %v2131
      %v2133 = vrcp.pop %v2025
      %v2134 = vmul.f32 %v1961, %v2133
      %v2135 = vrcp.pop %v2026
      %v2136 = vmul.f32 %v1962, %v2135
      %v2137 = vrcp.pop %v2027
      %v2138 = vmul.f32 %v1963, %v2137
      %v2139 = vrcp.pop %v2028
      %v2140 = vmul.f32 %v1964, %v2139
      %v2141 = vrcp.pop %v2029
      %v2142 = vmul.f32 %v1965, %v2141
      %v2143 = vrcp.pop %v2030
      %v2144 = vmul.f32 %v1966, %v2143
      %v2145 = vrcp.pop %v2031
      %v2146 = vmul.f32 %v1967, %v2145
      %v2147 = vrcp.pop %v2032
      %v2148 = vmul.f32 %v1968, %v2147
      %v2149 = vrcp.pop %v2033
      %v2150 = vmul.f32 %v1969, %v2149
      %v2151 = vrcp.pop %v2034
      %v2152 = vmul.f32 %v1970, %v2151
      %v2153 = vrcp.pop %v2035
      %v2154 = vmul.f32 %v1971, %v2153
      %v2155 = vrcp.pop %v2036
      %v2156 = vmul.f32 %v1972, %v2155
      %v2157 = vrcp.pop %v2037
      %v2158 = vmul.f32 %v1973, %v2157
      %v2159 = vrcp.pop %v2038
      %v2160 = vmul.f32 %v1974, %v2159
      %v2161 = vrcp.pop %v2039
      %v2162 = vmul.f32 %v1975, %v2161
      %v2163 = vrcp.pop %v2040
      %v2164 = vmul.f32 %v1976, %v2163
      %v2165 = vrcp.pop %v2041
      %v2166 = vmul.f32 %v1977, %v2165
      %v2167 = vrcp.pop %v2042
      %v2168 = vmul.f32 %v1978, %v2167
      %v2169 = vrcp.pop %v2043
      %v2170 = vmul.f32 %v1979, %v2169
      %v2171 = vrcp.pop %v2044
      %v2172 = vmul.f32 %v1980, %v2171
      %2174 = vset.pattern.permute.xlu0 127
      %2175 = vperm.xlu0 %2174, %v1257
      %v2176 = vpop.permute.xlu0 %2175
      %v2178 = vsub.f32 %v2176, %v1255
      %v2179 = vsub.f32 %v2176, %v1257
      %v2180 = vadd.f32 %v1555, 1e-08
      %v2181 = vadd.f32 %v1556, 1e-08
      %v2184 = vrot.slane %v2180, 7
      %v2185 = vrot.slane %v2181, 7
      %v2188 = vrcp.pop %v2184
      %v2189 = vmul.f32 %v2178, %v2188
      %v2190 = vrcp.pop %v2185
      %v2191 = vmul.f32 %v2179, %v2190
      %2193 = vrot.lane.b32.xlu0 %v1788, 2
      %v2194 = vpop.permute.xlu0 %2193
      %v2196 = vsub.f32 %v1718, %v2194
      %v2197 = vsub.f32 %v1720, %v2194
      %v2198 = vsub.f32 %v1722, %v2194
      %v2199 = vsub.f32 %v1724, %v2194
      %v2200 = vsub.f32 %v1726, %v2194
      %v2201 = vsub.f32 %v1728, %v2194
      %v2202 = vsub.f32 %v1730, %v2194
      %v2203 = vsub.f32 %v1732, %v2194
      %v2204 = vsub.f32 %v1734, %v2194
      %v2205 = vsub.f32 %v1736, %v2194
      %v2206 = vsub.f32 %v1738, %v2194
      %v2207 = vsub.f32 %v1740, %v2194
      %v2208 = vsub.f32 %v1742, %v2194
      %v2209 = vsub.f32 %v1744, %v2194
      %v2210 = vsub.f32 %v1746, %v2194
      %v2211 = vsub.f32 %v1748, %v2194
      %v2212 = vsub.f32 %v1750, %v2194
      %v2213 = vsub.f32 %v1752, %v2194
      %v2214 = vsub.f32 %v1754, %v2194
      %v2215 = vsub.f32 %v1756, %v2194
      %v2216 = vsub.f32 %v1758, %v2194
      %v2217 = vsub.f32 %v1760, %v2194
      %v2218 = vsub.f32 %v1762, %v2194
      %v2219 = vsub.f32 %v1764, %v2194
      %v2220 = vsub.f32 %v1766, %v2194
      %v2221 = vsub.f32 %v1768, %v2194
      %v2222 = vsub.f32 %v1770, %v2194
      %v2223 = vsub.f32 %v1772, %v2194
      %v2224 = vsub.f32 %v1774, %v2194
      %v2225 = vsub.f32 %v1776, %v2194
      %v2226 = vsub.f32 %v1778, %v2194
      %v2227 = vsub.f32 %v1780, %v2194
      %v2228 = vrot.slane %v1257, 1
      %2229 = vrot.lane.b32.xlu0 %v2228, 1
      %v2230 = vpop.permute.xlu0 %2229
      %s2231 = vtos %v2230
      %v2232 = vstv %s2231
      %v2234 = vsub.f32 %v2046, %v2232
      %v2235 = vsub.f32 %v2048, %v2232
      %v2236 = vsub.f32 %v2050, %v2232
      %v2237 = vsub.f32 %v2052, %v2232
      %v2238 = vsub.f32 %v2054, %v2232
      %v2239 = vsub.f32 %v2056, %v2232
      %v2240 = vsub.f32 %v2058, %v2232
      %v2241 = vsub.f32 %v2060, %v2232
      %v2242 = vsub.f32 %v2062, %v2232
      %v2243 = vsub.f32 %v2064, %v2232
      %v2244 = vsub.f32 %v2066, %v2232
      %v2245 = vsub.f32 %v2068, %v2232
      %v2246 = vsub.f32 %v2070, %v2232
      %v2247 = vsub.f32 %v2072, %v2232
      %v2248 = vsub.f32 %v2074, %v2232
      %v2249 = vsub.f32 %v2076, %v2232
      %v2250 = vsub.f32 %v2078, %v2232
      %v2251 = vsub.f32 %v2080, %v2232
      %v2252 = vsub.f32 %v2082, %v2232
      %v2253 = vsub.f32 %v2084, %v2232
      %v2254 = vsub.f32 %v2086, %v2232
      %v2255 = vsub.f32 %v2088, %v2232
      %v2256 = vsub.f32 %v2090, %v2232
      %v2257 = vsub.f32 %v2092, %v2232
      %v2258 = vsub.f32 %v2094, %v2232
      %v2259 = vsub.f32 %v2096, %v2232
      %v2260 = vsub.f32 %v2098, %v2232
      %v2261 = vsub.f32 %v2100, %v2232
      %v2262 = vsub.f32 %v2102, %v2232
      %v2263 = vsub.f32 %v2104, %v2232
      %v2264 = vsub.f32 %v2106, %v2232
      %v2265 = vsub.f32 %v2108, %v2232
      %v2266 = vsub.f32 %v2110, %v2232
      %v2267 = vsub.f32 %v2112, %v2232
      %v2268 = vsub.f32 %v2114, %v2232
      %v2269 = vsub.f32 %v2116, %v2232
      %v2270 = vsub.f32 %v2118, %v2232
      %v2271 = vsub.f32 %v2120, %v2232
      %v2272 = vsub.f32 %v2122, %v2232
      %v2273 = vsub.f32 %v2124, %v2232
      %v2274 = vsub.f32 %v2126, %v2232
      %v2275 = vsub.f32 %v2128, %v2232
      %v2276 = vsub.f32 %v2130, %v2232
      %v2277 = vsub.f32 %v2132, %v2232
      %v2278 = vsub.f32 %v2134, %v2232
      %v2279 = vsub.f32 %v2136, %v2232
      %v2280 = vsub.f32 %v2138, %v2232
      %v2281 = vsub.f32 %v2140, %v2232
      %v2282 = vsub.f32 %v2142, %v2232
      %v2283 = vsub.f32 %v2144, %v2232
      %v2284 = vsub.f32 %v2146, %v2232
      %v2285 = vsub.f32 %v2148, %v2232
      %v2286 = vsub.f32 %v2150, %v2232
      %v2287 = vsub.f32 %v2152, %v2232
      %v2288 = vsub.f32 %v2154, %v2232
      %v2289 = vsub.f32 %v2156, %v2232
      %v2290 = vsub.f32 %v2158, %v2232
      %v2291 = vsub.f32 %v2160, %v2232
      %v2292 = vsub.f32 %v2162, %v2232
      %v2293 = vsub.f32 %v2164, %v2232
      %v2294 = vsub.f32 %v2166, %v2232
      %v2295 = vsub.f32 %v2168, %v2232
      %v2296 = vsub.f32 %v2170, %v2232
      %v2297 = vsub.f32 %v2172, %v2232
      %v2298 = vsub.f32 %v2189, %v2176
      %v2299 = vsub.f32 %v2191, %v2176
      %2332 = vrot.lane.b32.xlu0 %v2196, 127
      %v2333 = vpop.permute.xlu0 %2332
      %2334 = vrot.lane.b32.xlu0 %v2197, 127
      %v2335 = vpop.permute.xlu0 %2334
      %2336 = vrot.lane.b32.xlu0 %v2198, 127
      %v2337 = vpop.permute.xlu0 %2336
      %2338 = vrot.lane.b32.xlu0 %v2199, 127
      %v2339 = vpop.permute.xlu0 %2338
      %2340 = vrot.lane.b32.xlu0 %v2200, 127
      %v2341 = vpop.permute.xlu0 %2340
      %2342 = vrot.lane.b32.xlu0 %v2201, 127
      %v2343 = vpop.permute.xlu0 %2342
      %2344 = vrot.lane.b32.xlu0 %v2202, 127
      %v2345 = vpop.permute.xlu0 %2344
      %2346 = vrot.lane.b32.xlu0 %v2203, 127
      %v2347 = vpop.permute.xlu0 %2346
      %2348 = vrot.lane.b32.xlu0 %v2204, 127
      %v2349 = vpop.permute.xlu0 %2348
      %2350 = vrot.lane.b32.xlu0 %v2205, 127
      %v2351 = vpop.permute.xlu0 %2350
      %2352 = vrot.lane.b32.xlu0 %v2206, 127
      %v2353 = vpop.permute.xlu0 %2352
      %2354 = vrot.lane.b32.xlu0 %v2207, 127
      %v2355 = vpop.permute.xlu0 %2354
      %2356 = vrot.lane.b32.xlu0 %v2208, 127
      %v2357 = vpop.permute.xlu0 %2356
      %2358 = vrot.lane.b32.xlu0 %v2209, 127
      %v2359 = vpop.permute.xlu0 %2358
      %2360 = vrot.lane.b32.xlu0 %v2210, 127
      %v2361 = vpop.permute.xlu0 %2360
      %2362 = vrot.lane.b32.xlu0 %v2211, 127
      %v2363 = vpop.permute.xlu0 %2362
      %2364 = vrot.lane.b32.xlu0 %v2212, 127
      %v2365 = vpop.permute.xlu0 %2364
      %2366 = vrot.lane.b32.xlu0 %v2213, 127
      %v2367 = vpop.permute.xlu0 %2366
      %2368 = vrot.lane.b32.xlu0 %v2214, 127
      %v2369 = vpop.permute.xlu0 %2368
      %2370 = vrot.lane.b32.xlu0 %v2215, 127
      %v2371 = vpop.permute.xlu0 %2370
      %2372 = vrot.lane.b32.xlu0 %v2216, 127
      %v2373 = vpop.permute.xlu0 %2372
      %2374 = vrot.lane.b32.xlu0 %v2217, 127
      %v2375 = vpop.permute.xlu0 %2374
      %2376 = vrot.lane.b32.xlu0 %v2218, 127
      %v2377 = vpop.permute.xlu0 %2376
      %2378 = vrot.lane.b32.xlu0 %v2219, 127
      %v2379 = vpop.permute.xlu0 %2378
      %2380 = vrot.lane.b32.xlu0 %v2220, 127
      %v2381 = vpop.permute.xlu0 %2380
      %2382 = vrot.lane.b32.xlu0 %v2221, 127
      %v2383 = vpop.permute.xlu0 %2382
      %2384 = vrot.lane.b32.xlu0 %v2222, 127
      %v2385 = vpop.permute.xlu0 %2384
      %2386 = vrot.lane.b32.xlu0 %v2223, 127
      %v2387 = vpop.permute.xlu0 %2386
      %2388 = vrot.lane.b32.xlu0 %v2224, 127
      %v2389 = vpop.permute.xlu0 %2388
      %2390 = vrot.lane.b32.xlu0 %v2225, 127
      %v2391 = vpop.permute.xlu0 %2390
      %2392 = vrot.lane.b32.xlu0 %v2226, 127
      %v2393 = vpop.permute.xlu0 %2392
      %2394 = vrot.lane.b32.xlu0 %v2227, 127
      %v2395 = vpop.permute.xlu0 %2394
      %v2428 = vmul.f32 %v1275, %v2333
      %v2429 = vmul.f32 %v1276, %v2335
      %v2430 = vmul.f32 %v1277, %v2337
      %v2431 = vmul.f32 %v1278, %v2339
      %v2432 = vmul.f32 %v1279, %v2341
      %v2433 = vmul.f32 %v1280, %v2343
      %v2434 = vmul.f32 %v1281, %v2345
      %v2435 = vmul.f32 %v1282, %v2347
      %v2436 = vmul.f32 %v1283, %v2349
      %v2437 = vmul.f32 %v1284, %v2351
      %v2438 = vmul.f32 %v1285, %v2353
      %v2439 = vmul.f32 %v1286, %v2355
      %v2440 = vmul.f32 %v1287, %v2357
      %v2441 = vmul.f32 %v1288, %v2359
      %v2442 = vmul.f32 %v1289, %v2361
      %v2443 = vmul.f32 %v1290, %v2363
      %v2444 = vmul.f32 %v1307, %v2365
      %v2445 = vmul.f32 %v1308, %v2367
      %v2446 = vmul.f32 %v1309, %v2369
      %v2447 = vmul.f32 %v1310, %v2371
      %v2448 = vmul.f32 %v1311, %v2373
      %v2449 = vmul.f32 %v1312, %v2375
      %v2450 = vmul.f32 %v1313, %v2377
      %v2451 = vmul.f32 %v1314, %v2379
      %v2452 = vmul.f32 %v1315, %v2381
      %v2453 = vmul.f32 %v1316, %v2383
      %v2454 = vmul.f32 %v1317, %v2385
      %v2455 = vmul.f32 %v1318, %v2387
      %v2456 = vmul.f32 %v1319, %v2389
      %v2457 = vmul.f32 %v1320, %v2391
      %v2458 = vmul.f32 %v1321, %v2393
      %v2459 = vmul.f32 %v1322, %v2395
      %v2460 = vmul.f32 %v2428, %v2333
      %v2461 = vmul.f32 %v2429, %v2335
      %v2462 = vmul.f32 %v2430, %v2337
      %v2463 = vmul.f32 %v2431, %v2339
      %v2464 = vmul.f32 %v2432, %v2341
      %v2465 = vmul.f32 %v2433, %v2343
      %v2466 = vmul.f32 %v2434, %v2345
      %v2467 = vmul.f32 %v2435, %v2347
      %v2468 = vmul.f32 %v2436, %v2349
      %v2469 = vmul.f32 %v2437, %v2351
      %v2470 = vmul.f32 %v2438, %v2353
      %v2471 = vmul.f32 %v2439, %v2355
      %v2472 = vmul.f32 %v2440, %v2357
      %v2473 = vmul.f32 %v2441, %v2359
      %v2474 = vmul.f32 %v2442, %v2361
      %v2475 = vmul.f32 %v2443, %v2363
      %v2476 = vmul.f32 %v2444, %v2365
      %v2477 = vmul.f32 %v2445, %v2367
      %v2478 = vmul.f32 %v2446, %v2369
      %v2479 = vmul.f32 %v2447, %v2371
      %v2480 = vmul.f32 %v2448, %v2373
      %v2481 = vmul.f32 %v2449, %v2375
      %v2482 = vmul.f32 %v2450, %v2377
      %v2483 = vmul.f32 %v2451, %v2379
      %v2484 = vmul.f32 %v2452, %v2381
      %v2485 = vmul.f32 %v2453, %v2383
      %v2486 = vmul.f32 %v2454, %v2385
      %v2487 = vmul.f32 %v2455, %v2387
      %v2488 = vmul.f32 %v2456, %v2389
      %v2489 = vmul.f32 %v2457, %v2391
      %v2490 = vmul.f32 %v2458, %v2393
      %v2491 = vmul.f32 %v2459, %v2395
      %v2492 = vmul.f32 %v1491, %v2234
      %v2493 = vmul.f32 %v1492, %v2235
      %v2494 = vmul.f32 %v1493, %v2236
      %v2495 = vmul.f32 %v1494, %v2237
      %v2496 = vmul.f32 %v1495, %v2238
      %v2497 = vmul.f32 %v1496, %v2239
      %v2498 = vmul.f32 %v1497, %v2240
      %v2499 = vmul.f32 %v1498, %v2241
      %v2500 = vmul.f32 %v1499, %v2242
      %v2501 = vmul.f32 %v1500, %v2243
      %v2502 = vmul.f32 %v1501, %v2244
      %v2503 = vmul.f32 %v1502, %v2245
      %v2504 = vmul.f32 %v1503, %v2246
      %v2505 = vmul.f32 %v1504, %v2247
      %v2506 = vmul.f32 %v1505, %v2248
      %v2507 = vmul.f32 %v1506, %v2249
      %v2508 = vmul.f32 %v1507, %v2250
      %v2509 = vmul.f32 %v1508, %v2251
      %v2510 = vmul.f32 %v1509, %v2252
      %v2511 = vmul.f32 %v1510, %v2253
      %v2512 = vmul.f32 %v1511, %v2254
      %v2513 = vmul.f32 %v1512, %v2255
      %v2514 = vmul.f32 %v1513, %v2256
      %v2515 = vmul.f32 %v1514, %v2257
      %v2516 = vmul.f32 %v1515, %v2258
      %v2517 = vmul.f32 %v1516, %v2259
      %v2518 = vmul.f32 %v1517, %v2260
      %v2519 = vmul.f32 %v1518, %v2261
      %v2520 = vmul.f32 %v1519, %v2262
      %v2521 = vmul.f32 %v1520, %v2263
      %v2522 = vmul.f32 %v1521, %v2264
      %v2523 = vmul.f32 %v1522, %v2265
      %v2524 = vmul.f32 %v1523, %v2266
      %v2525 = vmul.f32 %v1524, %v2267
      %v2526 = vmul.f32 %v1525, %v2268
      %v2527 = vmul.f32 %v1526, %v2269
      %v2528 = vmul.f32 %v1527, %v2270
      %v2529 = vmul.f32 %v1528, %v2271
      %v2530 = vmul.f32 %v1529, %v2272
      %v2531 = vmul.f32 %v1530, %v2273
      %v2532 = vmul.f32 %v1531, %v2274
      %v2533 = vmul.f32 %v1532, %v2275
      %v2534 = vmul.f32 %v1533, %v2276
      %v2535 = vmul.f32 %v1534, %v2277
      %v2536 = vmul.f32 %v1535, %v2278
      %v2537 = vmul.f32 %v1536, %v2279
      %v2538 = vmul.f32 %v1537, %v2280
      %v2539 = vmul.f32 %v1538, %v2281
      %v2540 = vmul.f32 %v1539, %v2282
      %v2541 = vmul.f32 %v1540, %v2283
      %v2542 = vmul.f32 %v1541, %v2284
      %v2543 = vmul.f32 %v1542, %v2285
      %v2544 = vmul.f32 %v1543, %v2286
      %v2545 = vmul.f32 %v1544, %v2287
      %v2546 = vmul.f32 %v1545, %v2288
      %v2547 = vmul.f32 %v1546, %v2289
      %v2548 = vmul.f32 %v1547, %v2290
      %v2549 = vmul.f32 %v1548, %v2291
      %v2550 = vmul.f32 %v1549, %v2292
      %v2551 = vmul.f32 %v1550, %v2293
      %v2552 = vmul.f32 %v1551, %v2294
      %v2553 = vmul.f32 %v1552, %v2295
      %v2554 = vmul.f32 %v1553, %v2296
      %v2555 = vmul.f32 %v1554, %v2297
      %v2556 = vmul.f32 %v2492, %v2234
      %v2557 = vmul.f32 %v2493, %v2235
      %v2558 = vmul.f32 %v2494, %v2236
      %v2559 = vmul.f32 %v2495, %v2237
      %v2560 = vmul.f32 %v2496, %v2238
      %v2561 = vmul.f32 %v2497, %v2239
      %v2562 = vmul.f32 %v2498, %v2240
      %v2563 = vmul.f32 %v2499, %v2241
      %v2564 = vmul.f32 %v2500, %v2242
      %v2565 = vmul.f32 %v2501, %v2243
      %v2566 = vmul.f32 %v2502, %v2244
      %v2567 = vmul.f32 %v2503, %v2245
      %v2568 = vmul.f32 %v2504, %v2246
      %v2569 = vmul.f32 %v2505, %v2247
      %v2570 = vmul.f32 %v2506, %v2248
      %v2571 = vmul.f32 %v2507, %v2249
      %v2572 = vmul.f32 %v2508, %v2250
      %v2573 = vmul.f32 %v2509, %v2251
      %v2574 = vmul.f32 %v2510, %v2252
      %v2575 = vmul.f32 %v2511, %v2253
      %v2576 = vmul.f32 %v2512, %v2254
      %v2577 = vmul.f32 %v2513, %v2255
      %v2578 = vmul.f32 %v2514, %v2256
      %v2579 = vmul.f32 %v2515, %v2257
      %v2580 = vmul.f32 %v2516, %v2258
      %v2581 = vmul.f32 %v2517, %v2259
      %v2582 = vmul.f32 %v2518, %v2260
      %v2583 = vmul.f32 %v2519, %v2261
      %v2584 = vmul.f32 %v2520, %v2262
      %v2585 = vmul.f32 %v2521, %v2263
      %v2586 = vmul.f32 %v2522, %v2264
      %v2587 = vmul.f32 %v2523, %v2265
      %v2588 = vmul.f32 %v2524, %v2266
      %v2589 = vmul.f32 %v2525, %v2267
      %v2590 = vmul.f32 %v2526, %v2268
      %v2591 = vmul.f32 %v2527, %v2269
      %v2592 = vmul.f32 %v2528, %v2270
      %v2593 = vmul.f32 %v2529, %v2271
      %v2594 = vmul.f32 %v2530, %v2272
      %v2595 = vmul.f32 %v2531, %v2273
      %v2596 = vmul.f32 %v2532, %v2274
      %v2597 = vmul.f32 %v2533, %v2275
      %v2598 = vmul.f32 %v2534, %v2276
      %v2599 = vmul.f32 %v2535, %v2277
      %v2600 = vmul.f32 %v2536, %v2278
      %v2601 = vmul.f32 %v2537, %v2279
      %v2602 = vmul.f32 %v2538, %v2280
      %v2603 = vmul.f32 %v2539, %v2281
      %v2604 = vmul.f32 %v2540, %v2282
      %v2605 = vmul.f32 %v2541, %v2283
      %v2606 = vmul.f32 %v2542, %v2284
      %v2607 = vmul.f32 %v2543, %v2285
      %v2608 = vmul.f32 %v2544, %v2286
      %v2609 = vmul.f32 %v2545, %v2287
      %v2610 = vmul.f32 %v2546, %v2288
      %v2611 = vmul.f32 %v2547, %v2289
      %v2612 = vmul.f32 %v2548, %v2290
      %v2613 = vmul.f32 %v2549, %v2291
      %v2614 = vmul.f32 %v2550, %v2292
      %v2615 = vmul.f32 %v2551, %v2293
      %v2616 = vmul.f32 %v2552, %v2294
      %v2617 = vmul.f32 %v2553, %v2295
      %v2618 = vmul.f32 %v2554, %v2296
      %v2619 = vmul.f32 %v2555, %v2297
      %2621 = vset.pattern.permute.xlu0 0
      %2622 = vperm.xlu0 %2621, %v2460
      %v2623 = vpop.permute.xlu0 %2622
      %2626 = vset.pattern.permute.xlu0 0
      %2627 = vperm.xlu0 %2626, %v2461
      %v2628 = vpop.permute.xlu0 %2627
      %2631 = vset.pattern.permute.xlu0 0
      %2632 = vperm.xlu0 %2631, %v2462
      %v2633 = vpop.permute.xlu0 %2632
      %2636 = vset.pattern.permute.xlu0 0
      %2637 = vperm.xlu0 %2636, %v2463
      %v2638 = vpop.permute.xlu0 %2637
      %2641 = vset.pattern.permute.xlu0 0
      %2642 = vperm.xlu0 %2641, %v2464
      %v2643 = vpop.permute.xlu0 %2642
      %2646 = vset.pattern.permute.xlu0 0
      %2647 = vperm.xlu0 %2646, %v2465
      %v2648 = vpop.permute.xlu0 %2647
      %2651 = vset.pattern.permute.xlu0 0
      %2652 = vperm.xlu0 %2651, %v2466
      %v2653 = vpop.permute.xlu0 %2652
      %2656 = vset.pattern.permute.xlu0 0
      %2657 = vperm.xlu0 %2656, %v2467
      %v2658 = vpop.permute.xlu0 %2657
      %2661 = vset.pattern.permute.xlu0 0
      %2662 = vperm.xlu0 %2661, %v2468
      %v2663 = vpop.permute.xlu0 %2662
      %2666 = vset.pattern.permute.xlu0 0
      %2667 = vperm.xlu0 %2666, %v2469
      %v2668 = vpop.permute.xlu0 %2667
      %2671 = vset.pattern.permute.xlu0 0
      %2672 = vperm.xlu0 %2671, %v2470
      %v2673 = vpop.permute.xlu0 %2672
      %2676 = vset.pattern.permute.xlu0 0
      %2677 = vperm.xlu0 %2676, %v2471
      %v2678 = vpop.permute.xlu0 %2677
      %2681 = vset.pattern.permute.xlu0 0
      %2682 = vperm.xlu0 %2681, %v2472
      %v2683 = vpop.permute.xlu0 %2682
      %2686 = vset.pattern.permute.xlu0 0
      %2687 = vperm.xlu0 %2686, %v2473
      %v2688 = vpop.permute.xlu0 %2687
      %2691 = vset.pattern.permute.xlu0 0
      %2692 = vperm.xlu0 %2691, %v2474
      %v2693 = vpop.permute.xlu0 %2692
      %2696 = vset.pattern.permute.xlu0 0
      %2697 = vperm.xlu0 %2696, %v2475
      %v2698 = vpop.permute.xlu0 %2697
      %2701 = vset.pattern.permute.xlu0 0
      %2702 = vperm.xlu0 %2701, %v2476
      %v2703 = vpop.permute.xlu0 %2702
      %2706 = vset.pattern.permute.xlu0 0
      %2707 = vperm.xlu0 %2706, %v2477
      %v2708 = vpop.permute.xlu0 %2707
      %2711 = vset.pattern.permute.xlu0 0
      %2712 = vperm.xlu0 %2711, %v2478
      %v2713 = vpop.permute.xlu0 %2712
      %2716 = vset.pattern.permute.xlu0 0
      %2717 = vperm.xlu0 %2716, %v2479
      %v2718 = vpop.permute.xlu0 %2717
      %2721 = vset.pattern.permute.xlu0 0
      %2722 = vperm.xlu0 %2721, %v2480
      %v2723 = vpop.permute.xlu0 %2722
      %2726 = vset.pattern.permute.xlu0 0
      %2727 = vperm.xlu0 %2726, %v2481
      %v2728 = vpop.permute.xlu0 %2727
      %2731 = vset.pattern.permute.xlu0 0
      %2732 = vperm.xlu0 %2731, %v2482
      %v2733 = vpop.permute.xlu0 %2732
      %2736 = vset.pattern.permute.xlu0 0
      %2737 = vperm.xlu0 %2736, %v2483
      %v2738 = vpop.permute.xlu0 %2737
      %2741 = vset.pattern.permute.xlu0 0
      %2742 = vperm.xlu0 %2741, %v2484
      %v2743 = vpop.permute.xlu0 %2742
      %2746 = vset.pattern.permute.xlu0 0
      %2747 = vperm.xlu0 %2746, %v2485
      %v2748 = vpop.permute.xlu0 %2747
      %2751 = vset.pattern.permute.xlu0 0
      %2752 = vperm.xlu0 %2751, %v2486
      %v2753 = vpop.permute.xlu0 %2752
      %2756 = vset.pattern.permute.xlu0 0
      %2757 = vperm.xlu0 %2756, %v2487
      %v2758 = vpop.permute.xlu0 %2757
      %2761 = vset.pattern.permute.xlu0 0
      %2762 = vperm.xlu0 %2761, %v2488
      %v2763 = vpop.permute.xlu0 %2762
      %2766 = vset.pattern.permute.xlu0 0
      %2767 = vperm.xlu0 %2766, %v2489
      %v2768 = vpop.permute.xlu0 %2767
      %2771 = vset.pattern.permute.xlu0 0
      %2772 = vperm.xlu0 %2771, %v2490
      %v2773 = vpop.permute.xlu0 %2772
      %2776 = vset.pattern.permute.xlu0 0
      %2777 = vperm.xlu0 %2776, %v2491
      %v2778 = vpop.permute.xlu0 %2777
      %v2780 = vadd.f32 %v2623, %v2556
      %v2781 = vadd.f32 %v2623, %v2557
      %v2782 = vadd.f32 %v2628, %v2558
      %v2783 = vadd.f32 %v2628, %v2559
      %v2784 = vadd.f32 %v2633, %v2560
      %v2785 = vadd.f32 %v2633, %v2561
      %v2786 = vadd.f32 %v2638, %v2562
      %v2787 = vadd.f32 %v2638, %v2563
      %v2788 = vadd.f32 %v2643, %v2564
      %v2789 = vadd.f32 %v2643, %v2565
      %v2790 = vadd.f32 %v2648, %v2566
      %v2791 = vadd.f32 %v2648, %v2567
      %v2792 = vadd.f32 %v2653, %v2568
      %v2793 = vadd.f32 %v2653, %v2569
      %v2794 = vadd.f32 %v2658, %v2570
      %v2795 = vadd.f32 %v2658, %v2571
      %v2796 = vadd.f32 %v2663, %v2572
      %v2797 = vadd.f32 %v2663, %v2573
      %v2798 = vadd.f32 %v2668, %v2574
      %v2799 = vadd.f32 %v2668, %v2575
      %v2800 = vadd.f32 %v2673, %v2576
      %v2801 = vadd.f32 %v2673, %v2577
      %v2802 = vadd.f32 %v2678, %v2578
      %v2803 = vadd.f32 %v2678, %v2579
      %v2804 = vadd.f32 %v2683, %v2580
      %v2805 = vadd.f32 %v2683, %v2581
      %v2806 = vadd.f32 %v2688, %v2582
      %v2807 = vadd.f32 %v2688, %v2583
      %v2808 = vadd.f32 %v2693, %v2584
      %v2809 = vadd.f32 %v2693, %v2585
      %v2810 = vadd.f32 %v2698, %v2586
      %v2811 = vadd.f32 %v2698, %v2587
      %v2812 = vadd.f32 %v2703, %v2588
      %v2813 = vadd.f32 %v2703, %v2589
      %v2814 = vadd.f32 %v2708, %v2590
      %v2815 = vadd.f32 %v2708, %v2591
      %v2816 = vadd.f32 %v2713, %v2592
      %v2817 = vadd.f32 %v2713, %v2593
      %v2818 = vadd.f32 %v2718, %v2594
      %v2819 = vadd.f32 %v2718, %v2595
      %v2820 = vadd.f32 %v2723, %v2596
      %v2821 = vadd.f32 %v2723, %v2597
      %v2822 = vadd.f32 %v2728, %v2598
      %v2823 = vadd.f32 %v2728, %v2599
      %v2824 = vadd.f32 %v2733, %v2600
      %v2825 = vadd.f32 %v2733, %v2601
      %v2826 = vadd.f32 %v2738, %v2602
      %v2827 = vadd.f32 %v2738, %v2603
      %v2828 = vadd.f32 %v2743, %v2604
      %v2829 = vadd.f32 %v2743, %v2605
      %v2830 = vadd.f32 %v2748, %v2606
      %v2831 = vadd.f32 %v2748, %v2607
      %v2832 = vadd.f32 %v2753, %v2608
      %v2833 = vadd.f32 %v2753, %v2609
      %v2834 = vadd.f32 %v2758, %v2610
      %v2835 = vadd.f32 %v2758, %v2611
      %v2836 = vadd.f32 %v2763, %v2612
      %v2837 = vadd.f32 %v2763, %v2613
      %v2838 = vadd.f32 %v2768, %v2614
      %v2839 = vadd.f32 %v2768, %v2615
      %v2840 = vadd.f32 %v2773, %v2616
      %v2841 = vadd.f32 %v2773, %v2617
      %v2842 = vadd.f32 %v2778, %v2618
      %v2843 = vadd.f32 %v2778, %v2619
      %v2846 = vrot.slane %v2298, 1
      %v2847 = vrot.slane %v2299, 1
      %v2850 = vmul.f32 %v1555, %v2846
      %v2851 = vmul.f32 %v1556, %v2847
      %v2852 = vmul.f32 %v2850, %v2846
      %v2853 = vmul.f32 %v2851, %v2847
      %v2854 = vlaneseq
      %v2855 = vshrl.u32 %v2854, 7
      %v2856 = vsub.s32 0, %v2855
      %v2857 = vrot.slane %v2852, %v2856
      %v2858 = vlaneseq
      %v2859 = vshrl.u32 %v2858, 7
      %v2860 = vsub.s32 0, %v2859
      %v2861 = vrot.slane %v2853, %v2860
      %v2862 = vadd.f32 %v2780, %v2857
      %v2863 = vadd.f32 %v2781, %v2861
      %v2864 = vadd.f32 %v2782, %v2857
      %v2865 = vadd.f32 %v2783, %v2861
      %v2866 = vadd.f32 %v2784, %v2857
      %v2867 = vadd.f32 %v2785, %v2861
      %v2868 = vadd.f32 %v2786, %v2857
      %v2869 = vadd.f32 %v2787, %v2861
      %v2870 = vadd.f32 %v2788, %v2857
      %v2871 = vadd.f32 %v2789, %v2861
      %v2872 = vadd.f32 %v2790, %v2857
      %v2873 = vadd.f32 %v2791, %v2861
      %v2874 = vadd.f32 %v2792, %v2857
      %v2875 = vadd.f32 %v2793, %v2861
      %v2876 = vadd.f32 %v2794, %v2857
      %v2877 = vadd.f32 %v2795, %v2861
      %v2878 = vadd.f32 %v2796, %v2857
      %v2879 = vadd.f32 %v2797, %v2861
      %v2880 = vadd.f32 %v2798, %v2857
      %v2881 = vadd.f32 %v2799, %v2861
      %v2882 = vadd.f32 %v2800, %v2857
      %v2883 = vadd.f32 %v2801, %v2861
      %v2884 = vadd.f32 %v2802, %v2857
      %v2885 = vadd.f32 %v2803, %v2861
      %v2886 = vadd.f32 %v2804, %v2857
      %v2887 = vadd.f32 %v2805, %v2861
      %v2888 = vadd.f32 %v2806, %v2857
      %v2889 = vadd.f32 %v2807, %v2861
      %v2890 = vadd.f32 %v2808, %v2857
      %v2891 = vadd.f32 %v2809, %v2861
      %v2892 = vadd.f32 %v2810, %v2857
      %v2893 = vadd.f32 %v2811, %v2861
      %v2894 = vadd.f32 %v2812, %v2857
      %v2895 = vadd.f32 %v2813, %v2861
      %v2896 = vadd.f32 %v2814, %v2857
      %v2897 = vadd.f32 %v2815, %v2861
      %v2898 = vadd.f32 %v2816, %v2857
      %v2899 = vadd.f32 %v2817, %v2861
      %v2900 = vadd.f32 %v2818, %v2857
      %v2901 = vadd.f32 %v2819, %v2861
      %v2902 = vadd.f32 %v2820, %v2857
      %v2903 = vadd.f32 %v2821, %v2861
      %v2904 = vadd.f32 %v2822, %v2857
      %v2905 = vadd.f32 %v2823, %v2861
      %v2906 = vadd.f32 %v2824, %v2857
      %v2907 = vadd.f32 %v2825, %v2861
      %v2908 = vadd.f32 %v2826, %v2857
      %v2909 = vadd.f32 %v2827, %v2861
      %v2910 = vadd.f32 %v2828, %v2857
      %v2911 = vadd.f32 %v2829, %v2861
      %v2912 = vadd.f32 %v2830, %v2857
      %v2913 = vadd.f32 %v2831, %v2861
      %v2914 = vadd.f32 %v2832, %v2857
      %v2915 = vadd.f32 %v2833, %v2861
      %v2916 = vadd.f32 %v2834, %v2857
      %v2917 = vadd.f32 %v2835, %v2861
      %v2918 = vadd.f32 %v2836, %v2857
      %v2919 = vadd.f32 %v2837, %v2861
      %v2920 = vadd.f32 %v2838, %v2857
      %v2921 = vadd.f32 %v2839, %v2861
      %v2922 = vadd.f32 %v2840, %v2857
      %v2923 = vadd.f32 %v2841, %v2861
      %v2924 = vadd.f32 %v2842, %v2857
      %v2925 = vadd.f32 %v2843, %v2861
      %vm2926 = vcmp.lt.s32.totalorder %v208, 254
      %vm2927 = vcmp.lt.s32.totalorder %v209, 254
      %vm2928 = vcmp.lt.s32.totalorder %v210, 254
      %vm2929 = vcmp.lt.s32.totalorder %v613, 254
      %vm2930 = vcmp.lt.s32.totalorder %v614, 254
      %vm2931 = vcmp.lt.s32.totalorder %v615, 254
      %vm2932 = vcmp.lt.s32.totalorder %v616, 254
      %vm2933 = vcmp.lt.s32.totalorder %v617, 254
      %vm2934 = vcmp.lt.s32.totalorder %v618, 254
      %vm2935 = vcmp.lt.s32.totalorder %v619, 254
      %vm2936 = vcmp.lt.s32.totalorder %v620, 254
      %vm2937 = vcmp.lt.s32.totalorder %v621, 254
      %vm2938 = vcmp.lt.s32.totalorder %v622, 254
      %vm2939 = vcmp.lt.s32.totalorder %v623, 254
      %vm2940 = vcmp.lt.s32.totalorder %v624, 254
      %vm2941 = vcmp.lt.s32.totalorder %v625, 254
      %vm2942 = vcmp.lt.s32.totalorder %v1034, 254
      %vm2943 = vcmp.lt.s32.totalorder %v1035, 254
      %vm2944 = vcmp.lt.s32.totalorder %v1036, 254
      %vm2945 = vcmp.lt.s32.totalorder %v1037, 254
      %vm2946 = vcmp.lt.s32.totalorder %v1038, 254
      %vm2947 = vcmp.lt.s32.totalorder %v1039, 254
      %vm2948 = vcmp.lt.s32.totalorder %v1040, 254
      %vm2949 = vcmp.lt.s32.totalorder %v1041, 254
      %vm2950 = vcmp.lt.s32.totalorder %v1042, 254
      %vm2951 = vcmp.lt.s32.totalorder %v1043, 254
      %vm2952 = vcmp.lt.s32.totalorder %v1044, 254
      %vm2953 = vcmp.lt.s32.totalorder %v1045, 254
      %vm2954 = vcmp.lt.s32.totalorder %v1046, 254
      %vm2955 = vcmp.lt.s32.totalorder %v1047, 254
      %vm2956 = vcmp.lt.s32.totalorder %v1048, 254
      %vm2957 = vcmp.lt.s32.totalorder %v1049, 254
      %vm2958 = vcmp.lt.s32.totalorder %v212, 254
      %vm2959 = vcmp.lt.s32.totalorder %v912, 254
      %vm2960 = vmand %vm2926, %vm2958
      %vm2961 = vmand %vm2926, %vm2959
      %vm2962 = vmand %vm2927, %vm2958
      %vm2963 = vmand %vm2927, %vm2959
      %vm2964 = vmand %vm2928, %vm2958
      %vm2965 = vmand %vm2928, %vm2959
      %vm2966 = vmand %vm2929, %vm2958
      %vm2967 = vmand %vm2929, %vm2959
      %vm2968 = vmand %vm2930, %vm2958
      %vm2969 = vmand %vm2930, %vm2959
      %vm2970 = vmand %vm2931, %vm2958
      %vm2971 = vmand %vm2931, %vm2959
      %vm2972 = vmand %vm2932, %vm2958
      %vm2973 = vmand %vm2932, %vm2959
      %vm2974 = vmand %vm2933, %vm2958
      %vm2975 = vmand %vm2933, %vm2959
      %vm2976 = vmand %vm2934, %vm2958
      %vm2977 = vmand %vm2934, %vm2959
      %vm2978 = vmand %vm2935, %vm2958
      %vm2979 = vmand %vm2935, %vm2959
      %vm2980 = vmand %vm2936, %vm2958
      %vm2981 = vmand %vm2936, %vm2959
      %vm2982 = vmand %vm2937, %vm2958
      %vm2983 = vmand %vm2937, %vm2959
      %vm2984 = vmand %vm2938, %vm2958
      %vm2985 = vmand %vm2938, %vm2959
      %vm2986 = vmand %vm2939, %vm2958
      %vm2987 = vmand %vm2939, %vm2959
      %vm2988 = vmand %vm2940, %vm2958
      %vm2989 = vmand %vm2940, %vm2959
      %vm2990 = vmand %vm2941, %vm2958
      %vm2991 = vmand %vm2941, %vm2959
      %vm2992 = vmand %vm2942, %vm2958
      %vm2993 = vmand %vm2942, %vm2959
      %vm2994 = vmand %vm2943, %vm2958
      %vm2995 = vmand %vm2943, %vm2959
      %vm2996 = vmand %vm2944, %vm2958
      %vm2997 = vmand %vm2944, %vm2959
      %vm2998 = vmand %vm2945, %vm2958
      %vm2999 = vmand %vm2945, %vm2959
      %vm3000 = vmand %vm2946, %vm2958
      %vm3001 = vmand %vm2946, %vm2959
      %vm3002 = vmand %vm2947, %vm2958
      %vm3003 = vmand %vm2947, %vm2959
      %vm3004 = vmand %vm2948, %vm2958
      %vm3005 = vmand %vm2948, %vm2959
      %vm3006 = vmand %vm2949, %vm2958
      %vm3007 = vmand %vm2949, %vm2959
      %vm3008 = vmand %vm2950, %vm2958
      %vm3009 = vmand %vm2950, %vm2959
      %vm3010 = vmand %vm2951, %vm2958
      %vm3011 = vmand %vm2951, %vm2959
      %vm3012 = vmand %vm2952, %vm2958
      %vm3013 = vmand %vm2952, %vm2959
      %vm3014 = vmand %vm2953, %vm2958
      %vm3015 = vmand %vm2953, %vm2959
      %vm3016 = vmand %vm2954, %vm2958
      %vm3017 = vmand %vm2954, %vm2959
      %vm3018 = vmand %vm2955, %vm2958
      %vm3019 = vmand %vm2955, %vm2959
      %vm3020 = vmand %vm2956, %vm2958
      %vm3021 = vmand %vm2956, %vm2959
      %vm3022 = vmand %vm2957, %vm2958
      %vm3023 = vmand %vm2957, %vm2959
      %v3024 = vmul.u32 %v208, 254
      %v3025 = vmul.u32 %v209, 254
      %v3026 = vmul.u32 %v210, 254
      %v3027 = vmul.u32 %v613, 254
      %v3028 = vmul.u32 %v614, 254
      %v3029 = vmul.u32 %v615, 254
      %v3030 = vmul.u32 %v616, 254
      %v3031 = vmul.u32 %v617, 254
      %v3032 = vmul.u32 %v618, 254
      %v3033 = vmul.u32 %v619, 254
      %v3034 = vmul.u32 %v620, 254
      %v3035 = vmul.u32 %v621, 254
      %v3036 = vmul.u32 %v622, 254
      %v3037 = vmul.u32 %v623, 254
      %v3038 = vmul.u32 %v624, 254
      %v3039 = vmul.u32 %v625, 254
      %v3040 = vmul.u32 %v1034, 254
      %v3041 = vmul.u32 %v1035, 254
      %v3042 = vmul.u32 %v1036, 254
      %v3043 = vmul.u32 %v1037, 254
      %v3044 = vmul.u32 %v1038, 254
      %v3045 = vmul.u32 %v1039, 254
      %v3046 = vmul.u32 %v1040, 254
      %v3047 = vmul.u32 %v1041, 254
      %v3048 = vmul.u32 %v1042, 254
      %v3049 = vmul.u32 %v1043, 254
      %v3050 = vmul.u32 %v1044, 254
      %v3051 = vmul.u32 %v1045, 254
      %v3052 = vmul.u32 %v1046, 254
      %v3053 = vmul.u32 %v1047, 254
      %v3054 = vmul.u32 %v1048, 254
      %v3055 = vmul.u32 %v1049, 254
      %v3056 = vadd.s32 %v3024, %v212
      %v3057 = vadd.s32 %v3024, %v912
      %v3058 = vadd.s32 %v3025, %v212
      %v3059 = vadd.s32 %v3025, %v912
      %v3060 = vadd.s32 %v3026, %v212
      %v3061 = vadd.s32 %v3026, %v912
      %v3062 = vadd.s32 %v3027, %v212
      %v3063 = vadd.s32 %v3027, %v912
      %v3064 = vadd.s32 %v3028, %v212
      %v3065 = vadd.s32 %v3028, %v912
      %v3066 = vadd.s32 %v3029, %v212
      %v3067 = vadd.s32 %v3029, %v912
      %v3068 = vadd.s32 %v3030, %v212
      %v3069 = vadd.s32 %v3030, %v912
      %v3070 = vadd.s32 %v3031, %v212
      %v3071 = vadd.s32 %v3031, %v912
      %v3072 = vadd.s32 %v3032, %v212
      %v3073 = vadd.s32 %v3032, %v912
      %v3074 = vadd.s32 %v3033, %v212
      %v3075 = vadd.s32 %v3033, %v912
      %v3076 = vadd.s32 %v3034, %v212
      %v3077 = vadd.s32 %v3034, %v912
      %v3078 = vadd.s32 %v3035, %v212
      %v3079 = vadd.s32 %v3035, %v912
      %v3080 = vadd.s32 %v3036, %v212
      %v3081 = vadd.s32 %v3036, %v912
      %v3082 = vadd.s32 %v3037, %v212
      %v3083 = vadd.s32 %v3037, %v912
      %v3084 = vadd.s32 %v3038, %v212
      %v3085 = vadd.s32 %v3038, %v912
      %v3086 = vadd.s32 %v3039, %v212
      %v3087 = vadd.s32 %v3039, %v912
      %v3088 = vadd.s32 %v3040, %v212
      %v3089 = vadd.s32 %v3040, %v912
      %v3090 = vadd.s32 %v3041, %v212
      %v3091 = vadd.s32 %v3041, %v912
      %v3092 = vadd.s32 %v3042, %v212
      %v3093 = vadd.s32 %v3042, %v912
      %v3094 = vadd.s32 %v3043, %v212
      %v3095 = vadd.s32 %v3043, %v912
      %v3096 = vadd.s32 %v3044, %v212
      %v3097 = vadd.s32 %v3044, %v912
      %v3098 = vadd.s32 %v3045, %v212
      %v3099 = vadd.s32 %v3045, %v912
      %v3100 = vadd.s32 %v3046, %v212
      %v3101 = vadd.s32 %v3046, %v912
      %v3102 = vadd.s32 %v3047, %v212
      %v3103 = vadd.s32 %v3047, %v912
      %v3104 = vadd.s32 %v3048, %v212
      %v3105 = vadd.s32 %v3048, %v912
      %v3106 = vadd.s32 %v3049, %v212
      %v3107 = vadd.s32 %v3049, %v912
      %v3108 = vadd.s32 %v3050, %v212
      %v3109 = vadd.s32 %v3050, %v912
      %v3110 = vadd.s32 %v3051, %v212
      %v3111 = vadd.s32 %v3051, %v912
      %v3112 = vadd.s32 %v3052, %v212
      %v3113 = vadd.s32 %v3052, %v912
      %v3114 = vadd.s32 %v3053, %v212
      %v3115 = vadd.s32 %v3053, %v912
      %v3116 = vadd.s32 %v3054, %v212
      %v3117 = vadd.s32 %v3054, %v912
      %v3118 = vadd.s32 %v3055, %v212
      %v3119 = vadd.s32 %v3055, %v912
      %v3120 = vcvt.s32.f32 %v3056
      %v3121 = vcvt.s32.f32 %v3057
      %v3122 = vcvt.s32.f32 %v3058
      %v3123 = vcvt.s32.f32 %v3059
      %v3124 = vcvt.s32.f32 %v3060
      %v3125 = vcvt.s32.f32 %v3061
      %v3126 = vcvt.s32.f32 %v3062
      %v3127 = vcvt.s32.f32 %v3063
      %v3128 = vcvt.s32.f32 %v3064
      %v3129 = vcvt.s32.f32 %v3065
      %v3130 = vcvt.s32.f32 %v3066
      %v3131 = vcvt.s32.f32 %v3067
      %v3132 = vcvt.s32.f32 %v3068
      %v3133 = vcvt.s32.f32 %v3069
      %v3134 = vcvt.s32.f32 %v3070
      %v3135 = vcvt.s32.f32 %v3071
      %v3136 = vcvt.s32.f32 %v3072
      %v3137 = vcvt.s32.f32 %v3073
      %v3138 = vcvt.s32.f32 %v3074
      %v3139 = vcvt.s32.f32 %v3075
      %v3140 = vcvt.s32.f32 %v3076
      %v3141 = vcvt.s32.f32 %v3077
      %v3142 = vcvt.s32.f32 %v3078
      %v3143 = vcvt.s32.f32 %v3079
      %v3144 = vcvt.s32.f32 %v3080
      %v3145 = vcvt.s32.f32 %v3081
      %v3146 = vcvt.s32.f32 %v3082
      %v3147 = vcvt.s32.f32 %v3083
      %v3148 = vcvt.s32.f32 %v3084
      %v3149 = vcvt.s32.f32 %v3085
      %v3150 = vcvt.s32.f32 %v3086
      %v3151 = vcvt.s32.f32 %v3087
      %v3152 = vcvt.s32.f32 %v3088
      %v3153 = vcvt.s32.f32 %v3089
      %v3154 = vcvt.s32.f32 %v3090
      %v3155 = vcvt.s32.f32 %v3091
      %v3156 = vcvt.s32.f32 %v3092
      %v3157 = vcvt.s32.f32 %v3093
      %v3158 = vcvt.s32.f32 %v3094
      %v3159 = vcvt.s32.f32 %v3095
      %v3160 = vcvt.s32.f32 %v3096
      %v3161 = vcvt.s32.f32 %v3097
      %v3162 = vcvt.s32.f32 %v3098
      %v3163 = vcvt.s32.f32 %v3099
      %v3164 = vcvt.s32.f32 %v3100
      %v3165 = vcvt.s32.f32 %v3101
      %v3166 = vcvt.s32.f32 %v3102
      %v3167 = vcvt.s32.f32 %v3103
      %v3168 = vcvt.s32.f32 %v3104
      %v3169 = vcvt.s32.f32 %v3105
      %v3170 = vcvt.s32.f32 %v3106
      %v3171 = vcvt.s32.f32 %v3107
      %v3172 = vcvt.s32.f32 %v3108
      %v3173 = vcvt.s32.f32 %v3109
      %v3174 = vcvt.s32.f32 %v3110
      %v3175 = vcvt.s32.f32 %v3111
      %v3176 = vcvt.s32.f32 %v3112
      %v3177 = vcvt.s32.f32 %v3113
      %v3178 = vcvt.s32.f32 %v3114
      %v3179 = vcvt.s32.f32 %v3115
      %v3180 = vcvt.s32.f32 %v3116
      %v3181 = vcvt.s32.f32 %v3117
      %v3182 = vcvt.s32.f32 %v3118
      %v3183 = vcvt.s32.f32 %v3119
      %v3184 = vsel %vm2960, %v3120, 64516.0
      %v3185 = vsel %vm2961, %v3121, 64516.0
      %v3186 = vsel %vm2962, %v3122, 64516.0
      %v3187 = vsel %vm2963, %v3123, 64516.0
      %v3188 = vsel %vm2964, %v3124, 64516.0
      %v3189 = vsel %vm2965, %v3125, 64516.0
      %v3190 = vsel %vm2966, %v3126, 64516.0
      %v3191 = vsel %vm2967, %v3127, 64516.0
      %v3192 = vsel %vm2968, %v3128, 64516.0
      %v3193 = vsel %vm2969, %v3129, 64516.0
      %v3194 = vsel %vm2970, %v3130, 64516.0
      %v3195 = vsel %vm2971, %v3131, 64516.0
      %v3196 = vsel %vm2972, %v3132, 64516.0
      %v3197 = vsel %vm2973, %v3133, 64516.0
      %v3198 = vsel %vm2974, %v3134, 64516.0
      %v3199 = vsel %vm2975, %v3135, 64516.0
      %v3200 = vsel %vm2976, %v3136, 64516.0
      %v3201 = vsel %vm2977, %v3137, 64516.0
      %v3202 = vsel %vm2978, %v3138, 64516.0
      %v3203 = vsel %vm2979, %v3139, 64516.0
      %v3204 = vsel %vm2980, %v3140, 64516.0
      %v3205 = vsel %vm2981, %v3141, 64516.0
      %v3206 = vsel %vm2982, %v3142, 64516.0
      %v3207 = vsel %vm2983, %v3143, 64516.0
      %v3208 = vsel %vm2984, %v3144, 64516.0
      %v3209 = vsel %vm2985, %v3145, 64516.0
      %v3210 = vsel %vm2986, %v3146, 64516.0
      %v3211 = vsel %vm2987, %v3147, 64516.0
      %v3212 = vsel %vm2988, %v3148, 64516.0
      %v3213 = vsel %vm2989, %v3149, 64516.0
      %v3214 = vsel %vm2990, %v3150, 64516.0
      %v3215 = vsel %vm2991, %v3151, 64516.0
      %v3216 = vsel %vm2992, %v3152, 64516.0
      %v3217 = vsel %vm2993, %v3153, 64516.0
      %v3218 = vsel %vm2994, %v3154, 64516.0
      %v3219 = vsel %vm2995, %v3155, 64516.0
      %v3220 = vsel %vm2996, %v3156, 64516.0
      %v3221 = vsel %vm2997, %v3157, 64516.0
      %v3222 = vsel %vm2998, %v3158, 64516.0
      %v3223 = vsel %vm2999, %v3159, 64516.0
      %v3224 = vsel %vm3000, %v3160, 64516.0
      %v3225 = vsel %vm3001, %v3161, 64516.0
      %v3226 = vsel %vm3002, %v3162, 64516.0
      %v3227 = vsel %vm3003, %v3163, 64516.0
      %v3228 = vsel %vm3004, %v3164, 64516.0
      %v3229 = vsel %vm3005, %v3165, 64516.0
      %v3230 = vsel %vm3006, %v3166, 64516.0
      %v3231 = vsel %vm3007, %v3167, 64516.0
      %v3232 = vsel %vm3008, %v3168, 64516.0
      %v3233 = vsel %vm3009, %v3169, 64516.0
      %v3234 = vsel %vm3010, %v3170, 64516.0
      %v3235 = vsel %vm3011, %v3171, 64516.0
      %v3236 = vsel %vm3012, %v3172, 64516.0
      %v3237 = vsel %vm3013, %v3173, 64516.0
      %v3238 = vsel %vm3014, %v3174, 64516.0
      %v3239 = vsel %vm3015, %v3175, 64516.0
      %v3240 = vsel %vm3016, %v3176, 64516.0
      %v3241 = vsel %vm3017, %v3177, 64516.0
      %v3242 = vsel %vm3018, %v3178, 64516.0
      %v3243 = vsel %vm3019, %v3179, 64516.0
      %v3244 = vsel %vm3020, %v3180, 64516.0
      %v3245 = vsel %vm3021, %v3181, 64516.0
      %v3246 = vsel %vm3022, %v3182, 64516.0
      %v3247 = vsel %vm3023, %v3183, 64516.0
      %vm3248 = vcmp.gt.f32.partialorder %v1275, 0.0
      %vm3249 = vcmp.gt.f32.partialorder %v1276, 0.0
      %vm3250 = vcmp.gt.f32.partialorder %v1277, 0.0
      %vm3251 = vcmp.gt.f32.partialorder %v1278, 0.0
      %vm3252 = vcmp.gt.f32.partialorder %v1279, 0.0
      %vm3253 = vcmp.gt.f32.partialorder %v1280, 0.0
      %vm3254 = vcmp.gt.f32.partialorder %v1281, 0.0
      %vm3255 = vcmp.gt.f32.partialorder %v1282, 0.0
      %vm3256 = vcmp.gt.f32.partialorder %v1283, 0.0
      %vm3257 = vcmp.gt.f32.partialorder %v1284, 0.0
      %vm3258 = vcmp.gt.f32.partialorder %v1285, 0.0
      %vm3259 = vcmp.gt.f32.partialorder %v1286, 0.0
      %vm3260 = vcmp.gt.f32.partialorder %v1287, 0.0
      %vm3261 = vcmp.gt.f32.partialorder %v1288, 0.0
      %vm3262 = vcmp.gt.f32.partialorder %v1289, 0.0
      %vm3263 = vcmp.gt.f32.partialorder %v1290, 0.0
      %vm3264 = vcmp.gt.f32.partialorder %v1307, 0.0
      %vm3265 = vcmp.gt.f32.partialorder %v1308, 0.0
      %vm3266 = vcmp.gt.f32.partialorder %v1309, 0.0
      %vm3267 = vcmp.gt.f32.partialorder %v1310, 0.0
      %vm3268 = vcmp.gt.f32.partialorder %v1311, 0.0
      %vm3269 = vcmp.gt.f32.partialorder %v1312, 0.0
      %vm3270 = vcmp.gt.f32.partialorder %v1313, 0.0
      %vm3271 = vcmp.gt.f32.partialorder %v1314, 0.0
      %vm3272 = vcmp.gt.f32.partialorder %v1315, 0.0
      %vm3273 = vcmp.gt.f32.partialorder %v1316, 0.0
      %vm3274 = vcmp.gt.f32.partialorder %v1317, 0.0
      %vm3275 = vcmp.gt.f32.partialorder %v1318, 0.0
      %vm3276 = vcmp.gt.f32.partialorder %v1319, 0.0
      %vm3277 = vcmp.gt.f32.partialorder %v1320, 0.0
      %vm3278 = vcmp.gt.f32.partialorder %v1321, 0.0
      %vm3279 = vcmp.gt.f32.partialorder %v1322, 0.0
      %vm3280 = vcmp.gt.f32.partialorder %v1491, 0.0
      %vm3281 = vcmp.gt.f32.partialorder %v1492, 0.0
      %vm3282 = vcmp.gt.f32.partialorder %v1493, 0.0
      %vm3283 = vcmp.gt.f32.partialorder %v1494, 0.0
      %vm3284 = vcmp.gt.f32.partialorder %v1495, 0.0
      %vm3285 = vcmp.gt.f32.partialorder %v1496, 0.0
      %vm3286 = vcmp.gt.f32.partialorder %v1497, 0.0
      %vm3287 = vcmp.gt.f32.partialorder %v1498, 0.0
      %vm3288 = vcmp.gt.f32.partialorder %v1499, 0.0
      %vm3289 = vcmp.gt.f32.partialorder %v1500, 0.0
      %vm3290 = vcmp.gt.f32.partialorder %v1501, 0.0
      %vm3291 = vcmp.gt.f32.partialorder %v1502, 0.0
      %vm3292 = vcmp.gt.f32.partialorder %v1503, 0.0
      %vm3293 = vcmp.gt.f32.partialorder %v1504, 0.0
      %vm3294 = vcmp.gt.f32.partialorder %v1505, 0.0
      %vm3295 = vcmp.gt.f32.partialorder %v1506, 0.0
      %vm3296 = vcmp.gt.f32.partialorder %v1507, 0.0
      %vm3297 = vcmp.gt.f32.partialorder %v1508, 0.0
      %vm3298 = vcmp.gt.f32.partialorder %v1509, 0.0
      %vm3299 = vcmp.gt.f32.partialorder %v1510, 0.0
      %vm3300 = vcmp.gt.f32.partialorder %v1511, 0.0
      %vm3301 = vcmp.gt.f32.partialorder %v1512, 0.0
      %vm3302 = vcmp.gt.f32.partialorder %v1513, 0.0
      %vm3303 = vcmp.gt.f32.partialorder %v1514, 0.0
      %vm3304 = vcmp.gt.f32.partialorder %v1515, 0.0
      %vm3305 = vcmp.gt.f32.partialorder %v1516, 0.0
      %vm3306 = vcmp.gt.f32.partialorder %v1517, 0.0
      %vm3307 = vcmp.gt.f32.partialorder %v1518, 0.0
      %vm3308 = vcmp.gt.f32.partialorder %v1519, 0.0
      %vm3309 = vcmp.gt.f32.partialorder %v1520, 0.0
      %vm3310 = vcmp.gt.f32.partialorder %v1521, 0.0
      %vm3311 = vcmp.gt.f32.partialorder %v1522, 0.0
      %vm3312 = vcmp.gt.f32.partialorder %v1523, 0.0
      %vm3313 = vcmp.gt.f32.partialorder %v1524, 0.0
      %vm3314 = vcmp.gt.f32.partialorder %v1525, 0.0
      %vm3315 = vcmp.gt.f32.partialorder %v1526, 0.0
      %vm3316 = vcmp.gt.f32.partialorder %v1527, 0.0
      %vm3317 = vcmp.gt.f32.partialorder %v1528, 0.0
      %vm3318 = vcmp.gt.f32.partialorder %v1529, 0.0
      %vm3319 = vcmp.gt.f32.partialorder %v1530, 0.0
      %vm3320 = vcmp.gt.f32.partialorder %v1531, 0.0
      %vm3321 = vcmp.gt.f32.partialorder %v1532, 0.0
      %vm3322 = vcmp.gt.f32.partialorder %v1533, 0.0
      %vm3323 = vcmp.gt.f32.partialorder %v1534, 0.0
      %vm3324 = vcmp.gt.f32.partialorder %v1535, 0.0
      %vm3325 = vcmp.gt.f32.partialorder %v1536, 0.0
      %vm3326 = vcmp.gt.f32.partialorder %v1537, 0.0
      %vm3327 = vcmp.gt.f32.partialorder %v1538, 0.0
      %vm3328 = vcmp.gt.f32.partialorder %v1539, 0.0
      %vm3329 = vcmp.gt.f32.partialorder %v1540, 0.0
      %vm3330 = vcmp.gt.f32.partialorder %v1541, 0.0
      %vm3331 = vcmp.gt.f32.partialorder %v1542, 0.0
      %vm3332 = vcmp.gt.f32.partialorder %v1543, 0.0
      %vm3333 = vcmp.gt.f32.partialorder %v1544, 0.0
      %vm3334 = vcmp.gt.f32.partialorder %v1545, 0.0
      %vm3335 = vcmp.gt.f32.partialorder %v1546, 0.0
      %vm3336 = vcmp.gt.f32.partialorder %v1547, 0.0
      %vm3337 = vcmp.gt.f32.partialorder %v1548, 0.0
      %vm3338 = vcmp.gt.f32.partialorder %v1549, 0.0
      %vm3339 = vcmp.gt.f32.partialorder %v1550, 0.0
      %vm3340 = vcmp.gt.f32.partialorder %v1551, 0.0
      %vm3341 = vcmp.gt.f32.partialorder %v1552, 0.0
      %vm3342 = vcmp.gt.f32.partialorder %v1553, 0.0
      %vm3343 = vcmp.gt.f32.partialorder %v1554, 0.0
      %v3344 = vsel %vm3248, 1, 0
      %v3345 = vsel %vm3249, 1, 0
      %v3346 = vsel %vm3250, 1, 0
      %v3347 = vsel %vm3251, 1, 0
      %v3348 = vsel %vm3252, 1, 0
      %v3349 = vsel %vm3253, 1, 0
      %v3350 = vsel %vm3254, 1, 0
      %v3351 = vsel %vm3255, 1, 0
      %v3352 = vsel %vm3256, 1, 0
      %v3353 = vsel %vm3257, 1, 0
      %v3354 = vsel %vm3258, 1, 0
      %v3355 = vsel %vm3259, 1, 0
      %v3356 = vsel %vm3260, 1, 0
      %v3357 = vsel %vm3261, 1, 0
      %v3358 = vsel %vm3262, 1, 0
      %v3359 = vsel %vm3263, 1, 0
      %v3360 = vsel %vm3264, 1, 0
      %v3361 = vsel %vm3265, 1, 0
      %v3362 = vsel %vm3266, 1, 0
      %v3363 = vsel %vm3267, 1, 0
      %v3364 = vsel %vm3268, 1, 0
      %v3365 = vsel %vm3269, 1, 0
      %v3366 = vsel %vm3270, 1, 0
      %v3367 = vsel %vm3271, 1, 0
      %v3368 = vsel %vm3272, 1, 0
      %v3369 = vsel %vm3273, 1, 0
      %v3370 = vsel %vm3274, 1, 0
      %v3371 = vsel %vm3275, 1, 0
      %v3372 = vsel %vm3276, 1, 0
      %v3373 = vsel %vm3277, 1, 0
      %v3374 = vsel %vm3278, 1, 0
      %v3375 = vsel %vm3279, 1, 0
      %3376 = vset.pattern.permute.xlu0 0
      %3377 = vperm.xlu0 %3376, %v3344
      %v3378 = vpop.permute.xlu0 %3377
      %3379 = vset.pattern.permute.xlu0 0
      %3380 = vperm.xlu0 %3379, %v3345
      %v3381 = vpop.permute.xlu0 %3380
      %3382 = vset.pattern.permute.xlu0 0
      %3383 = vperm.xlu0 %3382, %v3346
      %v3384 = vpop.permute.xlu0 %3383
      %3385 = vset.pattern.permute.xlu0 0
      %3386 = vperm.xlu0 %3385, %v3347
      %v3387 = vpop.permute.xlu0 %3386
      %3388 = vset.pattern.permute.xlu0 0
      %3389 = vperm.xlu0 %3388, %v3348
      %v3390 = vpop.permute.xlu0 %3389
      %3391 = vset.pattern.permute.xlu0 0
      %3392 = vperm.xlu0 %3391, %v3349
      %v3393 = vpop.permute.xlu0 %3392
      %3394 = vset.pattern.permute.xlu0 0
      %3395 = vperm.xlu0 %3394, %v3350
      %v3396 = vpop.permute.xlu0 %3395
      %3397 = vset.pattern.permute.xlu0 0
      %3398 = vperm.xlu0 %3397, %v3351
      %v3399 = vpop.permute.xlu0 %3398
      %3400 = vset.pattern.permute.xlu0 0
      %3401 = vperm.xlu0 %3400, %v3352
      %v3402 = vpop.permute.xlu0 %3401
      %3403 = vset.pattern.permute.xlu0 0
      %3404 = vperm.xlu0 %3403, %v3353
      %v3405 = vpop.permute.xlu0 %3404
      %3406 = vset.pattern.permute.xlu0 0
      %3407 = vperm.xlu0 %3406, %v3354
      %v3408 = vpop.permute.xlu0 %3407
      %3409 = vset.pattern.permute.xlu0 0
      %3410 = vperm.xlu0 %3409, %v3355
      %v3411 = vpop.permute.xlu0 %3410
      %3412 = vset.pattern.permute.xlu0 0
      %3413 = vperm.xlu0 %3412, %v3356
      %v3414 = vpop.permute.xlu0 %3413
      %3415 = vset.pattern.permute.xlu0 0
      %3416 = vperm.xlu0 %3415, %v3357
      %v3417 = vpop.permute.xlu0 %3416
      %3418 = vset.pattern.permute.xlu0 0
      %3419 = vperm.xlu0 %3418, %v3358
      %v3420 = vpop.permute.xlu0 %3419
      %3421 = vset.pattern.permute.xlu0 0
      %3422 = vperm.xlu0 %3421, %v3359
      %v3423 = vpop.permute.xlu0 %3422
      %3424 = vset.pattern.permute.xlu0 0
      %3425 = vperm.xlu0 %3424, %v3360
      %v3426 = vpop.permute.xlu0 %3425
      %3427 = vset.pattern.permute.xlu0 0
      %3428 = vperm.xlu0 %3427, %v3361
      %v3429 = vpop.permute.xlu0 %3428
      %3430 = vset.pattern.permute.xlu0 0
      %3431 = vperm.xlu0 %3430, %v3362
      %v3432 = vpop.permute.xlu0 %3431
      %3433 = vset.pattern.permute.xlu0 0
      %3434 = vperm.xlu0 %3433, %v3363
      %v3435 = vpop.permute.xlu0 %3434
      %3436 = vset.pattern.permute.xlu0 0
      %3437 = vperm.xlu0 %3436, %v3364
      %v3438 = vpop.permute.xlu0 %3437
      %3439 = vset.pattern.permute.xlu0 0
      %3440 = vperm.xlu0 %3439, %v3365
      %v3441 = vpop.permute.xlu0 %3440
      %3442 = vset.pattern.permute.xlu0 0
      %3443 = vperm.xlu0 %3442, %v3366
      %v3444 = vpop.permute.xlu0 %3443
      %3445 = vset.pattern.permute.xlu0 0
      %3446 = vperm.xlu0 %3445, %v3367
      %v3447 = vpop.permute.xlu0 %3446
      %3448 = vset.pattern.permute.xlu0 0
      %3449 = vperm.xlu0 %3448, %v3368
      %v3450 = vpop.permute.xlu0 %3449
      %3451 = vset.pattern.permute.xlu0 0
      %3452 = vperm.xlu0 %3451, %v3369
      %v3453 = vpop.permute.xlu0 %3452
      %3454 = vset.pattern.permute.xlu0 0
      %3455 = vperm.xlu0 %3454, %v3370
      %v3456 = vpop.permute.xlu0 %3455
      %3457 = vset.pattern.permute.xlu0 0
      %3458 = vperm.xlu0 %3457, %v3371
      %v3459 = vpop.permute.xlu0 %3458
      %3460 = vset.pattern.permute.xlu0 0
      %3461 = vperm.xlu0 %3460, %v3372
      %v3462 = vpop.permute.xlu0 %3461
      %3463 = vset.pattern.permute.xlu0 0
      %3464 = vperm.xlu0 %3463, %v3373
      %v3465 = vpop.permute.xlu0 %3464
      %3466 = vset.pattern.permute.xlu0 0
      %3467 = vperm.xlu0 %3466, %v3374
      %v3468 = vpop.permute.xlu0 %3467
      %3469 = vset.pattern.permute.xlu0 0
      %3470 = vperm.xlu0 %3469, %v3375
      %v3471 = vpop.permute.xlu0 %3470
      %vm3472 = vcmp.eq.s32.totalorder %v3378, 1
      %vm3473 = vcmp.eq.s32.totalorder %v3381, 1
      %vm3474 = vcmp.eq.s32.totalorder %v3384, 1
      %vm3475 = vcmp.eq.s32.totalorder %v3387, 1
      %vm3476 = vcmp.eq.s32.totalorder %v3390, 1
      %vm3477 = vcmp.eq.s32.totalorder %v3393, 1
      %vm3478 = vcmp.eq.s32.totalorder %v3396, 1
      %vm3479 = vcmp.eq.s32.totalorder %v3399, 1
      %vm3480 = vcmp.eq.s32.totalorder %v3402, 1
      %vm3481 = vcmp.eq.s32.totalorder %v3405, 1
      %vm3482 = vcmp.eq.s32.totalorder %v3408, 1
      %vm3483 = vcmp.eq.s32.totalorder %v3411, 1
      %vm3484 = vcmp.eq.s32.totalorder %v3414, 1
      %vm3485 = vcmp.eq.s32.totalorder %v3417, 1
      %vm3486 = vcmp.eq.s32.totalorder %v3420, 1
      %vm3487 = vcmp.eq.s32.totalorder %v3423, 1
      %vm3488 = vcmp.eq.s32.totalorder %v3426, 1
      %vm3489 = vcmp.eq.s32.totalorder %v3429, 1
      %vm3490 = vcmp.eq.s32.totalorder %v3432, 1
      %vm3491 = vcmp.eq.s32.totalorder %v3435, 1
      %vm3492 = vcmp.eq.s32.totalorder %v3438, 1
      %vm3493 = vcmp.eq.s32.totalorder %v3441, 1
      %vm3494 = vcmp.eq.s32.totalorder %v3444, 1
      %vm3495 = vcmp.eq.s32.totalorder %v3447, 1
      %vm3496 = vcmp.eq.s32.totalorder %v3450, 1
      %vm3497 = vcmp.eq.s32.totalorder %v3453, 1
      %vm3498 = vcmp.eq.s32.totalorder %v3456, 1
      %vm3499 = vcmp.eq.s32.totalorder %v3459, 1
      %vm3500 = vcmp.eq.s32.totalorder %v3462, 1
      %vm3501 = vcmp.eq.s32.totalorder %v3465, 1
      %vm3502 = vcmp.eq.s32.totalorder %v3468, 1
      %vm3503 = vcmp.eq.s32.totalorder %v3471, 1
      %vm3504 = vmand %vm3472, %vm3280
      %vm3505 = vmand %vm3472, %vm3281
      %vm3506 = vmand %vm3473, %vm3282
      %vm3507 = vmand %vm3473, %vm3283
      %vm3508 = vmand %vm3474, %vm3284
      %vm3509 = vmand %vm3474, %vm3285
      %vm3510 = vmand %vm3475, %vm3286
      %vm3511 = vmand %vm3475, %vm3287
      %vm3512 = vmand %vm3476, %vm3288
      %vm3513 = vmand %vm3476, %vm3289
      %vm3514 = vmand %vm3477, %vm3290
      %vm3515 = vmand %vm3477, %vm3291
      %vm3516 = vmand %vm3478, %vm3292
      %vm3517 = vmand %vm3478, %vm3293
      %vm3518 = vmand %vm3479, %vm3294
      %vm3519 = vmand %vm3479, %vm3295
      %vm3520 = vmand %vm3480, %vm3296
      %vm3521 = vmand %vm3480, %vm3297
      %vm3522 = vmand %vm3481, %vm3298
      %vm3523 = vmand %vm3481, %vm3299
      %vm3524 = vmand %vm3482, %vm3300
      %vm3525 = vmand %vm3482, %vm3301
      %vm3526 = vmand %vm3483, %vm3302
      %vm3527 = vmand %vm3483, %vm3303
      %vm3528 = vmand %vm3484, %vm3304
      %vm3529 = vmand %vm3484, %vm3305
      %vm3530 = vmand %vm3485, %vm3306
      %vm3531 = vmand %vm3485, %vm3307
      %vm3532 = vmand %vm3486, %vm3308
      %vm3533 = vmand %vm3486, %vm3309
      %vm3534 = vmand %vm3487, %vm3310
      %vm3535 = vmand %vm3487, %vm3311
      %vm3536 = vmand %vm3488, %vm3312
      %vm3537 = vmand %vm3488, %vm3313
      %vm3538 = vmand %vm3489, %vm3314
      %vm3539 = vmand %vm3489, %vm3315
      %vm3540 = vmand %vm3490, %vm3316
      %vm3541 = vmand %vm3490, %vm3317
      %vm3542 = vmand %vm3491, %vm3318
      %vm3543 = vmand %vm3491, %vm3319
      %vm3544 = vmand %vm3492, %vm3320
      %vm3545 = vmand %vm3492, %vm3321
      %vm3546 = vmand %vm3493, %vm3322
      %vm3547 = vmand %vm3493, %vm3323
      %vm3548 = vmand %vm3494, %vm3324
      %vm3549 = vmand %vm3494, %vm3325
      %vm3550 = vmand %vm3495, %vm3326
      %vm3551 = vmand %vm3495, %vm3327
      %vm3552 = vmand %vm3496, %vm3328
      %vm3553 = vmand %vm3496, %vm3329
      %vm3554 = vmand %vm3497, %vm3330
      %vm3555 = vmand %vm3497, %vm3331
      %vm3556 = vmand %vm3498, %vm3332
      %vm3557 = vmand %vm3498, %vm3333
      %vm3558 = vmand %vm3499, %vm3334
      %vm3559 = vmand %vm3499, %vm3335
      %vm3560 = vmand %vm3500, %vm3336
      %vm3561 = vmand %vm3500, %vm3337
      %vm3562 = vmand %vm3501, %vm3338
      %vm3563 = vmand %vm3501, %vm3339
      %vm3564 = vmand %vm3502, %vm3340
      %vm3565 = vmand %vm3502, %vm3341
      %vm3566 = vmand %vm3503, %vm3342
      %vm3567 = vmand %vm3503, %vm3343
      %vm3568 = vcmp.gt.f32.partialorder %v1555, 0.0
      %vm3569 = vcmp.gt.f32.partialorder %v1556, 0.0
      %v3570 = vsel %vm3568, 1, 0
      %v3571 = vsel %vm3569, 1, 0
      %v3572 = vlaneseq
      %v3573 = vshrl.u32 %v3572, 7
      %v3574 = vsub.s32 0, %v3573
      %v3575 = vrot.slane %v3570, %v3574
      %v3576 = vlaneseq
      %v3577 = vshrl.u32 %v3576, 7
      %v3578 = vsub.s32 0, %v3577
      %v3579 = vrot.slane %v3571, %v3578
      %vm3580 = vcmp.eq.s32.totalorder %v3575, 1
      %vm3581 = vcmp.eq.s32.totalorder %v3579, 1
      %vm3582 = vmand %vm3504, %vm3580
      %vm3583 = vmand %vm3505, %vm3581
      %vm3584 = vmand %vm3506, %vm3580
      %vm3585 = vmand %vm3507, %vm3581
      %vm3586 = vmand %vm3508, %vm3580
      %vm3587 = vmand %vm3509, %vm3581
      %vm3588 = vmand %vm3510, %vm3580
      %vm3589 = vmand %vm3511, %vm3581
      %vm3590 = vmand %vm3512, %vm3580
      %vm3591 = vmand %vm3513, %vm3581
      %vm3592 = vmand %vm3514, %vm3580
      %vm3593 = vmand %vm3515, %vm3581
      %vm3594 = vmand %vm3516, %vm3580
      %vm3595 = vmand %vm3517, %vm3581
      %vm3596 = vmand %vm3518, %vm3580
      %vm3597 = vmand %vm3519, %vm3581
      %vm3598 = vmand %vm3520, %vm3580
      %vm3599 = vmand %vm3521, %vm3581
      %vm3600 = vmand %vm3522, %vm3580
      %vm3601 = vmand %vm3523, %vm3581
      %vm3602 = vmand %vm3524, %vm3580
      %vm3603 = vmand %vm3525, %vm3581
      %vm3604 = vmand %vm3526, %vm3580
      %vm3605 = vmand %vm3527, %vm3581
      %vm3606 = vmand %vm3528, %vm3580
      %vm3607 = vmand %vm3529, %vm3581
      %vm3608 = vmand %vm3530, %vm3580
      %vm3609 = vmand %vm3531, %vm3581
      %vm3610 = vmand %vm3532, %vm3580
      %vm3611 = vmand %vm3533, %vm3581
      %vm3612 = vmand %vm3534, %vm3580
      %vm3613 = vmand %vm3535, %vm3581
      %vm3614 = vmand %vm3536, %vm3580
      %vm3615 = vmand %vm3537, %vm3581
      %vm3616 = vmand %vm3538, %vm3580
      %vm3617 = vmand %vm3539, %vm3581
      %vm3618 = vmand %vm3540, %vm3580
      %vm3619 = vmand %vm3541, %vm3581
      %vm3620 = vmand %vm3542, %vm3580
      %vm3621 = vmand %vm3543, %vm3581
      %vm3622 = vmand %vm3544, %vm3580
      %vm3623 = vmand %vm3545, %vm3581
      %vm3624 = vmand %vm3546, %vm3580
      %vm3625 = vmand %vm3547, %vm3581
      %vm3626 = vmand %vm3548, %vm3580
      %vm3627 = vmand %vm3549, %vm3581
      %vm3628 = vmand %vm3550, %vm3580
      %vm3629 = vmand %vm3551, %vm3581
      %vm3630 = vmand %vm3552, %vm3580
      %vm3631 = vmand %vm3553, %vm3581
      %vm3632 = vmand %vm3554, %vm3580
      %vm3633 = vmand %vm3555, %vm3581
      %vm3634 = vmand %vm3556, %vm3580
      %vm3635 = vmand %vm3557, %vm3581
      %vm3636 = vmand %vm3558, %vm3580
      %vm3637 = vmand %vm3559, %vm3581
      %vm3638 = vmand %vm3560, %vm3580
      %vm3639 = vmand %vm3561, %vm3581
      %vm3640 = vmand %vm3562, %vm3580
      %vm3641 = vmand %vm3563, %vm3581
      %vm3642 = vmand %vm3564, %vm3580
      %vm3643 = vmand %vm3565, %vm3581
      %vm3644 = vmand %vm3566, %vm3580
      %vm3645 = vmand %vm3567, %vm3581
      %vm3646 = vmand %vm3582, %vm2960
      %vm3647 = vmand %vm3583, %vm2961
      %vm3648 = vmand %vm3584, %vm2962
      %vm3649 = vmand %vm3585, %vm2963
      %vm3650 = vmand %vm3586, %vm2964
      %vm3651 = vmand %vm3587, %vm2965
      %vm3652 = vmand %vm3588, %vm2966
      %vm3653 = vmand %vm3589, %vm2967
      %vm3654 = vmand %vm3590, %vm2968
      %vm3655 = vmand %vm3591, %vm2969
      %vm3656 = vmand %vm3592, %vm2970
      %vm3657 = vmand %vm3593, %vm2971
      %vm3658 = vmand %vm3594, %vm2972
      %vm3659 = vmand %vm3595, %vm2973
      %vm3660 = vmand %vm3596, %vm2974
      %vm3661 = vmand %vm3597, %vm2975
      %vm3662 = vmand %vm3598, %vm2976
      %vm3663 = vmand %vm3599, %vm2977
      %vm3664 = vmand %vm3600, %vm2978
      %vm3665 = vmand %vm3601, %vm2979
      %vm3666 = vmand %vm3602, %vm2980
      %vm3667 = vmand %vm3603, %vm2981
      %vm3668 = vmand %vm3604, %vm2982
      %vm3669 = vmand %vm3605, %vm2983
      %vm3670 = vmand %vm3606, %vm2984
      %vm3671 = vmand %vm3607, %vm2985
      %vm3672 = vmand %vm3608, %vm2986
      %vm3673 = vmand %vm3609, %vm2987
      %vm3674 = vmand %vm3610, %vm2988
      %vm3675 = vmand %vm3611, %vm2989
      %vm3676 = vmand %vm3612, %vm2990
      %vm3677 = vmand %vm3613, %vm2991
      %vm3678 = vmand %vm3614, %vm2992
      %vm3679 = vmand %vm3615, %vm2993
      %vm3680 = vmand %vm3616, %vm2994
      %vm3681 = vmand %vm3617, %vm2995
      %vm3682 = vmand %vm3618, %vm2996
      %vm3683 = vmand %vm3619, %vm2997
      %vm3684 = vmand %vm3620, %vm2998
      %vm3685 = vmand %vm3621, %vm2999
      %vm3686 = vmand %vm3622, %vm3000
      %vm3687 = vmand %vm3623, %vm3001
      %vm3688 = vmand %vm3624, %vm3002
      %vm3689 = vmand %vm3625, %vm3003
      %vm3690 = vmand %vm3626, %vm3004
      %vm3691 = vmand %vm3627, %vm3005
      %vm3692 = vmand %vm3628, %vm3006
      %vm3693 = vmand %vm3629, %vm3007
      %vm3694 = vmand %vm3630, %vm3008
      %vm3695 = vmand %vm3631, %vm3009
      %vm3696 = vmand %vm3632, %vm3010
      %vm3697 = vmand %vm3633, %vm3011
      %vm3698 = vmand %vm3634, %vm3012
      %vm3699 = vmand %vm3635, %vm3013
      %vm3700 = vmand %vm3636, %vm3014
      %vm3701 = vmand %vm3637, %vm3015
      %vm3702 = vmand %vm3638, %vm3016
      %vm3703 = vmand %vm3639, %vm3017
      %vm3704 = vmand %vm3640, %vm3018
      %vm3705 = vmand %vm3641, %vm3019
      %vm3706 = vmand %vm3642, %vm3020
      %vm3707 = vmand %vm3643, %vm3021
      %vm3708 = vmand %vm3644, %vm3022
      %vm3709 = vmand %vm3645, %vm3023
      %v3710 = vsel %vm3646, %v2862, 0.0
      %v3711 = vsel %vm3647, %v2863, 0.0
      %v3712 = vsel %vm3648, %v2864, 0.0
      %v3713 = vsel %vm3649, %v2865, 0.0
      %v3714 = vsel %vm3650, %v2866, 0.0
      %v3715 = vsel %vm3651, %v2867, 0.0
      %v3716 = vsel %vm3652, %v2868, 0.0
      %v3717 = vsel %vm3653, %v2869, 0.0
      %v3718 = vsel %vm3654, %v2870, 0.0
      %v3719 = vsel %vm3655, %v2871, 0.0
      %v3720 = vsel %vm3656, %v2872, 0.0
      %v3721 = vsel %vm3657, %v2873, 0.0
      %v3722 = vsel %vm3658, %v2874, 0.0
      %v3723 = vsel %vm3659, %v2875, 0.0
      %v3724 = vsel %vm3660, %v2876, 0.0
      %v3725 = vsel %vm3661, %v2877, 0.0
      %v3726 = vsel %vm3662, %v2878, 0.0
      %v3727 = vsel %vm3663, %v2879, 0.0
      %v3728 = vsel %vm3664, %v2880, 0.0
      %v3729 = vsel %vm3665, %v2881, 0.0
      %v3730 = vsel %vm3666, %v2882, 0.0
      %v3731 = vsel %vm3667, %v2883, 0.0
      %v3732 = vsel %vm3668, %v2884, 0.0
      %v3733 = vsel %vm3669, %v2885, 0.0
      %v3734 = vsel %vm3670, %v2886, 0.0
      %v3735 = vsel %vm3671, %v2887, 0.0
      %v3736 = vsel %vm3672, %v2888, 0.0
      %v3737 = vsel %vm3673, %v2889, 0.0
      %v3738 = vsel %vm3674, %v2890, 0.0
      %v3739 = vsel %vm3675, %v2891, 0.0
      %v3740 = vsel %vm3676, %v2892, 0.0
      %v3741 = vsel %vm3677, %v2893, 0.0
      %v3742 = vsel %vm3678, %v2894, 0.0
      %v3743 = vsel %vm3679, %v2895, 0.0
      %v3744 = vsel %vm3680, %v2896, 0.0
      %v3745 = vsel %vm3681, %v2897, 0.0
      %v3746 = vsel %vm3682, %v2898, 0.0
      %v3747 = vsel %vm3683, %v2899, 0.0
      %v3748 = vsel %vm3684, %v2900, 0.0
      %v3749 = vsel %vm3685, %v2901, 0.0
      %v3750 = vsel %vm3686, %v2902, 0.0
      %v3751 = vsel %vm3687, %v2903, 0.0
      %v3752 = vsel %vm3688, %v2904, 0.0
      %v3753 = vsel %vm3689, %v2905, 0.0
      %v3754 = vsel %vm3690, %v2906, 0.0
      %v3755 = vsel %vm3691, %v2907, 0.0
      %v3756 = vsel %vm3692, %v2908, 0.0
      %v3757 = vsel %vm3693, %v2909, 0.0
      %v3758 = vsel %vm3694, %v2910, 0.0
      %v3759 = vsel %vm3695, %v2911, 0.0
      %v3760 = vsel %vm3696, %v2912, 0.0
      %v3761 = vsel %vm3697, %v2913, 0.0
      %v3762 = vsel %vm3698, %v2914, 0.0
      %v3763 = vsel %vm3699, %v2915, 0.0
      %v3764 = vsel %vm3700, %v2916, 0.0
      %v3765 = vsel %vm3701, %v2917, 0.0
      %v3766 = vsel %vm3702, %v2918, 0.0
      %v3767 = vsel %vm3703, %v2919, 0.0
      %v3768 = vsel %vm3704, %v2920, 0.0
      %v3769 = vsel %vm3705, %v2921, 0.0
      %v3770 = vsel %vm3706, %v2922, 0.0
      %v3771 = vsel %vm3707, %v2923, 0.0
      %v3772 = vsel %vm3708, %v2924, 0.0
      %v3773 = vsel %vm3709, %v2925, 0.0
      %v3774 = vmax.f32 %v3710, %v3711
      %3775 = vmax.xlane.f32.xlu0 %v3774
      %v3776 = vpop.xlane.xlu0 %3775
      %v3777 = vmax.f32 %v3712, %v3713
      %3778 = vmax.xlane.f32.xlu0 %v3777
      %v3779 = vpop.xlane.xlu0 %3778
      %v3780 = vmax.f32 %v3714, %v3715
      %3781 = vmax.xlane.f32.xlu0 %v3780
      %v3782 = vpop.xlane.xlu0 %3781
      %v3783 = vmax.f32 %v3716, %v3717
      %3784 = vmax.xlane.f32.xlu0 %v3783
      %v3785 = vpop.xlane.xlu0 %3784
      %v3786 = vmax.f32 %v3718, %v3719
      %3787 = vmax.xlane.f32.xlu0 %v3786
      %v3788 = vpop.xlane.xlu0 %3787
      %v3789 = vmax.f32 %v3720, %v3721
      %3790 = vmax.xlane.f32.xlu0 %v3789
      %v3791 = vpop.xlane.xlu0 %3790
      %v3792 = vmax.f32 %v3722, %v3723
      %3793 = vmax.xlane.f32.xlu0 %v3792
      %v3794 = vpop.xlane.xlu0 %3793
      %v3795 = vmax.f32 %v3724, %v3725
      %3796 = vmax.xlane.f32.xlu0 %v3795
      %v3797 = vpop.xlane.xlu0 %3796
      %v3798 = vmax.f32 %v3726, %v3727
      %3799 = vmax.xlane.f32.xlu0 %v3798
      %v3800 = vpop.xlane.xlu0 %3799
      %v3801 = vmax.f32 %v3728, %v3729
      %3802 = vmax.xlane.f32.xlu0 %v3801
      %v3803 = vpop.xlane.xlu0 %3802
      %v3804 = vmax.f32 %v3730, %v3731
      %3805 = vmax.xlane.f32.xlu0 %v3804
      %v3806 = vpop.xlane.xlu0 %3805
      %v3807 = vmax.f32 %v3732, %v3733
      %3808 = vmax.xlane.f32.xlu0 %v3807
      %v3809 = vpop.xlane.xlu0 %3808
      %v3810 = vmax.f32 %v3734, %v3735
      %3811 = vmax.xlane.f32.xlu0 %v3810
      %v3812 = vpop.xlane.xlu0 %3811
      %v3813 = vmax.f32 %v3736, %v3737
      %3814 = vmax.xlane.f32.xlu0 %v3813
      %v3815 = vpop.xlane.xlu0 %3814
      %v3816 = vmax.f32 %v3738, %v3739
      %3817 = vmax.xlane.f32.xlu0 %v3816
      %v3818 = vpop.xlane.xlu0 %3817
      %v3819 = vmax.f32 %v3740, %v3741
      %3820 = vmax.xlane.f32.xlu0 %v3819
      %v3821 = vpop.xlane.xlu0 %3820
      %v3822 = vmax.f32 %v3742, %v3743
      %3823 = vmax.xlane.f32.xlu0 %v3822
      %v3824 = vpop.xlane.xlu0 %3823
      %v3825 = vmax.f32 %v3744, %v3745
      %3826 = vmax.xlane.f32.xlu0 %v3825
      %v3827 = vpop.xlane.xlu0 %3826
      %v3828 = vmax.f32 %v3746, %v3747
      %3829 = vmax.xlane.f32.xlu0 %v3828
      %v3830 = vpop.xlane.xlu0 %3829
      %v3831 = vmax.f32 %v3748, %v3749
      %3832 = vmax.xlane.f32.xlu0 %v3831
      %v3833 = vpop.xlane.xlu0 %3832
      %v3834 = vmax.f32 %v3750, %v3751
      %3835 = vmax.xlane.f32.xlu0 %v3834
      %v3836 = vpop.xlane.xlu0 %3835
      %v3837 = vmax.f32 %v3752, %v3753
      %3838 = vmax.xlane.f32.xlu0 %v3837
      %v3839 = vpop.xlane.xlu0 %3838
      %v3840 = vmax.f32 %v3754, %v3755
      %3841 = vmax.xlane.f32.xlu0 %v3840
      %v3842 = vpop.xlane.xlu0 %3841
      %v3843 = vmax.f32 %v3756, %v3757
      %3844 = vmax.xlane.f32.xlu0 %v3843
      %v3845 = vpop.xlane.xlu0 %3844
      %v3846 = vmax.f32 %v3758, %v3759
      %3847 = vmax.xlane.f32.xlu0 %v3846
      %v3848 = vpop.xlane.xlu0 %3847
      %v3849 = vmax.f32 %v3760, %v3761
      %3850 = vmax.xlane.f32.xlu0 %v3849
      %v3851 = vpop.xlane.xlu0 %3850
      %v3852 = vmax.f32 %v3762, %v3763
      %3853 = vmax.xlane.f32.xlu0 %v3852
      %v3854 = vpop.xlane.xlu0 %3853
      %v3855 = vmax.f32 %v3764, %v3765
      %3856 = vmax.xlane.f32.xlu0 %v3855
      %v3857 = vpop.xlane.xlu0 %3856
      %v3858 = vmax.f32 %v3766, %v3767
      %3859 = vmax.xlane.f32.xlu0 %v3858
      %v3860 = vpop.xlane.xlu0 %3859
      %v3861 = vmax.f32 %v3768, %v3769
      %3862 = vmax.xlane.f32.xlu0 %v3861
      %v3863 = vpop.xlane.xlu0 %3862
      %v3864 = vmax.f32 %v3770, %v3771
      %3865 = vmax.xlane.f32.xlu0 %v3864
      %v3866 = vpop.xlane.xlu0 %3865
      %v3867 = vmax.f32 %v3772, %v3773
      %3868 = vmax.xlane.f32.xlu0 %v3867
      %v3869 = vpop.xlane.xlu0 %3868
      %v3870 = vmax.f32 %v3776, %v3788
      %v3871 = vmax.f32 %v3779, %v3791
      %v3872 = vmax.f32 %v3782, %v3794
      %v3873 = vmax.f32 %v3785, %v3797
      %v3874 = vmax.f32 %v3870, %v3800
      %v3875 = vmax.f32 %v3871, %v3803
      %v3876 = vmax.f32 %v3872, %v3806
      %v3877 = vmax.f32 %v3873, %v3809
      %v3878 = vmax.f32 %v3874, %v3812
      %v3879 = vmax.f32 %v3875, %v3815
      %v3880 = vmax.f32 %v3876, %v3818
      %v3881 = vmax.f32 %v3877, %v3821
      %v3882 = vmax.f32 %v3878, %v3824
      %v3883 = vmax.f32 %v3879, %v3827
      %v3884 = vmax.f32 %v3880, %v3830
      %v3885 = vmax.f32 %v3881, %v3833
      %v3886 = vmax.f32 %v3882, %v3836
      %v3887 = vmax.f32 %v3883, %v3839
      %v3888 = vmax.f32 %v3884, %v3842
      %v3889 = vmax.f32 %v3885, %v3845
      %v3890 = vmax.f32 %v3886, %v3848
      %v3891 = vmax.f32 %v3887, %v3851
      %v3892 = vmax.f32 %v3888, %v3854
      %v3893 = vmax.f32 %v3889, %v3857
      %v3894 = vmax.f32 %v3890, %v3860
      %v3895 = vmax.f32 %v3891, %v3863
      %v3896 = vmax.f32 %v3892, %v3866
      %v3897 = vmax.f32 %v3893, %v3869
      %v3898 = vmax.f32 %v3894, %v3895
      %v3899 = vmax.f32 %v3896, %v3897
      %v3900 = vmax.f32 %v3898, %v3899
      %v3901 = vrot.slane %v3900, 4
      %v3902 = vmax.f32 %v3900, %v3901
      %v3903 = vrot.slane %v3902, 2
      %v3904 = vmax.f32 %v3902, %v3903
      %v3905 = vrot.slane %v3904, 1
      %v3906 = vmax.f32 %v3904, %v3905
      %vm3907 = vcmp.ge.f32.partialorder %v3710, %v3906
      %vm3908 = vcmp.ge.f32.partialorder %v3711, %v3906
      %vm3909 = vcmp.ge.f32.partialorder %v3712, %v3906
      %vm3910 = vcmp.ge.f32.partialorder %v3713, %v3906
      %vm3911 = vcmp.ge.f32.partialorder %v3714, %v3906
      %vm3912 = vcmp.ge.f32.partialorder %v3715, %v3906
      %vm3913 = vcmp.ge.f32.partialorder %v3716, %v3906
      %vm3914 = vcmp.ge.f32.partialorder %v3717, %v3906
      %vm3915 = vcmp.ge.f32.partialorder %v3718, %v3906
      %vm3916 = vcmp.ge.f32.partialorder %v3719, %v3906
      %vm3917 = vcmp.ge.f32.partialorder %v3720, %v3906
      %vm3918 = vcmp.ge.f32.partialorder %v3721, %v3906
      %vm3919 = vcmp.ge.f32.partialorder %v3722, %v3906
      %vm3920 = vcmp.ge.f32.partialorder %v3723, %v3906
      %vm3921 = vcmp.ge.f32.partialorder %v3724, %v3906
      %vm3922 = vcmp.ge.f32.partialorder %v3725, %v3906
      %vm3923 = vcmp.ge.f32.partialorder %v3726, %v3906
      %vm3924 = vcmp.ge.f32.partialorder %v3727, %v3906
      %vm3925 = vcmp.ge.f32.partialorder %v3728, %v3906
      %vm3926 = vcmp.ge.f32.partialorder %v3729, %v3906
      %vm3927 = vcmp.ge.f32.partialorder %v3730, %v3906
      %vm3928 = vcmp.ge.f32.partialorder %v3731, %v3906
      %vm3929 = vcmp.ge.f32.partialorder %v3732, %v3906
      %vm3930 = vcmp.ge.f32.partialorder %v3733, %v3906
      %vm3931 = vcmp.ge.f32.partialorder %v3734, %v3906
      %vm3932 = vcmp.ge.f32.partialorder %v3735, %v3906
      %vm3933 = vcmp.ge.f32.partialorder %v3736, %v3906
      %vm3934 = vcmp.ge.f32.partialorder %v3737, %v3906
      %vm3935 = vcmp.ge.f32.partialorder %v3738, %v3906
      %vm3936 = vcmp.ge.f32.partialorder %v3739, %v3906
      %vm3937 = vcmp.ge.f32.partialorder %v3740, %v3906
      %vm3938 = vcmp.ge.f32.partialorder %v3741, %v3906
      %vm3939 = vcmp.ge.f32.partialorder %v3742, %v3906
      %vm3940 = vcmp.ge.f32.partialorder %v3743, %v3906
      %vm3941 = vcmp.ge.f32.partialorder %v3744, %v3906
      %vm3942 = vcmp.ge.f32.partialorder %v3745, %v3906
      %vm3943 = vcmp.ge.f32.partialorder %v3746, %v3906
      %vm3944 = vcmp.ge.f32.partialorder %v3747, %v3906
      %vm3945 = vcmp.ge.f32.partialorder %v3748, %v3906
      %vm3946 = vcmp.ge.f32.partialorder %v3749, %v3906
      %vm3947 = vcmp.ge.f32.partialorder %v3750, %v3906
      %vm3948 = vcmp.ge.f32.partialorder %v3751, %v3906
      %vm3949 = vcmp.ge.f32.partialorder %v3752, %v3906
      %vm3950 = vcmp.ge.f32.partialorder %v3753, %v3906
      %vm3951 = vcmp.ge.f32.partialorder %v3754, %v3906
      %vm3952 = vcmp.ge.f32.partialorder %v3755, %v3906
      %vm3953 = vcmp.ge.f32.partialorder %v3756, %v3906
      %vm3954 = vcmp.ge.f32.partialorder %v3757, %v3906
      %vm3955 = vcmp.ge.f32.partialorder %v3758, %v3906
      %vm3956 = vcmp.ge.f32.partialorder %v3759, %v3906
      %vm3957 = vcmp.ge.f32.partialorder %v3760, %v3906
      %vm3958 = vcmp.ge.f32.partialorder %v3761, %v3906
      %vm3959 = vcmp.ge.f32.partialorder %v3762, %v3906
      %vm3960 = vcmp.ge.f32.partialorder %v3763, %v3906
      %vm3961 = vcmp.ge.f32.partialorder %v3764, %v3906
      %vm3962 = vcmp.ge.f32.partialorder %v3765, %v3906
      %vm3963 = vcmp.ge.f32.partialorder %v3766, %v3906
      %vm3964 = vcmp.ge.f32.partialorder %v3767, %v3906
      %vm3965 = vcmp.ge.f32.partialorder %v3768, %v3906
      %vm3966 = vcmp.ge.f32.partialorder %v3769, %v3906
      %vm3967 = vcmp.ge.f32.partialorder %v3770, %v3906
      %vm3968 = vcmp.ge.f32.partialorder %v3771, %v3906
      %vm3969 = vcmp.ge.f32.partialorder %v3772, %v3906
      %vm3970 = vcmp.ge.f32.partialorder %v3773, %v3906
      %v3971 = vsel %vm3907, %v3184, 64516.0
      %v3972 = vsel %vm3908, %v3185, 64516.0
      %v3973 = vsel %vm3909, %v3186, 64516.0
      %v3974 = vsel %vm3910, %v3187, 64516.0
      %v3975 = vsel %vm3911, %v3188, 64516.0
      %v3976 = vsel %vm3912, %v3189, 64516.0
      %v3977 = vsel %vm3913, %v3190, 64516.0
      %v3978 = vsel %vm3914, %v3191, 64516.0
      %v3979 = vsel %vm3915, %v3192, 64516.0
      %v3980 = vsel %vm3916, %v3193, 64516.0
      %v3981 = vsel %vm3917, %v3194, 64516.0
      %v3982 = vsel %vm3918, %v3195, 64516.0
      %v3983 = vsel %vm3919, %v3196, 64516.0
      %v3984 = vsel %vm3920, %v3197, 64516.0
      %v3985 = vsel %vm3921, %v3198, 64516.0
      %v3986 = vsel %vm3922, %v3199, 64516.0
      %v3987 = vsel %vm3923, %v3200, 64516.0
      %v3988 = vsel %vm3924, %v3201, 64516.0
      %v3989 = vsel %vm3925, %v3202, 64516.0
      %v3990 = vsel %vm3926, %v3203, 64516.0
      %v3991 = vsel %vm3927, %v3204, 64516.0
      %v3992 = vsel %vm3928, %v3205, 64516.0
      %v3993 = vsel %vm3929, %v3206, 64516.0
      %v3994 = vsel %vm3930, %v3207, 64516.0
      %v3995 = vsel %vm3931, %v3208, 64516.0
      %v3996 = vsel %vm3932, %v3209, 64516.0
      %v3997 = vsel %vm3933, %v3210, 64516.0
      %v3998 = vsel %vm3934, %v3211, 64516.0
      %v3999 = vsel %vm3935, %v3212, 64516.0
      %v4000 = vsel %vm3936, %v3213, 64516.0
      %v4001 = vsel %vm3937, %v3214, 64516.0
      %v4002 = vsel %vm3938, %v3215, 64516.0
      %v4003 = vsel %vm3939, %v3216, 64516.0
      %v4004 = vsel %vm3940, %v3217, 64516.0
      %v4005 = vsel %vm3941, %v3218, 64516.0
      %v4006 = vsel %vm3942, %v3219, 64516.0
      %v4007 = vsel %vm3943, %v3220, 64516.0
      %v4008 = vsel %vm3944, %v3221, 64516.0
      %v4009 = vsel %vm3945, %v3222, 64516.0
      %v4010 = vsel %vm3946, %v3223, 64516.0
      %v4011 = vsel %vm3947, %v3224, 64516.0
      %v4012 = vsel %vm3948, %v3225, 64516.0
      %v4013 = vsel %vm3949, %v3226, 64516.0
      %v4014 = vsel %vm3950, %v3227, 64516.0
      %v4015 = vsel %vm3951, %v3228, 64516.0
      %v4016 = vsel %vm3952, %v3229, 64516.0
      %v4017 = vsel %vm3953, %v3230, 64516.0
      %v4018 = vsel %vm3954, %v3231, 64516.0
      %v4019 = vsel %vm3955, %v3232, 64516.0
      %v4020 = vsel %vm3956, %v3233, 64516.0
      %v4021 = vsel %vm3957, %v3234, 64516.0
      %v4022 = vsel %vm3958, %v3235, 64516.0
      %v4023 = vsel %vm3959, %v3236, 64516.0
      %v4024 = vsel %vm3960, %v3237, 64516.0
      %v4025 = vsel %vm3961, %v3238, 64516.0
      %v4026 = vsel %vm3962, %v3239, 64516.0
      %v4027 = vsel %vm3963, %v3240, 64516.0
      %v4028 = vsel %vm3964, %v3241, 64516.0
      %v4029 = vsel %vm3965, %v3242, 64516.0
      %v4030 = vsel %vm3966, %v3243, 64516.0
      %v4031 = vsel %vm3967, %v3244, 64516.0
      %v4032 = vsel %vm3968, %v3245, 64516.0
      %v4033 = vsel %vm3969, %v3246, 64516.0
      %v4034 = vsel %vm3970, %v3247, 64516.0
      %v4035 = vmin.f32 %v3971, %v3972
      %4036 = vmin.xlane.f32.xlu0 %v4035
      %v4037 = vpop.xlane.xlu0 %4036
      %v4038 = vmin.f32 %v3973, %v3974
      %4039 = vmin.xlane.f32.xlu0 %v4038
      %v4040 = vpop.xlane.xlu0 %4039
      %v4041 = vmin.f32 %v3975, %v3976
      %4042 = vmin.xlane.f32.xlu0 %v4041
      %v4043 = vpop.xlane.xlu0 %4042
      %v4044 = vmin.f32 %v3977, %v3978
      %4045 = vmin.xlane.f32.xlu0 %v4044
      %v4046 = vpop.xlane.xlu0 %4045
      %v4047 = vmin.f32 %v3979, %v3980
      %4048 = vmin.xlane.f32.xlu0 %v4047
      %v4049 = vpop.xlane.xlu0 %4048
      %v4050 = vmin.f32 %v3981, %v3982
      %4051 = vmin.xlane.f32.xlu0 %v4050
      %v4052 = vpop.xlane.xlu0 %4051
      %v4053 = vmin.f32 %v3983, %v3984
      %4054 = vmin.xlane.f32.xlu0 %v4053
      %v4055 = vpop.xlane.xlu0 %4054
      %v4056 = vmin.f32 %v3985, %v3986
      %4057 = vmin.xlane.f32.xlu0 %v4056
      %v4058 = vpop.xlane.xlu0 %4057
      %v4059 = vmin.f32 %v3987, %v3988
      %4060 = vmin.xlane.f32.xlu0 %v4059
      %v4061 = vpop.xlane.xlu0 %4060
      %v4062 = vmin.f32 %v3989, %v3990
      %4063 = vmin.xlane.f32.xlu0 %v4062
      %v4064 = vpop.xlane.xlu0 %4063
      %v4065 = vmin.f32 %v3991, %v3992
      %4066 = vmin.xlane.f32.xlu0 %v4065
      %v4067 = vpop.xlane.xlu0 %4066
      %v4068 = vmin.f32 %v3993, %v3994
      %4069 = vmin.xlane.f32.xlu0 %v4068
      %v4070 = vpop.xlane.xlu0 %4069
      %v4071 = vmin.f32 %v3995, %v3996
      %4072 = vmin.xlane.f32.xlu0 %v4071
      %v4073 = vpop.xlane.xlu0 %4072
      %v4074 = vmin.f32 %v3997, %v3998
      %4075 = vmin.xlane.f32.xlu0 %v4074
      %v4076 = vpop.xlane.xlu0 %4075
      %v4077 = vmin.f32 %v3999, %v4000
      %4078 = vmin.xlane.f32.xlu0 %v4077
      %v4079 = vpop.xlane.xlu0 %4078
      %v4080 = vmin.f32 %v4001, %v4002
      %4081 = vmin.xlane.f32.xlu0 %v4080
      %v4082 = vpop.xlane.xlu0 %4081
      %v4083 = vmin.f32 %v4003, %v4004
      %4084 = vmin.xlane.f32.xlu0 %v4083
      %v4085 = vpop.xlane.xlu0 %4084
      %v4086 = vmin.f32 %v4005, %v4006
      %4087 = vmin.xlane.f32.xlu0 %v4086
      %v4088 = vpop.xlane.xlu0 %4087
      %v4089 = vmin.f32 %v4007, %v4008
      %4090 = vmin.xlane.f32.xlu0 %v4089
      %v4091 = vpop.xlane.xlu0 %4090
      %v4092 = vmin.f32 %v4009, %v4010
      %4093 = vmin.xlane.f32.xlu0 %v4092
      %v4094 = vpop.xlane.xlu0 %4093
      %v4095 = vmin.f32 %v4011, %v4012
      %4096 = vmin.xlane.f32.xlu0 %v4095
      %v4097 = vpop.xlane.xlu0 %4096
      %v4098 = vmin.f32 %v4013, %v4014
      %4099 = vmin.xlane.f32.xlu0 %v4098
      %v4100 = vpop.xlane.xlu0 %4099
      %v4101 = vmin.f32 %v4015, %v4016
      %4102 = vmin.xlane.f32.xlu0 %v4101
      %v4103 = vpop.xlane.xlu0 %4102
      %v4104 = vmin.f32 %v4017, %v4018
      %4105 = vmin.xlane.f32.xlu0 %v4104
      %v4106 = vpop.xlane.xlu0 %4105
      %v4107 = vmin.f32 %v4019, %v4020
      %4108 = vmin.xlane.f32.xlu0 %v4107
      %v4109 = vpop.xlane.xlu0 %4108
      %v4110 = vmin.f32 %v4021, %v4022
      %4111 = vmin.xlane.f32.xlu0 %v4110
      %v4112 = vpop.xlane.xlu0 %4111
      %v4113 = vmin.f32 %v4023, %v4024
      %4114 = vmin.xlane.f32.xlu0 %v4113
      %v4115 = vpop.xlane.xlu0 %4114
      %v4116 = vmin.f32 %v4025, %v4026
      %4117 = vmin.xlane.f32.xlu0 %v4116
      %v4118 = vpop.xlane.xlu0 %4117
      %v4119 = vmin.f32 %v4027, %v4028
      %4120 = vmin.xlane.f32.xlu0 %v4119
      %v4121 = vpop.xlane.xlu0 %4120
      %v4122 = vmin.f32 %v4029, %v4030
      %4123 = vmin.xlane.f32.xlu0 %v4122
      %v4124 = vpop.xlane.xlu0 %4123
      %v4125 = vmin.f32 %v4031, %v4032
      %4126 = vmin.xlane.f32.xlu0 %v4125
      %v4127 = vpop.xlane.xlu0 %4126
      %v4128 = vmin.f32 %v4033, %v4034
      %4129 = vmin.xlane.f32.xlu0 %v4128
      %v4130 = vpop.xlane.xlu0 %4129
      %v4131 = vmin.f32 %v4037, %v4049
      %v4132 = vmin.f32 %v4040, %v4052
      %v4133 = vmin.f32 %v4043, %v4055
      %v4134 = vmin.f32 %v4046, %v4058
      %v4135 = vmin.f32 %v4131, %v4061
      %v4136 = vmin.f32 %v4132, %v4064
      %v4137 = vmin.f32 %v4133, %v4067
      %v4138 = vmin.f32 %v4134, %v4070
      %v4139 = vmin.f32 %v4135, %v4073
      %v4140 = vmin.f32 %v4136, %v4076
      %v4141 = vmin.f32 %v4137, %v4079
      %v4142 = vmin.f32 %v4138, %v4082
      %v4143 = vmin.f32 %v4139, %v4085
      %v4144 = vmin.f32 %v4140, %v4088
      %v4145 = vmin.f32 %v4141, %v4091
      %v4146 = vmin.f32 %v4142, %v4094
      %v4147 = vmin.f32 %v4143, %v4097
      %v4148 = vmin.f32 %v4144, %v4100
      %v4149 = vmin.f32 %v4145, %v4103
      %v4150 = vmin.f32 %v4146, %v4106
      %v4151 = vmin.f32 %v4147, %v4109
      %v4152 = vmin.f32 %v4148, %v4112
      %v4153 = vmin.f32 %v4149, %v4115
      %v4154 = vmin.f32 %v4150, %v4118
      %v4155 = vmin.f32 %v4151, %v4121
      %v4156 = vmin.f32 %v4152, %v4124
      %v4157 = vmin.f32 %v4153, %v4127
      %v4158 = vmin.f32 %v4154, %v4130
      %v4159 = vmin.f32 %v4155, %v4156
      %v4160 = vmin.f32 %v4157, %v4158
      %v4161 = vmin.f32 %v4159, %v4160
      %v4162 = vrot.slane %v4161, 4
      %v4163 = vmin.f32 %v4161, %v4162
      %v4164 = vrot.slane %v4163, 2
      %v4165 = vmin.f32 %v4163, %v4164
      %v4166 = vrot.slane %v4165, 1
      %v4167 = vmin.f32 %v4165, %v4166
      %v4168 = vrcp.pop 254.0
      %v4169 = vmul.f32 %v4167, %v4168
      %v4170 = vfloor.f32 %v4169
      %v4171 = vmul.f32 %v4170, 254.0
      %v4172 = vsub.f32 %v4167, %v4171
      %v4173 = vadd.f32 %v4170, 1.0
      %v4174 = vrcp.pop 255.0
      %v4175 = vmul.f32 %v4173, %v4174
      %v4176 = vadd.f32 %v4172, 1.0
      %v4177 = vmul.f32 %v4176, %v4174
      %v4178 = vld [vmem:[#allocation2] sm:$0xff]
      %v4179 = vld [vmem:[#allocation2 + $0x8] sm:$0xff]
      %v4180 = vld [vmem:[#allocation2 + $0x10] sm:$0xff]
      %v4181 = vld [vmem:[%s203] sm:$0xff]
      %v4182 = vld [vmem:[%s203 + $0x8] sm:$0xff]
      %v4183 = vld [vmem:[%s203 + $0x10] sm:$0xff]
      %v4184 = vmul.f32 %v4181, %v4178
      %v4185 = vmul.f32 %v4182, %v4179
      %v4186 = vmul.f32 %v4183, %v4180
      %v4187 = vld [vmem:[%s198] sm:$0xff]
      %v4188 = vld [vmem:[%s198 + $0x8] sm:$0xff]
      %v4189 = vld [vmem:[%s198 + $0x10] sm:$0xff]
      %v4190 = vmul.f32 %v4187, %v4178
      %v4191 = vmul.f32 %v4188, %v4179
      %v4192 = vmul.f32 %v4189, %v4180
      %vm4193 = vcmp.ge.f32.partialorder %v4184, %v4177
      %vm4194 = vcmp.ge.f32.partialorder %v4185, %v4177
      %vm4195 = vcmp.ge.f32.partialorder %v4186, %v4177
      %vm4196 = vcmp.ge.f32.partialorder %v4184, %v4175
      %vm4197 = vcmp.ge.f32.partialorder %v4185, %v4175
      %vm4198 = vcmp.ge.f32.partialorder %v4186, %v4175
      %v4199 = vsel %vm4196, 0.5, 0.0
      %v4200 = vsel %vm4197, 0.5, 0.0
      %v4201 = vsel %vm4198, 0.5, 0.0
      %v4202 = vsel %vm4193, 1.0, %v4199
      %v4203 = vsel %vm4194, 1.0, %v4200
      %v4204 = vsel %vm4195, 1.0, %v4201
      %v4205 = vsub.f32 %v4202, %v4190
      %v4206 = vsub.f32 %v4203, %v4191
      %v4207 = vsub.f32 %v4204, %v4192
      %v4208 = vmul.f32 %v4205, %v4205
      %v4209 = vmul.f32 %v4206, %v4206
      %v4210 = vmul.f32 %v4207, %v4207
      %4211 = vadd.xlane.f32.xlu0 %v4208
      %v4212 = vpop.xlane.xlu0 %4211
      %4213 = vadd.xlane.f32.xlu0 %v4209
      %v4214 = vpop.xlane.xlu0 %4213
      %4215 = vadd.xlane.f32.xlu0 %v4210
      %v4216 = vpop.xlane.xlu0 %4215
      %v4217 = vadd.f32 %v4212, %v4214
      %v4218 = vadd.f32 %v4217, %v4216
      %v4219 = vrot.slane %v4218, 4
      %v4220 = vadd.f32 %v4218, %v4219
      %v4221 = vrot.slane %v4220, 2
      %v4222 = vadd.f32 %v4220, %v4221
      %v4223 = vrot.slane %v4222, 1
      %v4224 = vadd.f32 %v4222, %v4223
      %4225 = vadd.xlane.f32.xlu0 %v4178
      %v4226 = vpop.xlane.xlu0 %4225
      %4227 = vadd.xlane.f32.xlu0 %v4179
      %v4228 = vpop.xlane.xlu0 %4227
      %4229 = vadd.xlane.f32.xlu0 %v4180
      %v4230 = vpop.xlane.xlu0 %4229
      %v4231 = vadd.f32 %v4226, %v4228
      %v4232 = vadd.f32 %v4231, %v4230
      %v4233 = vrot.slane %v4232, 4
      %v4234 = vadd.f32 %v4232, %v4233
      %v4235 = vrot.slane %v4234, 2
      %v4236 = vadd.f32 %v4234, %v4235
      %v4237 = vrot.slane %v4236, 1
      %v4238 = vadd.f32 %v4236, %v4237
      %vm4239 = vcmp.eq.s32.totalorder %v212, 0
      %vm4240 = vcmp.eq.s32.totalorder %v212, 1
      %v4241 = vsel %vm4240, %v4238, 0.0
      %v4242 = vsel %vm4239, %v4224, %v4241
      %4243 = vst [vmem:[%s206] sm:$0x1] %v4242
      %p4244 = scmp.lt.s32.totalorder %s14, 1
      %s4245 = scalar_select %p4244, %s14, 1
      %s4246 = scalar_lea.vmem %s3, %s4245
      // Predicated region
      $region40: #{detail_loss.1} parent=31 // pred_check
        %p4247 = pneg %p110
      $region41: #{detail_loss.1} parent=31 // pred_check_branch
        %4249 = sbr.rel (%p4247) target = $region43
      $region42: #{detail_loss.1} parent=31 // pred_region
        _
      $region43: #{detail_loss.1} parent=31 // pred_fallthru
        _
    $region32: #{detail_loss.1} parent=5 // pred_fallthru
      _
    %p4250 = scmp.le.s32.totalorder 2, %s9
    // Predicated region
    $region44: #{detail_loss.1} parent=5 // pred_check
      %p4251 = pneg %p4250
    $region45: #{detail_loss.1} parent=5 // pred_check_branch
      %4253 = sbr.rel (%p4251) target = $region47
    $region46: #{detail_loss.1} parent=5 // pred_region
      %s4254 = ssub.s32 %s9, 2
      // Predicated region
      $region48: #{detail_loss.1} parent=46 // pred_check
        %p4255 = pneg %p116
      $region49: #{detail_loss.1} parent=46 // pred_check_branch
        %4257 = sbr.rel (%p4255) target = $region51
      $region50: #{detail_loss.1} parent=46 // pred_region
        %p4258 = scmp.lt.s32.totalorder %s15, 1
        %s4259 = scalar_select %p4258, %s15, 1
        %s4260 = scalar_lea.vmem %s3, %s4259
      $region51: #{detail_loss.1} parent=46 // pred_fallthru
        _
    $region47: #{detail_loss.1} parent=5 // pred_fallthru
      _
  $region6: #{detail_loss.1} parent=0 // loop_footer
    %s13 = sadd.s32 1, %s9
  $region7: #{detail_loss.1} parent=0 // loop_footer_branch
    %8 = sbr.rel target = $region3
  $region8: #{detail_loss.1} parent=0 // loop_exit
    _

</llo_original>
